<compile_context>
chip_gen: v5e
topology: v5e:2x2
jax: 0.10.0
libtpu: 0.0.40
codegen_flags: <defaults>
</compile_context>

<pallas_src>
import re
import numpy as np

import jax
import jax.numpy as jnp
from jax.experimental import pallas as pl
from jax.experimental.pallas import tpu as pltpu


MAX_LEN = 1024        # padded character-buffer length (multiple of 128 lanes)
BLOCK_ROWS = 8        # strings per block == sublane count of a vreg


def _clean_kernel(codes_ref, out_ref):
    c = codes_ref[...]                                  # (R, N) int32 char codes
    R, N = c.shape
    idx = jax.lax.broadcasted_iota(jnp.int32, (R, N), 1)
    neg1 = jnp.int32(-1)
    zero = jnp.int32(0)

    # ---- step 1: lowercase -------------------------------------------------
    c = jnp.where((c >= 65) & (c <= 90), c + 32, c)

    is_pad = c == 0                                     # 0 == padding / deleted
    # \s (ASCII): space, \t, \n, \v, \f, \r
    is_space = (c == 32) | ((c >= 9) & (c <= 13))

    # ---- roll-based lane-shift helpers (static shifts, per-row) ------------
    def shift_right(x, k, fill):
        # y[i] = x[i-k] for i >= k, else fill
        r = pltpu.roll(x, k, axis=1)
        return jnp.where(idx >= k, r, fill)

    def shift_left(x, k, fill):
        # y[i] = x[i+k] for i < N-k, else fill
        r = pltpu.roll(x, N - k, axis=1)
        return jnp.where(idx < N - k, r, fill)

    def prefix_max(x):
        # inclusive Hillis-Steele scan along lanes; identity is -1
        s = 1
        while s < N:
            x = jnp.maximum(x, shift_right(x, s, neg1))
            s *= 2
        return x

    # ---- step 2: strip HTML tags  <[^>]*>  (one fused scan) ----------------
    # Encode '<' at p as 2p+1 and '>' at p as 2p but effective from p+1 (so the
    # closing '>' is itself inside the match).  Parity of the running max tells
    # whether the most recent delimiter is an unclosed '<'.
    lt_val = jnp.where(c == 60, 2 * idx + 1, neg1)
    gt_val = jnp.where(c == 62, 2 * idx, neg1)
    tag_last = prefix_max(jnp.maximum(lt_val, shift_right(gt_val, 1, neg1)))
    gt_ahead = (2 * idx) <= jnp.max(gt_val, axis=1, keepdims=True)
    in_tag = (tag_last >= 0) & ((tag_last & 1) == 1) & gt_ahead
    avail = (~is_pad) & (~in_tag)

    # ---- step 3: strip URLs  http\S+  (one fused scan) ----------------------
    # TODO(synk): matches that only form after earlier deletions close a gap
    # (e.g. "ht<b></b>tp://x") are not re-detected on the uncompacted buffer.
    nonbreak = avail & (~is_space)                      # chars a \S+ run can cover
    cnb = jnp.where(nonbreak, c, zero)
    sl1 = shift_left(cnb, 1, zero)
    sl2 = shift_left(cnb, 2, zero)
    sl3 = shift_left(cnb, 3, zero)
    sl4 = shift_left(cnb, 4, zero)
    http_start = ((cnb == 104) & (sl1 == 116) & (sl2 == 116) & (sl3 == 112)
                  & (sl4 != 0))                         # 'h','t','t','p', >=1 \S after
    url_val = jnp.maximum(jnp.where(http_start, 2 * idx + 1, neg1),
                          jnp.where(~nonbreak, 2 * idx, neg1))
    url_last = prefix_max(url_val)
    in_url = (url_last >= 0) & ((url_last & 1) == 1)    # most recent event is a start

    # ---- step 4: strip non-word, non-space chars  [^\w\s] -------------------
    is_word = (((c >= 97) & (c <= 122)) |               # a-z (already lowercased)
               ((c >= 48) & (c <= 57)) |                # 0-9
               (c == 95))                               # '_'
    keep = avail & (~in_url) & (is_word | is_space)

    # ---- step 5: collapse whitespace runs + strip  (one fused scan) ---------
    kept_space = keep & is_space
    kw_val = jnp.where(keep & (~is_space), 2 * idx + 1, neg1)   # kept word: odd
    ws_val = jnp.maximum(jnp.where(kept_space, 2 * idx, neg1),  # kept space: even
                         kw_val)
    prev = shift_right(prefix_max(ws_val), 1, neg1)     # most recent kept char < i
    prev_space_or_none = (prev < 0) | ((prev & 1) == 0)
    after_last_word = (2 * idx) > jnp.max(kw_val, axis=1, keepdims=True)
    drop_space = kept_space & (prev_space_or_none | after_last_word)
    final_keep = keep & (~drop_space)

    out_ref[...] = jnp.where(final_keep,
                             jnp.where(is_space, jnp.int32(32), c),
                             zero)


class TextPreprocessorPallas:
    """Pallas-TPU equivalent of the PyTorch TextPreprocessor module (batched)."""

    def __init__(self, max_len: int = MAX_LEN):
        assert max_len % 128 == 0
        self.max_len = max_len
        self._calls = {}

    def _get_call(self, n_blocks: int):
        if n_blocks not in self._calls:
            R, N = BLOCK_ROWS, self.max_len
            self._calls[n_blocks] = pl.pallas_call(
                _clean_kernel,
                out_shape=jax.ShapeDtypeStruct((n_blocks * R, N), jnp.int32),
                grid=(n_blocks,),
                in_specs=[pl.BlockSpec((R, N), lambda i: (i, 0))],
                out_specs=pl.BlockSpec((R, N), lambda i: (i, 0)),
                compiler_params=pltpu.CompilerParams(
                    dimension_semantics=("parallel",)),
            )
        return self._calls[n_blocks]

    def __call__(self, texts):
        single = isinstance(texts, str)
        if single:
            texts = [texts]
        B = len(texts)
        n_blocks = max(1, -(-B // BLOCK_ROWS))
        codes = np.zeros((n_blocks * BLOCK_ROWS, self.max_len), dtype=np.int32)
        for r, t in enumerate(texts):
            # TODO(synk): ASCII-only host glue; the Python reference's \w / \S are
            # Unicode-aware.  Inputs longer than max_len are truncated.
            data = t.encode("ascii")[: self.max_len]
            if data:
                codes[r, : len(data)] = np.frombuffer(data, dtype=np.uint8)
        out = self._get_call(n_blocks)(jnp.asarray(codes))
        out = np.asarray(jax.block_until_ready(out))
        results = []
        for r in range(B):
            row = out[r]
            results.append(row[row != 0].astype(np.uint8).tobytes().decode("ascii"))
        return results[0] if single else results


def _ref_forward(text: str) -> str:
    # Pure-Python reference == the PyTorch module's forward().
    text = text.lower()
    text = re.sub('<[^>]*>', '', text)
    text = re.sub('http\\S+', '', text)
    text = re.sub('[^\\w\\s]', '', text)
    text = re.sub('\\s+', ' ', text).strip()
    return text


if __name__ == "__main__":
    # Deterministic example batch built with PRNGKey(0): 16 strings of 12
    # space-separated tokens exercising every cleaning stage.
    vocab = [
        "Hello,", "WORLD!", "<b>bold</b>", "http://example.com/a?b=1",
        "Great_stuff", "42", "  ", "\t", "(nice)", "<br/>", "end.",
    ]
    key = jax.random.PRNGKey(0)
    ids = jax.random.randint(key, (16, 12), 0, len(vocab))
    ids = np.asarray(ids)
    texts = [" ".join(vocab[int(i)] for i in row) for row in ids]

    preprocessor = TextPreprocessorPallas(max_len=MAX_LEN)
    cleaned = preprocessor(texts)

    for t, got in zip(texts, cleaned):
        expected = _ref_forward(t)
        assert got == expected, (t, got, expected)
    print("KERNEL_OK")
</pallas_src>

<mosaic_0001>
module attributes {stable_mosaic.version = 11 : i64} {
  func.func @_clean_kernel(%arg0: i32, %arg1: memref<8x1024xi32, #tpu.memory_space<vmem>>, %arg2: memref<8x1024xi32, #tpu.memory_space<vmem>>) attributes {dimension_semantics = [#tpu.dimension_semantics<parallel>], iteration_bounds = array<i64: 2>, scalar_prefetch = 0 : i64, scratch_operands = 0 : i64, tpu.core_type = #tpu.core_type<tc>, window_params = [{transform_indices = @transform_0, window_bounds = array<i64: 8, 1024>}, {transform_indices = @transform_1, window_bounds = array<i64: 8, 1024>}]} {
    %c0 = arith.constant 0 : index
    %c0_0 = arith.constant 0 : index
    %0 = vector.load %arg1[%c0, %c0_0] : memref<8x1024xi32, #tpu.memory_space<vmem>>, vector<8x1024xi32>
    %1 = tpu.iota {dimensions = array<i32: 1>} : vector<8x1024xi32>
    %c65_i32 = arith.constant 65 : i32
    %2 = vector.broadcast %c65_i32 : i32 to vector<8x1024xi32>
    %3 = arith.cmpi sge, %0, %2 : vector<8x1024xi32>
    %c90_i32 = arith.constant 90 : i32
    %4 = vector.broadcast %c90_i32 : i32 to vector<8x1024xi32>
    %5 = arith.cmpi sle, %0, %4 : vector<8x1024xi32>
    %6 = arith.andi %3, %5 : vector<8x1024xi1>
    %c32_i32 = arith.constant 32 : i32
    %7 = vector.broadcast %c32_i32 : i32 to vector<8x1024xi32>
    %8 = arith.addi %0, %7 : vector<8x1024xi32>
    %9 = arith.select %6, %8, %0 : vector<8x1024xi1>, vector<8x1024xi32>
    %c0_i32 = arith.constant 0 : i32
    %10 = vector.broadcast %c0_i32 : i32 to vector<8x1024xi32>
    %11 = arith.cmpi eq, %9, %10 : vector<8x1024xi32>
    %c32_i32_1 = arith.constant 32 : i32
    %12 = vector.broadcast %c32_i32_1 : i32 to vector<8x1024xi32>
    %13 = arith.cmpi eq, %9, %12 : vector<8x1024xi32>
    %c9_i32 = arith.constant 9 : i32
    %14 = vector.broadcast %c9_i32 : i32 to vector<8x1024xi32>
    %15 = arith.cmpi sge, %9, %14 : vector<8x1024xi32>
    %c13_i32 = arith.constant 13 : i32
    %16 = vector.broadcast %c13_i32 : i32 to vector<8x1024xi32>
    %17 = arith.cmpi sle, %9, %16 : vector<8x1024xi32>
    %18 = arith.andi %15, %17 : vector<8x1024xi1>
    %19 = arith.ori %13, %18 : vector<8x1024xi1>
    %c60_i32 = arith.constant 60 : i32
    %20 = vector.broadcast %c60_i32 : i32 to vector<8x1024xi32>
    %21 = arith.cmpi eq, %9, %20 : vector<8x1024xi32>
    %c2_i32 = arith.constant 2 : i32
    %22 = vector.broadcast %c2_i32 : i32 to vector<8x1024xi32>
    %23 = arith.muli %22, %1 : vector<8x1024xi32>
    %c1_i32 = arith.constant 1 : i32
    %24 = vector.broadcast %c1_i32 : i32 to vector<8x1024xi32>
    %25 = arith.addi %23, %24 : vector<8x1024xi32>
    %c-1_i32 = arith.constant -1 : i32
    %26 = vector.broadcast %c-1_i32 : i32 to vector<8x1024xi32>
    %27 = arith.select %21, %25, %26 : vector<8x1024xi1>, vector<8x1024xi32>
    %c62_i32 = arith.constant 62 : i32
    %28 = vector.broadcast %c62_i32 : i32 to vector<8x1024xi32>
    %29 = arith.cmpi eq, %9, %28 : vector<8x1024xi32>
    %c2_i32_2 = arith.constant 2 : i32
    %30 = vector.broadcast %c2_i32_2 : i32 to vector<8x1024xi32>
    %31 = arith.muli %30, %1 : vector<8x1024xi32>
    %c-1_i32_3 = arith.constant -1 : i32
    %32 = vector.broadcast %c-1_i32_3 : i32 to vector<8x1024xi32>
    %33 = arith.select %29, %31, %32 : vector<8x1024xi1>, vector<8x1024xi32>
    %c1_i32_4 = arith.constant 1 : i32
    %34 = tpu.dynamic_rotate %33 by %c1_i32_4 dim 1 : vector<8x1024xi32>, i32 -> vector<8x1024xi32>
    %c1_i32_5 = arith.constant 1 : i32
    %35 = vector.broadcast %c1_i32_5 : i32 to vector<8x1024xi32>
    %36 = arith.cmpi sge, %1, %35 : vector<8x1024xi32>
    %c-1_i32_6 = arith.constant -1 : i32
    %37 = vector.broadcast %c-1_i32_6 : i32 to vector<8x1024xi32>
    %38 = arith.select %36, %34, %37 : vector<8x1024xi1>, vector<8x1024xi32>
    %39 = arith.maxsi %27, %38 : vector<8x1024xi32>
    %c1_i32_7 = arith.constant 1 : i32
    %40 = tpu.dynamic_rotate %39 by %c1_i32_7 dim 1 : vector<8x1024xi32>, i32 -> vector<8x1024xi32>
    %c1_i32_8 = arith.constant 1 : i32
    %41 = vector.broadcast %c1_i32_8 : i32 to vector<8x1024xi32>
    %42 = arith.cmpi sge, %1, %41 : vector<8x1024xi32>
    %c-1_i32_9 = arith.constant -1 : i32
    %43 = vector.broadcast %c-1_i32_9 : i32 to vector<8x1024xi32>
    %44 = arith.select %42, %40, %43 : vector<8x1024xi1>, vector<8x1024xi32>
    %45 = arith.maxsi %39, %44 : vector<8x1024xi32>
    %c2_i32_10 = arith.constant 2 : i32
    %46 = tpu.dynamic_rotate %45 by %c2_i32_10 dim 1 : vector<8x1024xi32>, i32 -> vector<8x1024xi32>
    %c2_i32_11 = arith.constant 2 : i32
    %47 = vector.broadcast %c2_i32_11 : i32 to vector<8x1024xi32>
    %48 = arith.cmpi sge, %1, %47 : vector<8x1024xi32>
    %c-1_i32_12 = arith.constant -1 : i32
    %49 = vector.broadcast %c-1_i32_12 : i32 to vector<8x1024xi32>
    %50 = arith.select %48, %46, %49 : vector<8x1024xi1>, vector<8x1024xi32>
    %51 = arith.maxsi %45, %50 : vector<8x1024xi32>
    %c4_i32 = arith.constant 4 : i32
    %52 = tpu.dynamic_rotate %51 by %c4_i32 dim 1 : vector<8x1024xi32>, i32 -> vector<8x1024xi32>
    %c4_i32_13 = arith.constant 4 : i32
    %53 = vector.broadcast %c4_i32_13 : i32 to vector<8x1024xi32>
    %54 = arith.cmpi sge, %1, %53 : vector<8x1024xi32>
    %c-1_i32_14 = arith.constant -1 : i32
    %55 = vector.broadcast %c-1_i32_14 : i32 to vector<8x1024xi32>
    %56 = arith.select %54, %52, %55 : vector<8x1024xi1>, vector<8x1024xi32>
    %57 = arith.maxsi %51, %56 : vector<8x1024xi32>
    %c8_i32 = arith.constant 8 : i32
    %58 = tpu.dynamic_rotate %57 by %c8_i32 dim 1 : vector<8x1024xi32>, i32 -> vector<8x1024xi32>
    %c8_i32_15 = arith.constant 8 : i32
    %59 = vector.broadcast %c8_i32_15 : i32 to vector<8x1024xi32>
    %60 = arith.cmpi sge, %1, %59 : vector<8x1024xi32>
    %c-1_i32_16 = arith.constant -1 : i32
    %61 = vector.broadcast %c-1_i32_16 : i32 to vector<8x1024xi32>
    %62 = arith.select %60, %58, %61 : vector<8x1024xi1>, vector<8x1024xi32>
    %63 = arith.maxsi %57, %62 : vector<8x1024xi32>
    %c16_i32 = arith.constant 16 : i32
    %64 = tpu.dynamic_rotate %63 by %c16_i32 dim 1 : vector<8x1024xi32>, i32 -> vector<8x1024xi32>
    %c16_i32_17 = arith.constant 16 : i32
    %65 = vector.broadcast %c16_i32_17 : i32 to vector<8x1024xi32>
    %66 = arith.cmpi sge, %1, %65 : vector<8x1024xi32>
    %c-1_i32_18 = arith.constant -1 : i32
    %67 = vector.broadcast %c-1_i32_18 : i32 to vector<8x1024xi32>
    %68 = arith.select %66, %64, %67 : vector<8x1024xi1>, vector<8x1024xi32>
    %69 = arith.maxsi %63, %68 : vector<8x1024xi32>
    %c32_i32_19 = arith.constant 32 : i32
    %70 = tpu.dynamic_rotate %69 by %c32_i32_19 dim 1 : vector<8x1024xi32>, i32 -> vector<8x1024xi32>
    %c32_i32_20 = arith.constant 32 : i32
    %71 = vector.broadcast %c32_i32_20 : i32 to vector<8x1024xi32>
    %72 = arith.cmpi sge, %1, %71 : vector<8x1024xi32>
    %c-1_i32_21 = arith.constant -1 : i32
    %73 = vector.broadcast %c-1_i32_21 : i32 to vector<8x1024xi32>
    %74 = arith.select %72, %70, %73 : vector<8x1024xi1>, vector<8x1024xi32>
    %75 = arith.maxsi %69, %74 : vector<8x1024xi32>
    %c64_i32 = arith.constant 64 : i32
    %76 = tpu.dynamic_rotate %75 by %c64_i32 dim 1 : vector<8x1024xi32>, i32 -> vector<8x1024xi32>
    %c64_i32_22 = arith.constant 64 : i32
    %77 = vector.broadcast %c64_i32_22 : i32 to vector<8x1024xi32>
    %78 = arith.cmpi sge, %1, %77 : vector<8x1024xi32>
    %c-1_i32_23 = arith.constant -1 : i32
    %79 = vector.broadcast %c-1_i32_23 : i32 to vector<8x1024xi32>
    %80 = arith.select %78, %76, %79 : vector<8x1024xi1>, vector<8x1024xi32>
    %81 = arith.maxsi %75, %80 : vector<8x1024xi32>
    %c128_i32 = arith.constant 128 : i32
    %82 = tpu.dynamic_rotate %81 by %c128_i32 dim 1 : vector<8x1024xi32>, i32 -> vector<8x1024xi32>
    %c128_i32_24 = arith.constant 128 : i32
    %83 = vector.broadcast %c128_i32_24 : i32 to vector<8x1024xi32>
    %84 = arith.cmpi sge, %1, %83 : vector<8x1024xi32>
    %c-1_i32_25 = arith.constant -1 : i32
    %85 = vector.broadcast %c-1_i32_25 : i32 to vector<8x1024xi32>
    %86 = arith.select %84, %82, %85 : vector<8x1024xi1>, vector<8x1024xi32>
    %87 = arith.maxsi %81, %86 : vector<8x1024xi32>
    %c256_i32 = arith.constant 256 : i32
    %88 = tpu.dynamic_rotate %87 by %c256_i32 dim 1 : vector<8x1024xi32>, i32 -> vector<8x1024xi32>
    %c256_i32_26 = arith.constant 256 : i32
    %89 = vector.broadcast %c256_i32_26 : i32 to vector<8x1024xi32>
    %90 = arith.cmpi sge, %1, %89 : vector<8x1024xi32>
    %c-1_i32_27 = arith.constant -1 : i32
    %91 = vector.broadcast %c-1_i32_27 : i32 to vector<8x1024xi32>
    %92 = arith.select %90, %88, %91 : vector<8x1024xi1>, vector<8x1024xi32>
    %93 = arith.maxsi %87, %92 : vector<8x1024xi32>
    %c512_i32 = arith.constant 512 : i32
    %94 = tpu.dynamic_rotate %93 by %c512_i32 dim 1 : vector<8x1024xi32>, i32 -> vector<8x1024xi32>
    %c512_i32_28 = arith.constant 512 : i32
    %95 = vector.broadcast %c512_i32_28 : i32 to vector<8x1024xi32>
    %96 = arith.cmpi sge, %1, %95 : vector<8x1024xi32>
    %c-1_i32_29 = arith.constant -1 : i32
    %97 = vector.broadcast %c-1_i32_29 : i32 to vector<8x1024xi32>
    %98 = arith.select %96, %94, %97 : vector<8x1024xi1>, vector<8x1024xi32>
    %99 = arith.maxsi %93, %98 : vector<8x1024xi32>
    %c2_i32_30 = arith.constant 2 : i32
    %100 = vector.broadcast %c2_i32_30 : i32 to vector<8x1024xi32>
    %101 = arith.muli %100, %1 : vector<8x1024xi32>
    %cst = arith.constant dense<-2147483648> : vector<8xi32>
    %102 = vector.multi_reduction <maxsi>, %33, %cst [1] : vector<8x1024xi32> to vector<8xi32>
    %103 = vector.shape_cast %102 : vector<8xi32> to vector<8x1xi32>
    %104 = vector.broadcast %103 : vector<8x1xi32> to vector<8x1024xi32>
    %105 = arith.cmpi sle, %101, %104 : vector<8x1024xi32>
    %c0_i32_31 = arith.constant 0 : i32
    %106 = vector.broadcast %c0_i32_31 : i32 to vector<8x1024xi32>
    %107 = arith.cmpi sge, %99, %106 : vector<8x1024xi32>
    %c1_i32_32 = arith.constant 1 : i32
    %108 = vector.broadcast %c1_i32_32 : i32 to vector<8x1024xi32>
    %109 = arith.andi %99, %108 : vector<8x1024xi32>
    %c1_i32_33 = arith.constant 1 : i32
    %110 = vector.broadcast %c1_i32_33 : i32 to vector<8x1024xi32>
    %111 = arith.cmpi eq, %109, %110 : vector<8x1024xi32>
    %112 = arith.andi %107, %111 : vector<8x1024xi1>
    %113 = arith.andi %112, %105 : vector<8x1024xi1>
    %cst_34 = arith.constant dense<true> : vector<8x1024xi1>
    %114 = arith.xori %11, %cst_34 : vector<8x1024xi1>
    %cst_35 = arith.constant dense<true> : vector<8x1024xi1>
    %115 = arith.xori %113, %cst_35 : vector<8x1024xi1>
    %116 = arith.andi %114, %115 : vector<8x1024xi1>
    %cst_36 = arith.constant dense<true> : vector<8x1024xi1>
    %117 = arith.xori %19, %cst_36 : vector<8x1024xi1>
    %118 = arith.andi %116, %117 : vector<8x1024xi1>
    %c0_i32_37 = arith.constant 0 : i32
    %119 = vector.broadcast %c0_i32_37 : i32 to vector<8x1024xi32>
    %120 = arith.select %118, %9, %119 : vector<8x1024xi1>, vector<8x1024xi32>
    %c1023_i32 = arith.constant 1023 : i32
    %121 = tpu.dynamic_rotate %120 by %c1023_i32 dim 1 : vector<8x1024xi32>, i32 -> vector<8x1024xi32>
    %c1023_i32_38 = arith.constant 1023 : i32
    %122 = vector.broadcast %c1023_i32_38 : i32 to vector<8x1024xi32>
    %123 = arith.cmpi slt, %1, %122 : vector<8x1024xi32>
    %c0_i32_39 = arith.constant 0 : i32
    %124 = vector.broadcast %c0_i32_39 : i32 to vector<8x1024xi32>
    %125 = arith.select %123, %121, %124 : vector<8x1024xi1>, vector<8x1024xi32>
    %c1022_i32 = arith.constant 1022 : i32
    %126 = tpu.dynamic_rotate %120 by %c1022_i32 dim 1 : vector<8x1024xi32>, i32 -> vector<8x1024xi32>
    %c1022_i32_40 = arith.constant 1022 : i32
    %127 = vector.broadcast %c1022_i32_40 : i32 to vector<8x1024xi32>
    %128 = arith.cmpi slt, %1, %127 : vector<8x1024xi32>
    %c0_i32_41 = arith.constant 0 : i32
    %129 = vector.broadcast %c0_i32_41 : i32 to vector<8x1024xi32>
    %130 = arith.select %128, %126, %129 : vector<8x1024xi1>, vector<8x1024xi32>
    %c1021_i32 = arith.constant 1021 : i32
    %131 = tpu.dynamic_rotate %120 by %c1021_i32 dim 1 : vector<8x1024xi32>, i32 -> vector<8x1024xi32>
    %c1021_i32_42 = arith.constant 1021 : i32
    %132 = vector.broadcast %c1021_i32_42 : i32 to vector<8x1024xi32>
    %133 = arith.cmpi slt, %1, %132 : vector<8x1024xi32>
    %c0_i32_43 = arith.constant 0 : i32
    %134 = vector.broadcast %c0_i32_43 : i32 to vector<8x1024xi32>
    %135 = arith.select %133, %131, %134 : vector<8x1024xi1>, vector<8x1024xi32>
    %c1020_i32 = arith.constant 1020 : i32
    %136 = tpu.dynamic_rotate %120 by %c1020_i32 dim 1 : vector<8x1024xi32>, i32 -> vector<8x1024xi32>
    %c1020_i32_44 = arith.constant 1020 : i32
    %137 = vector.broadcast %c1020_i32_44 : i32 to vector<8x1024xi32>
    %138 = arith.cmpi slt, %1, %137 : vector<8x1024xi32>
    %c0_i32_45 = arith.constant 0 : i32
    %139 = vector.broadcast %c0_i32_45 : i32 to vector<8x1024xi32>
    %140 = arith.select %138, %136, %139 : vector<8x1024xi1>, vector<8x1024xi32>
    %c104_i32 = arith.constant 104 : i32
    %141 = vector.broadcast %c104_i32 : i32 to vector<8x1024xi32>
    %142 = arith.cmpi eq, %120, %141 : vector<8x1024xi32>
    %c116_i32 = arith.constant 116 : i32
    %143 = vector.broadcast %c116_i32 : i32 to vector<8x1024xi32>
    %144 = arith.cmpi eq, %125, %143 : vector<8x1024xi32>
    %145 = arith.andi %142, %144 : vector<8x1024xi1>
    %c116_i32_46 = arith.constant 116 : i32
    %146 = vector.broadcast %c116_i32_46 : i32 to vector<8x1024xi32>
    %147 = arith.cmpi eq, %130, %146 : vector<8x1024xi32>
    %148 = arith.andi %145, %147 : vector<8x1024xi1>
    %c112_i32 = arith.constant 112 : i32
    %149 = vector.broadcast %c112_i32 : i32 to vector<8x1024xi32>
    %150 = arith.cmpi eq, %135, %149 : vector<8x1024xi32>
    %151 = arith.andi %148, %150 : vector<8x1024xi1>
    %c0_i32_47 = arith.constant 0 : i32
    %152 = vector.broadcast %c0_i32_47 : i32 to vector<8x1024xi32>
    %153 = arith.cmpi ne, %140, %152 : vector<8x1024xi32>
    %154 = arith.andi %151, %153 : vector<8x1024xi1>
    %c2_i32_48 = arith.constant 2 : i32
    %155 = vector.broadcast %c2_i32_48 : i32 to vector<8x1024xi32>
    %156 = arith.muli %155, %1 : vector<8x1024xi32>
    %c1_i32_49 = arith.constant 1 : i32
    %157 = vector.broadcast %c1_i32_49 : i32 to vector<8x1024xi32>
    %158 = arith.addi %156, %157 : vector<8x1024xi32>
    %c-1_i32_50 = arith.constant -1 : i32
    %159 = vector.broadcast %c-1_i32_50 : i32 to vector<8x1024xi32>
    %160 = arith.select %154, %158, %159 : vector<8x1024xi1>, vector<8x1024xi32>
    %cst_51 = arith.constant dense<true> : vector<8x1024xi1>
    %161 = arith.xori %118, %cst_51 : vector<8x1024xi1>
    %c2_i32_52 = arith.constant 2 : i32
    %162 = vector.broadcast %c2_i32_52 : i32 to vector<8x1024xi32>
    %163 = arith.muli %162, %1 : vector<8x1024xi32>
    %c-1_i32_53 = arith.constant -1 : i32
    %164 = vector.broadcast %c-1_i32_53 : i32 to vector<8x1024xi32>
    %165 = arith.select %161, %163, %164 : vector<8x1024xi1>, vector<8x1024xi32>
    %166 = arith.maxsi %160, %165 : vector<8x1024xi32>
    %c1_i32_54 = arith.constant 1 : i32
    %167 = tpu.dynamic_rotate %166 by %c1_i32_54 dim 1 : vector<8x1024xi32>, i32 -> vector<8x1024xi32>
    %c1_i32_55 = arith.constant 1 : i32
    %168 = vector.broadcast %c1_i32_55 : i32 to vector<8x1024xi32>
    %169 = arith.cmpi sge, %1, %168 : vector<8x1024xi32>
    %c-1_i32_56 = arith.constant -1 : i32
    %170 = vector.broadcast %c-1_i32_56 : i32 to vector<8x1024xi32>
    %171 = arith.select %169, %167, %170 : vector<8x1024xi1>, vector<8x1024xi32>
    %172 = arith.maxsi %166, %171 : vector<8x1024xi32>
    %c2_i32_57 = arith.constant 2 : i32
    %173 = tpu.dynamic_rotate %172 by %c2_i32_57 dim 1 : vector<8x1024xi32>, i32 -> vector<8x1024xi32>
    %c2_i32_58 = arith.constant 2 : i32
    %174 = vector.broadcast %c2_i32_58 : i32 to vector<8x1024xi32>
    %175 = arith.cmpi sge, %1, %174 : vector<8x1024xi32>
    %c-1_i32_59 = arith.constant -1 : i32
    %176 = vector.broadcast %c-1_i32_59 : i32 to vector<8x1024xi32>
    %177 = arith.select %175, %173, %176 : vector<8x1024xi1>, vector<8x1024xi32>
    %178 = arith.maxsi %172, %177 : vector<8x1024xi32>
    %c4_i32_60 = arith.constant 4 : i32
    %179 = tpu.dynamic_rotate %178 by %c4_i32_60 dim 1 : vector<8x1024xi32>, i32 -> vector<8x1024xi32>
    %c4_i32_61 = arith.constant 4 : i32
    %180 = vector.broadcast %c4_i32_61 : i32 to vector<8x1024xi32>
    %181 = arith.cmpi sge, %1, %180 : vector<8x1024xi32>
    %c-1_i32_62 = arith.constant -1 : i32
    %182 = vector.broadcast %c-1_i32_62 : i32 to vector<8x1024xi32>
    %183 = arith.select %181, %179, %182 : vector<8x1024xi1>, vector<8x1024xi32>
    %184 = arith.maxsi %178, %183 : vector<8x1024xi32>
    %c8_i32_63 = arith.constant 8 : i32
    %185 = tpu.dynamic_rotate %184 by %c8_i32_63 dim 1 : vector<8x1024xi32>, i32 -> vector<8x1024xi32>
    %c8_i32_64 = arith.constant 8 : i32
    %186 = vector.broadcast %c8_i32_64 : i32 to vector<8x1024xi32>
    %187 = arith.cmpi sge, %1, %186 : vector<8x1024xi32>
    %c-1_i32_65 = arith.constant -1 : i32
    %188 = vector.broadcast %c-1_i32_65 : i32 to vector<8x1024xi32>
    %189 = arith.select %187, %185, %188 : vector<8x1024xi1>, vector<8x1024xi32>
    %190 = arith.maxsi %184, %189 : vector<8x1024xi32>
    %c16_i32_66 = arith.constant 16 : i32
    %191 = tpu.dynamic_rotate %190 by %c16_i32_66 dim 1 : vector<8x1024xi32>, i32 -> vector<8x1024xi32>
    %c16_i32_67 = arith.constant 16 : i32
    %192 = vector.broadcast %c16_i32_67 : i32 to vector<8x1024xi32>
    %193 = arith.cmpi sge, %1, %192 : vector<8x1024xi32>
    %c-1_i32_68 = arith.constant -1 : i32
    %194 = vector.broadcast %c-1_i32_68 : i32 to vector<8x1024xi32>
    %195 = arith.select %193, %191, %194 : vector<8x1024xi1>, vector<8x1024xi32>
    %196 = arith.maxsi %190, %195 : vector<8x1024xi32>
    %c32_i32_69 = arith.constant 32 : i32
    %197 = tpu.dynamic_rotate %196 by %c32_i32_69 dim 1 : vector<8x1024xi32>, i32 -> vector<8x1024xi32>
    %c32_i32_70 = arith.constant 32 : i32
    %198 = vector.broadcast %c32_i32_70 : i32 to vector<8x1024xi32>
    %199 = arith.cmpi sge, %1, %198 : vector<8x1024xi32>
    %c-1_i32_71 = arith.constant -1 : i32
    %200 = vector.broadcast %c-1_i32_71 : i32 to vector<8x1024xi32>
    %201 = arith.select %199, %197, %200 : vector<8x1024xi1>, vector<8x1024xi32>
    %202 = arith.maxsi %196, %201 : vector<8x1024xi32>
    %c64_i32_72 = arith.constant 64 : i32
    %203 = tpu.dynamic_rotate %202 by %c64_i32_72 dim 1 : vector<8x1024xi32>, i32 -> vector<8x1024xi32>
    %c64_i32_73 = arith.constant 64 : i32
    %204 = vector.broadcast %c64_i32_73 : i32 to vector<8x1024xi32>
    %205 = arith.cmpi sge, %1, %204 : vector<8x1024xi32>
    %c-1_i32_74 = arith.constant -1 : i32
    %206 = vector.broadcast %c-1_i32_74 : i32 to vector<8x1024xi32>
    %207 = arith.select %205, %203, %206 : vector<8x1024xi1>, vector<8x1024xi32>
    %208 = arith.maxsi %202, %207 : vector<8x1024xi32>
    %c128_i32_75 = arith.constant 128 : i32
    %209 = tpu.dynamic_rotate %208 by %c128_i32_75 dim 1 : vector<8x1024xi32>, i32 -> vector<8x1024xi32>
    %c128_i32_76 = arith.constant 128 : i32
    %210 = vector.broadcast %c128_i32_76 : i32 to vector<8x1024xi32>
    %211 = arith.cmpi sge, %1, %210 : vector<8x1024xi32>
    %c-1_i32_77 = arith.constant -1 : i32
    %212 = vector.broadcast %c-1_i32_77 : i32 to vector<8x1024xi32>
    %213 = arith.select %211, %209, %212 : vector<8x1024xi1>, vector<8x1024xi32>
    %214 = arith.maxsi %208, %213 : vector<8x1024xi32>
    %c256_i32_78 = arith.constant 256 : i32
    %215 = tpu.dynamic_rotate %214 by %c256_i32_78 dim 1 : vector<8x1024xi32>, i32 -> vector<8x1024xi32>
    %c256_i32_79 = arith.constant 256 : i32
    %216 = vector.broadcast %c256_i32_79 : i32 to vector<8x1024xi32>
    %217 = arith.cmpi sge, %1, %216 : vector<8x1024xi32>
    %c-1_i32_80 = arith.constant -1 : i32
    %218 = vector.broadcast %c-1_i32_80 : i32 to vector<8x1024xi32>
    %219 = arith.select %217, %215, %218 : vector<8x1024xi1>, vector<8x1024xi32>
    %220 = arith.maxsi %214, %219 : vector<8x1024xi32>
    %c512_i32_81 = arith.constant 512 : i32
    %221 = tpu.dynamic_rotate %220 by %c512_i32_81 dim 1 : vector<8x1024xi32>, i32 -> vector<8x1024xi32>
    %c512_i32_82 = arith.constant 512 : i32
    %222 = vector.broadcast %c512_i32_82 : i32 to vector<8x1024xi32>
    %223 = arith.cmpi sge, %1, %222 : vector<8x1024xi32>
    %c-1_i32_83 = arith.constant -1 : i32
    %224 = vector.broadcast %c-1_i32_83 : i32 to vector<8x1024xi32>
    %225 = arith.select %223, %221, %224 : vector<8x1024xi1>, vector<8x1024xi32>
    %226 = arith.maxsi %220, %225 : vector<8x1024xi32>
    %c0_i32_84 = arith.constant 0 : i32
    %227 = vector.broadcast %c0_i32_84 : i32 to vector<8x1024xi32>
    %228 = arith.cmpi sge, %226, %227 : vector<8x1024xi32>
    %c1_i32_85 = arith.constant 1 : i32
    %229 = vector.broadcast %c1_i32_85 : i32 to vector<8x1024xi32>
    %230 = arith.andi %226, %229 : vector<8x1024xi32>
    %c1_i32_86 = arith.constant 1 : i32
    %231 = vector.broadcast %c1_i32_86 : i32 to vector<8x1024xi32>
    %232 = arith.cmpi eq, %230, %231 : vector<8x1024xi32>
    %233 = arith.andi %228, %232 : vector<8x1024xi1>
    %c97_i32 = arith.constant 97 : i32
    %234 = vector.broadcast %c97_i32 : i32 to vector<8x1024xi32>
    %235 = arith.cmpi sge, %9, %234 : vector<8x1024xi32>
    %c122_i32 = arith.constant 122 : i32
    %236 = vector.broadcast %c122_i32 : i32 to vector<8x1024xi32>
    %237 = arith.cmpi sle, %9, %236 : vector<8x1024xi32>
    %238 = arith.andi %235, %237 : vector<8x1024xi1>
    %c48_i32 = arith.constant 48 : i32
    %239 = vector.broadcast %c48_i32 : i32 to vector<8x1024xi32>
    %240 = arith.cmpi sge, %9, %239 : vector<8x1024xi32>
    %c57_i32 = arith.constant 57 : i32
    %241 = vector.broadcast %c57_i32 : i32 to vector<8x1024xi32>
    %242 = arith.cmpi sle, %9, %241 : vector<8x1024xi32>
    %243 = arith.andi %240, %242 : vector<8x1024xi1>
    %244 = arith.ori %238, %243 : vector<8x1024xi1>
    %c95_i32 = arith.constant 95 : i32
    %245 = vector.broadcast %c95_i32 : i32 to vector<8x1024xi32>
    %246 = arith.cmpi eq, %9, %245 : vector<8x1024xi32>
    %247 = arith.ori %244, %246 : vector<8x1024xi1>
    %cst_87 = arith.constant dense<true> : vector<8x1024xi1>
    %248 = arith.xori %233, %cst_87 : vector<8x1024xi1>
    %249 = arith.andi %116, %248 : vector<8x1024xi1>
    %250 = arith.ori %247, %19 : vector<8x1024xi1>
    %251 = arith.andi %249, %250 : vector<8x1024xi1>
    %252 = arith.andi %251, %19 : vector<8x1024xi1>
    %cst_88 = arith.constant dense<true> : vector<8x1024xi1>
    %253 = arith.xori %19, %cst_88 : vector<8x1024xi1>
    %254 = arith.andi %251, %253 : vector<8x1024xi1>
    %c2_i32_89 = arith.constant 2 : i32
    %255 = vector.broadcast %c2_i32_89 : i32 to vector<8x1024xi32>
    %256 = arith.muli %255, %1 : vector<8x1024xi32>
    %c1_i32_90 = arith.constant 1 : i32
    %257 = vector.broadcast %c1_i32_90 : i32 to vector<8x1024xi32>
    %258 = arith.addi %256, %257 : vector<8x1024xi32>
    %c-1_i32_91 = arith.constant -1 : i32
    %259 = vector.broadcast %c-1_i32_91 : i32 to vector<8x1024xi32>
    %260 = arith.select %254, %258, %259 : vector<8x1024xi1>, vector<8x1024xi32>
    %c2_i32_92 = arith.constant 2 : i32
    %261 = vector.broadcast %c2_i32_92 : i32 to vector<8x1024xi32>
    %262 = arith.muli %261, %1 : vector<8x1024xi32>
    %c-1_i32_93 = arith.constant -1 : i32
    %263 = vector.broadcast %c-1_i32_93 : i32 to vector<8x1024xi32>
    %264 = arith.select %252, %262, %263 : vector<8x1024xi1>, vector<8x1024xi32>
    %265 = arith.maxsi %264, %260 : vector<8x1024xi32>
    %c1_i32_94 = arith.constant 1 : i32
    %266 = tpu.dynamic_rotate %265 by %c1_i32_94 dim 1 : vector<8x1024xi32>, i32 -> vector<8x1024xi32>
    %c1_i32_95 = arith.constant 1 : i32
    %267 = vector.broadcast %c1_i32_95 : i32 to vector<8x1024xi32>
    %268 = arith.cmpi sge, %1, %267 : vector<8x1024xi32>
    %c-1_i32_96 = arith.constant -1 : i32
    %269 = vector.broadcast %c-1_i32_96 : i32 to vector<8x1024xi32>
    %270 = arith.select %268, %266, %269 : vector<8x1024xi1>, vector<8x1024xi32>
    %271 = arith.maxsi %265, %270 : vector<8x1024xi32>
    %c2_i32_97 = arith.constant 2 : i32
    %272 = tpu.dynamic_rotate %271 by %c2_i32_97 dim 1 : vector<8x1024xi32>, i32 -> vector<8x1024xi32>
    %c2_i32_98 = arith.constant 2 : i32
    %273 = vector.broadcast %c2_i32_98 : i32 to vector<8x1024xi32>
    %274 = arith.cmpi sge, %1, %273 : vector<8x1024xi32>
    %c-1_i32_99 = arith.constant -1 : i32
    %275 = vector.broadcast %c-1_i32_99 : i32 to vector<8x1024xi32>
    %276 = arith.select %274, %272, %275 : vector<8x1024xi1>, vector<8x1024xi32>
    %277 = arith.maxsi %271, %276 : vector<8x1024xi32>
    %c4_i32_100 = arith.constant 4 : i32
    %278 = tpu.dynamic_rotate %277 by %c4_i32_100 dim 1 : vector<8x1024xi32>, i32 -> vector<8x1024xi32>
    %c4_i32_101 = arith.constant 4 : i32
    %279 = vector.broadcast %c4_i32_101 : i32 to vector<8x1024xi32>
    %280 = arith.cmpi sge, %1, %279 : vector<8x1024xi32>
    %c-1_i32_102 = arith.constant -1 : i32
    %281 = vector.broadcast %c-1_i32_102 : i32 to vector<8x1024xi32>
    %282 = arith.select %280, %278, %281 : vector<8x1024xi1>, vector<8x1024xi32>
    %283 = arith.maxsi %277, %282 : vector<8x1024xi32>
    %c8_i32_103 = arith.constant 8 : i32
    %284 = tpu.dynamic_rotate %283 by %c8_i32_103 dim 1 : vector<8x1024xi32>, i32 -> vector<8x1024xi32>
    %c8_i32_104 = arith.constant 8 : i32
    %285 = vector.broadcast %c8_i32_104 : i32 to vector<8x1024xi32>
    %286 = arith.cmpi sge, %1, %285 : vector<8x1024xi32>
    %c-1_i32_105 = arith.constant -1 : i32
    %287 = vector.broadcast %c-1_i32_105 : i32 to vector<8x1024xi32>
    %288 = arith.select %286, %284, %287 : vector<8x1024xi1>, vector<8x1024xi32>
    %289 = arith.maxsi %283, %288 : vector<8x1024xi32>
    %c16_i32_106 = arith.constant 16 : i32
    %290 = tpu.dynamic_rotate %289 by %c16_i32_106 dim 1 : vector<8x1024xi32>, i32 -> vector<8x1024xi32>
    %c16_i32_107 = arith.constant 16 : i32
    %291 = vector.broadcast %c16_i32_107 : i32 to vector<8x1024xi32>
    %292 = arith.cmpi sge, %1, %291 : vector<8x1024xi32>
    %c-1_i32_108 = arith.constant -1 : i32
    %293 = vector.broadcast %c-1_i32_108 : i32 to vector<8x1024xi32>
    %294 = arith.select %292, %290, %293 : vector<8x1024xi1>, vector<8x1024xi32>
    %295 = arith.maxsi %289, %294 : vector<8x1024xi32>
    %c32_i32_109 = arith.constant 32 : i32
    %296 = tpu.dynamic_rotate %295 by %c32_i32_109 dim 1 : vector<8x1024xi32>, i32 -> vector<8x1024xi32>
    %c32_i32_110 = arith.constant 32 : i32
    %297 = vector.broadcast %c32_i32_110 : i32 to vector<8x1024xi32>
    %298 = arith.cmpi sge, %1, %297 : vector<8x1024xi32>
    %c-1_i32_111 = arith.constant -1 : i32
    %299 = vector.broadcast %c-1_i32_111 : i32 to vector<8x1024xi32>
    %300 = arith.select %298, %296, %299 : vector<8x1024xi1>, vector<8x1024xi32>
    %301 = arith.maxsi %295, %300 : vector<8x1024xi32>
    %c64_i32_112 = arith.constant 64 : i32
    %302 = tpu.dynamic_rotate %301 by %c64_i32_112 dim 1 : vector<8x1024xi32>, i32 -> vector<8x1024xi32>
    %c64_i32_113 = arith.constant 64 : i32
    %303 = vector.broadcast %c64_i32_113 : i32 to vector<8x1024xi32>
    %304 = arith.cmpi sge, %1, %303 : vector<8x1024xi32>
    %c-1_i32_114 = arith.constant -1 : i32
    %305 = vector.broadcast %c-1_i32_114 : i32 to vector<8x1024xi32>
    %306 = arith.select %304, %302, %305 : vector<8x1024xi1>, vector<8x1024xi32>
    %307 = arith.maxsi %301, %306 : vector<8x1024xi32>
    %c128_i32_115 = arith.constant 128 : i32
    %308 = tpu.dynamic_rotate %307 by %c128_i32_115 dim 1 : vector<8x1024xi32>, i32 -> vector<8x1024xi32>
    %c128_i32_116 = arith.constant 128 : i32
    %309 = vector.broadcast %c128_i32_116 : i32 to vector<8x1024xi32>
    %310 = arith.cmpi sge, %1, %309 : vector<8x1024xi32>
    %c-1_i32_117 = arith.constant -1 : i32
    %311 = vector.broadcast %c-1_i32_117 : i32 to vector<8x1024xi32>
    %312 = arith.select %310, %308, %311 : vector<8x1024xi1>, vector<8x1024xi32>
    %313 = arith.maxsi %307, %312 : vector<8x1024xi32>
    %c256_i32_118 = arith.constant 256 : i32
    %314 = tpu.dynamic_rotate %313 by %c256_i32_118 dim 1 : vector<8x1024xi32>, i32 -> vector<8x1024xi32>
    %c256_i32_119 = arith.constant 256 : i32
    %315 = vector.broadcast %c256_i32_119 : i32 to vector<8x1024xi32>
    %316 = arith.cmpi sge, %1, %315 : vector<8x1024xi32>
    %c-1_i32_120 = arith.constant -1 : i32
    %317 = vector.broadcast %c-1_i32_120 : i32 to vector<8x1024xi32>
    %318 = arith.select %316, %314, %317 : vector<8x1024xi1>, vector<8x1024xi32>
    %319 = arith.maxsi %313, %318 : vector<8x1024xi32>
    %c512_i32_121 = arith.constant 512 : i32
    %320 = tpu.dynamic_rotate %319 by %c512_i32_121 dim 1 : vector<8x1024xi32>, i32 -> vector<8x1024xi32>
    %c512_i32_122 = arith.constant 512 : i32
    %321 = vector.broadcast %c512_i32_122 : i32 to vector<8x1024xi32>
    %322 = arith.cmpi sge, %1, %321 : vector<8x1024xi32>
    %c-1_i32_123 = arith.constant -1 : i32
    %323 = vector.broadcast %c-1_i32_123 : i32 to vector<8x1024xi32>
    %324 = arith.select %322, %320, %323 : vector<8x1024xi1>, vector<8x1024xi32>
    %325 = arith.maxsi %319, %324 : vector<8x1024xi32>
    %c1_i32_124 = arith.constant 1 : i32
    %326 = tpu.dynamic_rotate %325 by %c1_i32_124 dim 1 : vector<8x1024xi32>, i32 -> vector<8x1024xi32>
    %c1_i32_125 = arith.constant 1 : i32
    %327 = vector.broadcast %c1_i32_125 : i32 to vector<8x1024xi32>
    %328 = arith.cmpi sge, %1, %327 : vector<8x1024xi32>
    %c-1_i32_126 = arith.constant -1 : i32
    %329 = vector.broadcast %c-1_i32_126 : i32 to vector<8x1024xi32>
    %330 = arith.select %328, %326, %329 : vector<8x1024xi1>, vector<8x1024xi32>
    %c0_i32_127 = arith.constant 0 : i32
    %331 = vector.broadcast %c0_i32_127 : i32 to vector<8x1024xi32>
    %332 = arith.cmpi slt, %330, %331 : vector<8x1024xi32>
    %c1_i32_128 = arith.constant 1 : i32
    %333 = vector.broadcast %c1_i32_128 : i32 to vector<8x1024xi32>
    %334 = arith.andi %330, %333 : vector<8x1024xi32>
    %c0_i32_129 = arith.constant 0 : i32
    %335 = vector.broadcast %c0_i32_129 : i32 to vector<8x1024xi32>
    %336 = arith.cmpi eq, %334, %335 : vector<8x1024xi32>
    %337 = arith.ori %332, %336 : vector<8x1024xi1>
    %c2_i32_130 = arith.constant 2 : i32
    %338 = vector.broadcast %c2_i32_130 : i32 to vector<8x1024xi32>
    %339 = arith.muli %338, %1 : vector<8x1024xi32>
    %cst_131 = arith.constant dense<-2147483648> : vector<8xi32>
    %340 = vector.multi_reduction <maxsi>, %260, %cst_131 [1] : vector<8x1024xi32> to vector<8xi32>
    %341 = vector.shape_cast %340 : vector<8xi32> to vector<8x1xi32>
    %342 = vector.broadcast %341 : vector<8x1xi32> to vector<8x1024xi32>
    %343 = arith.cmpi sgt, %339, %342 : vector<8x1024xi32>
    %344 = arith.ori %337, %343 : vector<8x1024xi1>
    %345 = arith.andi %252, %344 : vector<8x1024xi1>
    %cst_132 = arith.constant dense<true> : vector<8x1024xi1>
    %346 = arith.xori %345, %cst_132 : vector<8x1024xi1>
    %347 = arith.andi %251, %346 : vector<8x1024xi1>
    %c32_i32_133 = arith.constant 32 : i32
    %348 = vector.broadcast %c32_i32_133 : i32 to vector<8x1024xi32>
    %349 = arith.select %19, %348, %9 : vector<8x1024xi1>, vector<8x1024xi32>
    %c0_i32_134 = arith.constant 0 : i32
    %350 = vector.broadcast %c0_i32_134 : i32 to vector<8x1024xi32>
    %351 = arith.select %347, %349, %350 : vector<8x1024xi1>, vector<8x1024xi32>
    %c0_135 = arith.constant 0 : index
    %c0_136 = arith.constant 0 : index
    %352 = vector.load %arg2[%c0_135, %c0_136] : memref<8x1024xi32, #tpu.memory_space<vmem>>, vector<8x1024xi32>
    tpu.vector_store %arg2[%c0_135, %c0_136], %351 {strides = array<i32>} : memref<8x1024xi32, #tpu.memory_space<vmem>>, vector<8x1024xi32>,
    return
  }
  func.func @transform_0(%arg0: i32) -> (i32, i32) {
    %c0_i32 = arith.constant 0 : i32
    %c0_i32_0 = arith.constant 0 : i32
    return %arg0, %c0_i32 : i32, i32
  }
  func.func @transform_1(%arg0: i32) -> (i32, i32) {
    %c0_i32 = arith.constant 0 : i32
    %c0_i32_0 = arith.constant 0 : i32
    return %arg0, %c0_i32 : i32, i32
  }
}

</mosaic_0001>

<llo_original>
// kernel: tpu_custom_call.1
$region0: #{tpu_custom_call.1}
  #allocation0 [shape = 'u32[]', space=smem, size = 0x4, offset = 0x4, fixed_abs, tag = 'smem constant byte address 0x4 - core index']
  #allocation1 [shape = 'u32[72,128]{1,0:T(1,128)}', space=vmem, size = 0x9000, scoped, tag = 'internal scratch']
  %s0 = inlined_call_operand.hbm [shape: s32[16,1024], index: 0, kind: input, shape index: {}]
  %s1 = inlined_call_operand.hbm [shape: s32[16,1024], index: 1, kind: output, shape index: {}]
  %s2 = sld [smem:[#allocation0]]
  $region41: #{tpu_custom_call.1} parent=0
    _
  %s4 = ssub.s32 1, %s2
  %s5 = scalar_select 0, %s4, %s2
  $region1: #{tpu_custom_call.1} parent=0
    #allocation2 [shape = 'u8[65536]{0}', space=vmem, size = 0x10000, scoped, tag = 'input window, operand 0']
    #allocation3 [shape = 's32[2]{0}', space=sflag, size = 0x8, scoped, tag = 'scoped memory for tpu_custom_call.1']
    #allocation4 [shape = 's32[2]{0}', space=sflag, size = 0x8, scoped, tag = 'scoped memory for tpu_custom_call.1']
    #allocation5 [shape = 'u8[65536]{0}', space=vmem, size = 0x10000, scoped, tag = 'output window, operand 0']
    %6 = vsyncpa [#allocation3], 0
    %s7 = scalar_lea.sflag [#allocation3], 1
    %8 = vsyncpa %s7, 0
    %9 = vsyncpa [#allocation4], 0
    %s10 = scalar_lea.sflag [#allocation4], 1
    %11 = vsyncpa %s10, 0
    loop: start=0, step=1, limit=4
    $region2: #{tpu_custom_call.1} parent=1 // loop_pre_header
      _
    $region3: #{tpu_custom_call.1} parent=1 // loop_header
      %s13 = sphi 0, %s17
      %p14 = scmp.ge.s32.totalorder %s13, 4
      %s23 = sphi 0, %s25
      %s26 = sphi 0, %s23
      %s27 = sphi 0, %s26
      %s43 = sphi 0, %s27
      %s49 = sphi 0, %s51
      %s52 = sphi 0, %s49
      %s53 = sphi 0, %s52
      %s69 = sphi 0, %s53
    $region4: #{tpu_custom_call.1} parent=1 // loop_header_branch
      %16 = sbr.rel (%p14) target = $region8
    $region5: #{tpu_custom_call.1} parent=1 // loop_body
      %s18 = ssub.s32 %s13, 1
      %s19 = ssub.s32 %s13, 2
      %s20 = sadd.s32 %s13, 1
      %s21 = ssub.s32 %s13, %s20
      %p22 = scmp.eq.s32.totalorder %s21, 0
      %s24 = sadd.s32 %s23, 1
      %s25 = scalar_select %p22, %s23, %s24
      %p28 = pneg %p22
      %p29 = scmp.eq.s32.totalorder %s13, 1
      %p30 = por %p28, %p29
      %p31 = scmp.ne.s32.totalorder %s23, %s26
      %p32 = scmp.eq.s32.totalorder %s13, 0
      %p33 = por %p31, %p32
      %p34 = scmp.ne.s32.totalorder %s23, %s26
      %p35 = scmp.eq.s32.totalorder %s18, 1
      %p36 = por %p34, %p35
      %p37 = scmp.ne.s32.totalorder %s26, %s27
      %p38 = scmp.eq.s32.totalorder %s18, 0
      %p39 = por %p37, %p38
      %p40 = scmp.ne.s32.totalorder %s26, %s27
      %p41 = scmp.eq.s32.totalorder %s19, 1
      %p42 = por %p40, %p41
      %p44 = scmp.ne.s32.totalorder %s27, %s43
      %p45 = scmp.eq.s32.totalorder %s19, 0
      %p46 = por %p44, %p45
      %s47 = ssub.s32 %s13, %s20
      %p48 = scmp.eq.s32.totalorder %s47, 0
      %s50 = sadd.s32 %s49, 1
      %s51 = scalar_select %p48, %s49, %s50
      %p54 = pneg %p48
      %p55 = scmp.eq.s32.totalorder %s13, 1
      %p56 = por %p54, %p55
      %p57 = scmp.ne.s32.totalorder %s49, %s52
      %p58 = scmp.eq.s32.totalorder %s13, 0
      %p59 = por %p57, %p58
      %p60 = scmp.ne.s32.totalorder %s49, %s52
      %p61 = scmp.eq.s32.totalorder %s18, 1
      %p62 = por %p60, %p61
      %p63 = scmp.ne.s32.totalorder %s52, %s53
      %p64 = scmp.eq.s32.totalorder %s18, 0
      %p65 = por %p63, %p64
      %p66 = scmp.ne.s32.totalorder %s52, %s53
      %p67 = scmp.eq.s32.totalorder %s19, 1
      %p68 = por %p66, %p67
      %p70 = scmp.ne.s32.totalorder %s53, %s69
      %p71 = scmp.eq.s32.totalorder %s19, 0
      %p72 = por %p70, %p71
      %p73 = scmp.le.s32.totalorder 1, %s13
      %p74 = scmp.lt.s32.totalorder %s13, 3
      %p75 = pnand %p73, %p74
      %p76 = pneg %p75
      // Predicated region
      $region9: #{tpu_custom_call.1} parent=5 // pred_check
        _
      $region10: #{tpu_custom_call.1} parent=5 // pred_check_branch
        %78 = sbr.rel (%p75) target = $region12
      $region11: #{tpu_custom_call.1} parent=5 // pred_region
        %s79 = ssub.s32 %s13, 1
      $region12: #{tpu_custom_call.1} parent=5 // pred_fallthru
        _
      %p80 = scmp.lt.s32.totalorder %s13, 2
      // Predicated region
      $region13: #{tpu_custom_call.1} parent=5 // pred_check
        %p81 = pneg %p80
      $region14: #{tpu_custom_call.1} parent=5 // pred_check_branch
        %83 = sbr.rel (%p81) target = $region16
      $region15: #{tpu_custom_call.1} parent=5 // pred_region
        // Predicated region
        $region17: #{tpu_custom_call.1} parent=15 // pred_check
          %p84 = pneg %p33
        $region18: #{tpu_custom_call.1} parent=15 // pred_check_branch
          %86 = sbr.rel (%p84) target = $region20
        $region19: #{tpu_custom_call.1} parent=15 // pred_region
          %s87 = sand.u32 %s23, 1
          %s88 = scalar_lea.sflag [#allocation3], %s87
          %s89 = sand.u32 %s23, 1
          %s90 = smul.addr %s89, 64
          %s91 = scalar_lea.vmem [#allocation2], %s90
          %93 = vsyncadd %s88, 0
          %s94 = smul.addr %s13, 8
          %s95 = smul.addr %s94, 8
          %s96 = scalar_lea.hbm %s0, %s95
          %s98 = sshll.u32 %s96, 4
          %s99 = int_to_ptr.hbm [resolvable:$true] %s98
          %s100 = sshll.u32 %s91, 4
          %s101 = int_to_ptr.vmem [resolvable:$true] %s100
          %103 = dma.hbm_to_vmem [thread:$0]  %s99, 1024, %s101, %s88
        $region20: #{tpu_custom_call.1} parent=15 // pred_fallthru
          _
      $region16: #{tpu_custom_call.1} parent=5 // pred_fallthru
        _
      %p104 = scmp.le.s32.totalorder 1, %s13
      %p105 = scmp.lt.s32.totalorder %s13, 3
      %p106 = pnand %p104, %p105
      %p107 = pneg %p106
      // Predicated region
      $region21: #{tpu_custom_call.1} parent=5 // pred_check
        _
      $region22: #{tpu_custom_call.1} parent=5 // pred_check_branch
        %109 = sbr.rel (%p106) target = $region24
      $region23: #{tpu_custom_call.1} parent=5 // pred_region
        %s110 = ssub.s32 %s13, 1
        %s111 = sand.u32 %s26, 1
        %s112 = scalar_lea.sflag [#allocation3], %s111
        %s113 = sand.u32 %s26, 1
        %s114 = smul.addr %s113, 64
        %s115 = scalar_lea.vmem [#allocation2], %s114
        // Predicated region
        $region25: #{tpu_custom_call.1} parent=23 // pred_check
          %p116 = pneg %p39
        $region26: #{tpu_custom_call.1} parent=23 // pred_check_branch
          %118 = sbr.rel (%p116) target = $region28
        $region27: #{tpu_custom_call.1} parent=23 // pred_region
          %120 = dma.done %s112, 1024
        $region28: #{tpu_custom_call.1} parent=23 // pred_fallthru
          _
        %s121 = sand.u32 %s26, 1
        %s122 = scalar_lea.sflag [#allocation3], %s121
        %s123 = sand.u32 %s26, 1
        %s124 = smul.addr %s123, 64
        %s125 = scalar_lea.vmem [#allocation2], %s124
        %p126 = pneg %p39
        %p127 = pneg %p36
        %p128 = pneg %p65
        %p129 = pneg %p62
        %s130 = sand.u32 %s52, 1
        %s131 = scalar_lea.sflag [#allocation4], %s130
        %s132 = sand.u32 %s52, 1
        %s133 = smul.addr %s132, 64
        %s134 = scalar_lea.vmem [#allocation5], %s133
        %v135 = vld [vmem:[%s115] sm:$0xff]
        %v136 = vld [vmem:[%s115 + $0x8] sm:$0xff]
        %v137 = vld [vmem:[%s115 + $0x10] sm:$0xff]
        %v138 = vld [vmem:[%s115 + $0x18] sm:$0xff]
        %v139 = vld [vmem:[%s115 + $0x20] sm:$0xff]
        %v140 = vld [vmem:[%s115 + $0x28] sm:$0xff]
        %v141 = vld [vmem:[%s115 + $0x30] sm:$0xff]
        %v142 = vld [vmem:[%s115 + $0x38] sm:$0xff]
        %v143 = vlaneseq
        %v144 = vand.u32 %v143, 127
        %v145 = vadd.s32 %v144, 128
        %v146 = vadd.s32 %v144, 256
        %v147 = vadd.s32 %v144, 384
        %v148 = vadd.s32 %v144, 512
        %v149 = vadd.s32 %v144, 640
        %v150 = vadd.s32 %v144, 768
        %v151 = vadd.s32 %v144, 896
        %vm152 = vcmp.ge.s32.totalorder %v135, 65
        %vm153 = vcmp.ge.s32.totalorder %v136, 65
        %vm154 = vcmp.ge.s32.totalorder %v137, 65
        %vm155 = vcmp.ge.s32.totalorder %v138, 65
        %vm156 = vcmp.ge.s32.totalorder %v139, 65
        %vm157 = vcmp.ge.s32.totalorder %v140, 65
        %vm158 = vcmp.ge.s32.totalorder %v141, 65
        %vm159 = vcmp.ge.s32.totalorder %v142, 65
        %vm160 = vcmp.le.s32.totalorder %v135, 90
        %vm161 = vcmp.le.s32.totalorder %v136, 90
        %vm162 = vcmp.le.s32.totalorder %v137, 90
        %vm163 = vcmp.le.s32.totalorder %v138, 90
        %vm164 = vcmp.le.s32.totalorder %v139, 90
        %vm165 = vcmp.le.s32.totalorder %v140, 90
        %vm166 = vcmp.le.s32.totalorder %v141, 90
        %vm167 = vcmp.le.s32.totalorder %v142, 90
        %vm168 = vmand %vm152, %vm160
        %vm169 = vmand %vm153, %vm161
        %vm170 = vmand %vm154, %vm162
        %vm171 = vmand %vm155, %vm163
        %vm172 = vmand %vm156, %vm164
        %vm173 = vmand %vm157, %vm165
        %vm174 = vmand %vm158, %vm166
        %vm175 = vmand %vm159, %vm167
        %v176 = vadd.s32 %v135, 32
        %v177 = vadd.s32 %v136, 32
        %v178 = vadd.s32 %v137, 32
        %v179 = vadd.s32 %v138, 32
        %v180 = vadd.s32 %v139, 32
        %v181 = vadd.s32 %v140, 32
        %v182 = vadd.s32 %v141, 32
        %v183 = vadd.s32 %v142, 32
        %v184 = vsel %vm168, %v176, %v135
        %v185 = vsel %vm169, %v177, %v136
        %v186 = vsel %vm170, %v178, %v137
        %v187 = vsel %vm171, %v179, %v138
        %v188 = vsel %vm172, %v180, %v139
        %v189 = vsel %vm173, %v181, %v140
        %v190 = vsel %vm174, %v182, %v141
        %v191 = vsel %vm175, %v183, %v142
        %vm192 = vcmp.eq.s32.totalorder %v184, 0
        %vm193 = vcmp.eq.s32.totalorder %v185, 0
        %vm194 = vcmp.eq.s32.totalorder %v186, 0
        %vm195 = vcmp.eq.s32.totalorder %v187, 0
        %vm196 = vcmp.eq.s32.totalorder %v188, 0
        %vm197 = vcmp.eq.s32.totalorder %v189, 0
        %vm198 = vcmp.eq.s32.totalorder %v190, 0
        %vm199 = vcmp.eq.s32.totalorder %v191, 0
        %vm200 = vcmp.eq.s32.totalorder %v184, 32
        %vm201 = vcmp.eq.s32.totalorder %v185, 32
        %vm202 = vcmp.eq.s32.totalorder %v186, 32
        %vm203 = vcmp.eq.s32.totalorder %v187, 32
        %vm204 = vcmp.eq.s32.totalorder %v188, 32
        %vm205 = vcmp.eq.s32.totalorder %v189, 32
        %vm206 = vcmp.eq.s32.totalorder %v190, 32
        %vm207 = vcmp.eq.s32.totalorder %v191, 32
        %vm208 = vcmp.ge.s32.totalorder %v184, 9
        %vm209 = vcmp.ge.s32.totalorder %v185, 9
        %vm210 = vcmp.ge.s32.totalorder %v186, 9
        %vm211 = vcmp.ge.s32.totalorder %v187, 9
        %vm212 = vcmp.ge.s32.totalorder %v188, 9
        %vm213 = vcmp.ge.s32.totalorder %v189, 9
        %vm214 = vcmp.ge.s32.totalorder %v190, 9
        %vm215 = vcmp.ge.s32.totalorder %v191, 9
        %vm216 = vcmp.le.s32.totalorder %v184, 13
        %vm217 = vcmp.le.s32.totalorder %v185, 13
        %vm218 = vcmp.le.s32.totalorder %v186, 13
        %vm219 = vcmp.le.s32.totalorder %v187, 13
        %vm220 = vcmp.le.s32.totalorder %v188, 13
        %vm221 = vcmp.le.s32.totalorder %v189, 13
        %vm222 = vcmp.le.s32.totalorder %v190, 13
        %vm223 = vcmp.le.s32.totalorder %v191, 13
        %vm224 = vmand %vm208, %vm216
        %vm225 = vmand %vm209, %vm217
        %vm226 = vmand %vm210, %vm218
        %vm227 = vmand %vm211, %vm219
        %vm228 = vmand %vm212, %vm220
        %vm229 = vmand %vm213, %vm221
        %vm230 = vmand %vm214, %vm222
        %vm231 = vmand %vm215, %vm223
        %vm232 = vmor %vm200, %vm224
        %vm233 = vmor %vm201, %vm225
        %vm234 = vmor %vm202, %vm226
        %vm235 = vmor %vm203, %vm227
        %vm236 = vmor %vm204, %vm228
        %vm237 = vmor %vm205, %vm229
        %vm238 = vmor %vm206, %vm230
        %vm239 = vmor %vm207, %vm231
        %vm240 = vcmp.eq.s32.totalorder %v184, 60
        %vm241 = vcmp.eq.s32.totalorder %v185, 60
        %vm242 = vcmp.eq.s32.totalorder %v186, 60
        %vm243 = vcmp.eq.s32.totalorder %v187, 60
        %vm244 = vcmp.eq.s32.totalorder %v188, 60
        %vm245 = vcmp.eq.s32.totalorder %v189, 60
        %vm246 = vcmp.eq.s32.totalorder %v190, 60
        %vm247 = vcmp.eq.s32.totalorder %v191, 60
        %v248 = vmul.u32 %v144, 2
        %v249 = vmul.u32 %v145, 2
        %v250 = vmul.u32 %v146, 2
        %v251 = vmul.u32 %v147, 2
        %v252 = vmul.u32 %v148, 2
        %v253 = vmul.u32 %v149, 2
        %v254 = vmul.u32 %v150, 2
        %v255 = vmul.u32 %v151, 2
        %v256 = vadd.s32 %v248, 1
        %v257 = vadd.s32 %v249, 1
        %v258 = vadd.s32 %v250, 1
        %v259 = vadd.s32 %v251, 1
        %v260 = vadd.s32 %v252, 1
        %v261 = vadd.s32 %v253, 1
        %v262 = vadd.s32 %v254, 1
        %v263 = vadd.s32 %v255, 1
        %v264 = vsel %vm240, %v256, 4294967295
        %v265 = vsel %vm241, %v257, 4294967295
        %v266 = vsel %vm242, %v258, 4294967295
        %v267 = vsel %vm243, %v259, 4294967295
        %v268 = vsel %vm244, %v260, 4294967295
        %v269 = vsel %vm245, %v261, 4294967295
        %v270 = vsel %vm246, %v262, 4294967295
        %v271 = vsel %vm247, %v263, 4294967295
        %vm272 = vcmp.eq.s32.totalorder %v184, 62
        %vm273 = vcmp.eq.s32.totalorder %v185, 62
        %vm274 = vcmp.eq.s32.totalorder %v186, 62
        %vm275 = vcmp.eq.s32.totalorder %v187, 62
        %vm276 = vcmp.eq.s32.totalorder %v188, 62
        %vm277 = vcmp.eq.s32.totalorder %v189, 62
        %vm278 = vcmp.eq.s32.totalorder %v190, 62
        %vm279 = vcmp.eq.s32.totalorder %v191, 62
        %v280 = vsel %vm272, %v248, 4294967295
        %v281 = vsel %vm273, %v249, 4294967295
        %v282 = vsel %vm274, %v250, 4294967295
        %v283 = vsel %vm275, %v251, 4294967295
        %v284 = vsel %vm276, %v252, 4294967295
        %v285 = vsel %vm277, %v253, 4294967295
        %v286 = vsel %vm278, %v254, 4294967295
        %v287 = vsel %vm279, %v255, 4294967295
        %288 = vrot.lane.b32.xlu0 %v280, 1
        %v289 = vpop.permute.xlu0 %288
        %290 = vrot.lane.b32.xlu0 %v281, 1
        %v291 = vpop.permute.xlu0 %290
        %292 = vrot.lane.b32.xlu0 %v282, 1
        %v293 = vpop.permute.xlu0 %292
        %294 = vrot.lane.b32.xlu0 %v283, 1
        %v295 = vpop.permute.xlu0 %294
        %296 = vrot.lane.b32.xlu0 %v284, 1
        %v297 = vpop.permute.xlu0 %296
        %298 = vrot.lane.b32.xlu0 %v285, 1
        %v299 = vpop.permute.xlu0 %298
        %300 = vrot.lane.b32.xlu0 %v286, 1
        %v301 = vpop.permute.xlu0 %300
        %302 = vrot.lane.b32.xlu0 %v287, 1
        %v303 = vpop.permute.xlu0 %302
        %vm304 = vcmp.lt.s32.totalorder %v144, 1
        %v305 = vsel %vm304, %v301, %v303
        %v306 = vsel %vm304, %v299, %v301
        %v307 = vsel %vm304, %v297, %v299
        %v308 = vsel %vm304, %v295, %v297
        %v309 = vsel %vm304, %v293, %v295
        %v310 = vsel %vm304, %v291, %v293
        %v311 = vsel %vm304, %v289, %v291
        %v312 = vsel %vm304, %v303, %v289
        %vm313 = vcmp.ge.s32.totalorder %v144, 1
        %vm314 = vcmp.ge.s32.totalorder %v145, 1
        %vm315 = vcmp.ge.s32.totalorder %v146, 1
        %vm316 = vcmp.ge.s32.totalorder %v147, 1
        %vm317 = vcmp.ge.s32.totalorder %v148, 1
        %vm318 = vcmp.ge.s32.totalorder %v149, 1
        %vm319 = vcmp.ge.s32.totalorder %v150, 1
        %vm320 = vcmp.ge.s32.totalorder %v151, 1
        %v321 = vsel %vm313, %v312, 4294967295
        %v322 = vsel %vm314, %v311, 4294967295
        %v323 = vsel %vm315, %v310, 4294967295
        %v324 = vsel %vm316, %v309, 4294967295
        %v325 = vsel %vm317, %v308, 4294967295
        %v326 = vsel %vm318, %v307, 4294967295
        %v327 = vsel %vm319, %v306, 4294967295
        %v328 = vsel %vm320, %v305, 4294967295
        %vm329 = vcmp.gt.s32.totalorder %v264, %v321
        %v330 = vsel %vm329, %v264, %v321
        %vm331 = vcmp.gt.s32.totalorder %v265, %v322
        %v332 = vsel %vm331, %v265, %v322
        %vm333 = vcmp.gt.s32.totalorder %v266, %v323
        %v334 = vsel %vm333, %v266, %v323
        %vm335 = vcmp.gt.s32.totalorder %v267, %v324
        %v336 = vsel %vm335, %v267, %v324
        %vm337 = vcmp.gt.s32.totalorder %v268, %v325
        %v338 = vsel %vm337, %v268, %v325
        %vm339 = vcmp.gt.s32.totalorder %v269, %v326
        %v340 = vsel %vm339, %v269, %v326
        %vm341 = vcmp.gt.s32.totalorder %v270, %v327
        %v342 = vsel %vm341, %v270, %v327
        %vm343 = vcmp.gt.s32.totalorder %v271, %v328
        %v344 = vsel %vm343, %v271, %v328
        %345 = vrot.lane.b32.xlu0 %v330, 1
        %v346 = vpop.permute.xlu0 %345
        %347 = vrot.lane.b32.xlu0 %v332, 1
        %v348 = vpop.permute.xlu0 %347
        %349 = vrot.lane.b32.xlu0 %v334, 1
        %v350 = vpop.permute.xlu0 %349
        %351 = vrot.lane.b32.xlu0 %v336, 1
        %v352 = vpop.permute.xlu0 %351
        %353 = vrot.lane.b32.xlu0 %v338, 1
        %v354 = vpop.permute.xlu0 %353
        %355 = vrot.lane.b32.xlu0 %v340, 1
        %v356 = vpop.permute.xlu0 %355
        %357 = vrot.lane.b32.xlu0 %v342, 1
        %v358 = vpop.permute.xlu0 %357
        %359 = vrot.lane.b32.xlu0 %v344, 1
        %v360 = vpop.permute.xlu0 %359
        %v361 = vsel %vm304, %v358, %v360
        %v362 = vsel %vm304, %v356, %v358
        %v363 = vsel %vm304, %v354, %v356
        %v364 = vsel %vm304, %v352, %v354
        %v365 = vsel %vm304, %v350, %v352
        %v366 = vsel %vm304, %v348, %v350
        %v367 = vsel %vm304, %v346, %v348
        %v368 = vsel %vm304, %v360, %v346
        %v369 = vsel %vm313, %v368, 4294967295
        %v370 = vsel %vm314, %v367, 4294967295
        %v371 = vsel %vm315, %v366, 4294967295
        %v372 = vsel %vm316, %v365, 4294967295
        %v373 = vsel %vm317, %v364, 4294967295
        %v374 = vsel %vm318, %v363, 4294967295
        %v375 = vsel %vm319, %v362, 4294967295
        %v376 = vsel %vm320, %v361, 4294967295
        %vm377 = vcmp.gt.s32.totalorder %v330, %v369
        %v378 = vsel %vm377, %v330, %v369
        %vm379 = vcmp.gt.s32.totalorder %v332, %v370
        %v380 = vsel %vm379, %v332, %v370
        %vm381 = vcmp.gt.s32.totalorder %v334, %v371
        %v382 = vsel %vm381, %v334, %v371
        %vm383 = vcmp.gt.s32.totalorder %v336, %v372
        %v384 = vsel %vm383, %v336, %v372
        %vm385 = vcmp.gt.s32.totalorder %v338, %v373
        %v386 = vsel %vm385, %v338, %v373
        %vm387 = vcmp.gt.s32.totalorder %v340, %v374
        %v388 = vsel %vm387, %v340, %v374
        %vm389 = vcmp.gt.s32.totalorder %v342, %v375
        %v390 = vsel %vm389, %v342, %v375
        %vm391 = vcmp.gt.s32.totalorder %v344, %v376
        %v392 = vsel %vm391, %v344, %v376
        %393 = vrot.lane.b32.xlu0 %v378, 2
        %v394 = vpop.permute.xlu0 %393
        %395 = vrot.lane.b32.xlu0 %v380, 2
        %v396 = vpop.permute.xlu0 %395
        %397 = vrot.lane.b32.xlu0 %v382, 2
        %v398 = vpop.permute.xlu0 %397
        %399 = vrot.lane.b32.xlu0 %v384, 2
        %v400 = vpop.permute.xlu0 %399
        %401 = vrot.lane.b32.xlu0 %v386, 2
        %v402 = vpop.permute.xlu0 %401
        %403 = vrot.lane.b32.xlu0 %v388, 2
        %v404 = vpop.permute.xlu0 %403
        %405 = vrot.lane.b32.xlu0 %v390, 2
        %v406 = vpop.permute.xlu0 %405
        %407 = vrot.lane.b32.xlu0 %v392, 2
        %v408 = vpop.permute.xlu0 %407
        %vm409 = vcmp.lt.s32.totalorder %v144, 2
        %v410 = vsel %vm409, %v406, %v408
        %v411 = vsel %vm409, %v404, %v406
        %v412 = vsel %vm409, %v402, %v404
        %v413 = vsel %vm409, %v400, %v402
        %v414 = vsel %vm409, %v398, %v400
        %v415 = vsel %vm409, %v396, %v398
        %v416 = vsel %vm409, %v394, %v396
        %v417 = vsel %vm409, %v408, %v394
        %vm418 = vcmp.ge.s32.totalorder %v144, 2
        %vm419 = vcmp.ge.s32.totalorder %v145, 2
        %vm420 = vcmp.ge.s32.totalorder %v146, 2
        %vm421 = vcmp.ge.s32.totalorder %v147, 2
        %vm422 = vcmp.ge.s32.totalorder %v148, 2
        %vm423 = vcmp.ge.s32.totalorder %v149, 2
        %vm424 = vcmp.ge.s32.totalorder %v150, 2
        %vm425 = vcmp.ge.s32.totalorder %v151, 2
        %v426 = vsel %vm418, %v417, 4294967295
        %v427 = vsel %vm419, %v416, 4294967295
        %v428 = vsel %vm420, %v415, 4294967295
        %v429 = vsel %vm421, %v414, 4294967295
        %v430 = vsel %vm422, %v413, 4294967295
        %v431 = vsel %vm423, %v412, 4294967295
        %v432 = vsel %vm424, %v411, 4294967295
        %v433 = vsel %vm425, %v410, 4294967295
        %vm434 = vcmp.gt.s32.totalorder %v378, %v426
        %v435 = vsel %vm434, %v378, %v426
        %vm436 = vcmp.gt.s32.totalorder %v380, %v427
        %v437 = vsel %vm436, %v380, %v427
        %vm438 = vcmp.gt.s32.totalorder %v382, %v428
        %v439 = vsel %vm438, %v382, %v428
        %vm440 = vcmp.gt.s32.totalorder %v384, %v429
        %v441 = vsel %vm440, %v384, %v429
        %vm442 = vcmp.gt.s32.totalorder %v386, %v430
        %v443 = vsel %vm442, %v386, %v430
        %vm444 = vcmp.gt.s32.totalorder %v388, %v431
        %v445 = vsel %vm444, %v388, %v431
        %vm446 = vcmp.gt.s32.totalorder %v390, %v432
        %v447 = vsel %vm446, %v390, %v432
        %vm448 = vcmp.gt.s32.totalorder %v392, %v433
        %v449 = vsel %vm448, %v392, %v433
        %450 = vrot.lane.b32.xlu0 %v435, 4
        %v451 = vpop.permute.xlu0 %450
        %452 = vrot.lane.b32.xlu0 %v437, 4
        %v453 = vpop.permute.xlu0 %452
        %454 = vrot.lane.b32.xlu0 %v439, 4
        %v455 = vpop.permute.xlu0 %454
        %456 = vrot.lane.b32.xlu0 %v441, 4
        %v457 = vpop.permute.xlu0 %456
        %458 = vrot.lane.b32.xlu0 %v443, 4
        %v459 = vpop.permute.xlu0 %458
        %460 = vrot.lane.b32.xlu0 %v445, 4
        %v461 = vpop.permute.xlu0 %460
        %462 = vrot.lane.b32.xlu0 %v447, 4
        %v463 = vpop.permute.xlu0 %462
        %464 = vrot.lane.b32.xlu0 %v449, 4
        %v465 = vpop.permute.xlu0 %464
        %vm466 = vcmp.lt.s32.totalorder %v144, 4
        %v467 = vsel %vm466, %v463, %v465
        %v468 = vsel %vm466, %v461, %v463
        %v469 = vsel %vm466, %v459, %v461
        %v470 = vsel %vm466, %v457, %v459
        %v471 = vsel %vm466, %v455, %v457
        %v472 = vsel %vm466, %v453, %v455
        %v473 = vsel %vm466, %v451, %v453
        %v474 = vsel %vm466, %v465, %v451
        %vm475 = vcmp.ge.s32.totalorder %v144, 4
        %vm476 = vcmp.ge.s32.totalorder %v145, 4
        %vm477 = vcmp.ge.s32.totalorder %v146, 4
        %vm478 = vcmp.ge.s32.totalorder %v147, 4
        %vm479 = vcmp.ge.s32.totalorder %v148, 4
        %vm480 = vcmp.ge.s32.totalorder %v149, 4
        %vm481 = vcmp.ge.s32.totalorder %v150, 4
        %vm482 = vcmp.ge.s32.totalorder %v151, 4
        %v483 = vsel %vm475, %v474, 4294967295
        %v484 = vsel %vm476, %v473, 4294967295
        %v485 = vsel %vm477, %v472, 4294967295
        %v486 = vsel %vm478, %v471, 4294967295
        %v487 = vsel %vm479, %v470, 4294967295
        %v488 = vsel %vm480, %v469, 4294967295
        %v489 = vsel %vm481, %v468, 4294967295
        %v490 = vsel %vm482, %v467, 4294967295
        %vm491 = vcmp.gt.s32.totalorder %v435, %v483
        %v492 = vsel %vm491, %v435, %v483
        %vm493 = vcmp.gt.s32.totalorder %v437, %v484
        %v494 = vsel %vm493, %v437, %v484
        %vm495 = vcmp.gt.s32.totalorder %v439, %v485
        %v496 = vsel %vm495, %v439, %v485
        %vm497 = vcmp.gt.s32.totalorder %v441, %v486
        %v498 = vsel %vm497, %v441, %v486
        %vm499 = vcmp.gt.s32.totalorder %v443, %v487
        %v500 = vsel %vm499, %v443, %v487
        %vm501 = vcmp.gt.s32.totalorder %v445, %v488
        %v502 = vsel %vm501, %v445, %v488
        %vm503 = vcmp.gt.s32.totalorder %v447, %v489
        %v504 = vsel %vm503, %v447, %v489
        %vm505 = vcmp.gt.s32.totalorder %v449, %v490
        %v506 = vsel %vm505, %v449, %v490
        %507 = vrot.lane.b32.xlu0 %v492, 8
        %v508 = vpop.permute.xlu0 %507
        %509 = vrot.lane.b32.xlu0 %v494, 8
        %v510 = vpop.permute.xlu0 %509
        %511 = vrot.lane.b32.xlu0 %v496, 8
        %v512 = vpop.permute.xlu0 %511
        %513 = vrot.lane.b32.xlu0 %v498, 8
        %v514 = vpop.permute.xlu0 %513
        %515 = vrot.lane.b32.xlu0 %v500, 8
        %v516 = vpop.permute.xlu0 %515
        %517 = vrot.lane.b32.xlu0 %v502, 8
        %v518 = vpop.permute.xlu0 %517
        %519 = vrot.lane.b32.xlu0 %v504, 8
        %v520 = vpop.permute.xlu0 %519
        %521 = vrot.lane.b32.xlu0 %v506, 8
        %v522 = vpop.permute.xlu0 %521
        %vm523 = vcmp.lt.s32.totalorder %v144, 8
        %v524 = vsel %vm523, %v520, %v522
        %v525 = vsel %vm523, %v518, %v520
        %v526 = vsel %vm523, %v516, %v518
        %v527 = vsel %vm523, %v514, %v516
        %v528 = vsel %vm523, %v512, %v514
        %v529 = vsel %vm523, %v510, %v512
        %v530 = vsel %vm523, %v508, %v510
        %v531 = vsel %vm523, %v522, %v508
        %vm532 = vcmp.ge.s32.totalorder %v144, 8
        %vm533 = vcmp.ge.s32.totalorder %v145, 8
        %vm534 = vcmp.ge.s32.totalorder %v146, 8
        %vm535 = vcmp.ge.s32.totalorder %v147, 8
        %vm536 = vcmp.ge.s32.totalorder %v148, 8
        %vm537 = vcmp.ge.s32.totalorder %v149, 8
        %vm538 = vcmp.ge.s32.totalorder %v150, 8
        %vm539 = vcmp.ge.s32.totalorder %v151, 8
        %v540 = vsel %vm532, %v531, 4294967295
        %v541 = vsel %vm533, %v530, 4294967295
        %v542 = vsel %vm534, %v529, 4294967295
        %v543 = vsel %vm535, %v528, 4294967295
        %v544 = vsel %vm536, %v527, 4294967295
        %v545 = vsel %vm537, %v526, 4294967295
        %v546 = vsel %vm538, %v525, 4294967295
        %v547 = vsel %vm539, %v524, 4294967295
        %vm548 = vcmp.gt.s32.totalorder %v492, %v540
        %v549 = vsel %vm548, %v492, %v540
        %vm550 = vcmp.gt.s32.totalorder %v494, %v541
        %v551 = vsel %vm550, %v494, %v541
        %vm552 = vcmp.gt.s32.totalorder %v496, %v542
        %v553 = vsel %vm552, %v496, %v542
        %vm554 = vcmp.gt.s32.totalorder %v498, %v543
        %v555 = vsel %vm554, %v498, %v543
        %vm556 = vcmp.gt.s32.totalorder %v500, %v544
        %v557 = vsel %vm556, %v500, %v544
        %vm558 = vcmp.gt.s32.totalorder %v502, %v545
        %v559 = vsel %vm558, %v502, %v545
        %vm560 = vcmp.gt.s32.totalorder %v504, %v546
        %v561 = vsel %vm560, %v504, %v546
        %vm562 = vcmp.gt.s32.totalorder %v506, %v547
        %v563 = vsel %vm562, %v506, %v547
        %564 = vrot.lane.b32.xlu0 %v549, 16
        %v565 = vpop.permute.xlu0 %564
        %566 = vrot.lane.b32.xlu0 %v551, 16
        %v567 = vpop.permute.xlu0 %566
        %568 = vrot.lane.b32.xlu0 %v553, 16
        %v569 = vpop.permute.xlu0 %568
        %570 = vrot.lane.b32.xlu0 %v555, 16
        %v571 = vpop.permute.xlu0 %570
        %572 = vrot.lane.b32.xlu0 %v557, 16
        %v573 = vpop.permute.xlu0 %572
        %574 = vrot.lane.b32.xlu0 %v559, 16
        %v575 = vpop.permute.xlu0 %574
        %576 = vrot.lane.b32.xlu0 %v561, 16
        %v577 = vpop.permute.xlu0 %576
        %578 = vrot.lane.b32.xlu0 %v563, 16
        %v579 = vpop.permute.xlu0 %578
        %vm580 = vcmp.lt.s32.totalorder %v144, 16
        %v581 = vsel %vm580, %v577, %v579
        %v582 = vsel %vm580, %v575, %v577
        %v583 = vsel %vm580, %v573, %v575
        %v584 = vsel %vm580, %v571, %v573
        %v585 = vsel %vm580, %v569, %v571
        %v586 = vsel %vm580, %v567, %v569
        %v587 = vsel %vm580, %v565, %v567
        %v588 = vsel %vm580, %v579, %v565
        %vm589 = vcmp.ge.s32.totalorder %v144, 16
        %vm590 = vcmp.ge.s32.totalorder %v145, 16
        %vm591 = vcmp.ge.s32.totalorder %v146, 16
        %vm592 = vcmp.ge.s32.totalorder %v147, 16
        %vm593 = vcmp.ge.s32.totalorder %v148, 16
        %vm594 = vcmp.ge.s32.totalorder %v149, 16
        %vm595 = vcmp.ge.s32.totalorder %v150, 16
        %vm596 = vcmp.ge.s32.totalorder %v151, 16
        %v597 = vsel %vm589, %v588, 4294967295
        %v598 = vsel %vm590, %v587, 4294967295
        %v599 = vsel %vm591, %v586, 4294967295
        %v600 = vsel %vm592, %v585, 4294967295
        %v601 = vsel %vm593, %v584, 4294967295
        %v602 = vsel %vm594, %v583, 4294967295
        %v603 = vsel %vm595, %v582, 4294967295
        %v604 = vsel %vm596, %v581, 4294967295
        %vm605 = vcmp.gt.s32.totalorder %v549, %v597
        %v606 = vsel %vm605, %v549, %v597
        %vm607 = vcmp.gt.s32.totalorder %v551, %v598
        %v608 = vsel %vm607, %v551, %v598
        %vm609 = vcmp.gt.s32.totalorder %v553, %v599
        %v610 = vsel %vm609, %v553, %v599
        %vm611 = vcmp.gt.s32.totalorder %v555, %v600
        %v612 = vsel %vm611, %v555, %v600
        %vm613 = vcmp.gt.s32.totalorder %v557, %v601
        %v614 = vsel %vm613, %v557, %v601
        %vm615 = vcmp.gt.s32.totalorder %v559, %v602
        %v616 = vsel %vm615, %v559, %v602
        %vm617 = vcmp.gt.s32.totalorder %v561, %v603
        %v618 = vsel %vm617, %v561, %v603
        %vm619 = vcmp.gt.s32.totalorder %v563, %v604
        %v620 = vsel %vm619, %v563, %v604
        %621 = vrot.lane.b32.xlu0 %v606, 32
        %v622 = vpop.permute.xlu0 %621
        %623 = vrot.lane.b32.xlu0 %v608, 32
        %v624 = vpop.permute.xlu0 %623
        %625 = vrot.lane.b32.xlu0 %v610, 32
        %v626 = vpop.permute.xlu0 %625
        %627 = vrot.lane.b32.xlu0 %v612, 32
        %v628 = vpop.permute.xlu0 %627
        %629 = vrot.lane.b32.xlu0 %v614, 32
        %v630 = vpop.permute.xlu0 %629
        %631 = vrot.lane.b32.xlu0 %v616, 32
        %v632 = vpop.permute.xlu0 %631
        %633 = vrot.lane.b32.xlu0 %v618, 32
        %v634 = vpop.permute.xlu0 %633
        %635 = vrot.lane.b32.xlu0 %v620, 32
        %v636 = vpop.permute.xlu0 %635
        %vm637 = vcmp.lt.s32.totalorder %v144, 32
        %v638 = vsel %vm637, %v634, %v636
        %v639 = vsel %vm637, %v632, %v634
        %v640 = vsel %vm637, %v630, %v632
        %v641 = vsel %vm637, %v628, %v630
        %v642 = vsel %vm637, %v626, %v628
        %v643 = vsel %vm637, %v624, %v626
        %v644 = vsel %vm637, %v622, %v624
        %v645 = vsel %vm637, %v636, %v622
        %vm646 = vcmp.ge.s32.totalorder %v144, 32
        %vm647 = vcmp.ge.s32.totalorder %v145, 32
        %vm648 = vcmp.ge.s32.totalorder %v146, 32
        %vm649 = vcmp.ge.s32.totalorder %v147, 32
        %vm650 = vcmp.ge.s32.totalorder %v148, 32
        %vm651 = vcmp.ge.s32.totalorder %v149, 32
        %vm652 = vcmp.ge.s32.totalorder %v150, 32
        %vm653 = vcmp.ge.s32.totalorder %v151, 32
        %v654 = vsel %vm646, %v645, 4294967295
        %v655 = vsel %vm647, %v644, 4294967295
        %v656 = vsel %vm648, %v643, 4294967295
        %v657 = vsel %vm649, %v642, 4294967295
        %v658 = vsel %vm650, %v641, 4294967295
        %v659 = vsel %vm651, %v640, 4294967295
        %v660 = vsel %vm652, %v639, 4294967295
        %v661 = vsel %vm653, %v638, 4294967295
        %vm662 = vcmp.gt.s32.totalorder %v606, %v654
        %v663 = vsel %vm662, %v606, %v654
        %vm664 = vcmp.gt.s32.totalorder %v608, %v655
        %v665 = vsel %vm664, %v608, %v655
        %vm666 = vcmp.gt.s32.totalorder %v610, %v656
        %v667 = vsel %vm666, %v610, %v656
        %vm668 = vcmp.gt.s32.totalorder %v612, %v657
        %v669 = vsel %vm668, %v612, %v657
        %vm670 = vcmp.gt.s32.totalorder %v614, %v658
        %v671 = vsel %vm670, %v614, %v658
        %vm672 = vcmp.gt.s32.totalorder %v616, %v659
        %v673 = vsel %vm672, %v616, %v659
        %vm674 = vcmp.gt.s32.totalorder %v618, %v660
        %v675 = vsel %vm674, %v618, %v660
        %vm676 = vcmp.gt.s32.totalorder %v620, %v661
        %v677 = vsel %vm676, %v620, %v661
        %678 = vrot.lane.b32.xlu0 %v663, 64
        %v679 = vpop.permute.xlu0 %678
        %680 = vrot.lane.b32.xlu0 %v665, 64
        %v681 = vpop.permute.xlu0 %680
        %682 = vrot.lane.b32.xlu0 %v667, 64
        %v683 = vpop.permute.xlu0 %682
        %684 = vrot.lane.b32.xlu0 %v669, 64
        %v685 = vpop.permute.xlu0 %684
        %686 = vrot.lane.b32.xlu0 %v671, 64
        %v687 = vpop.permute.xlu0 %686
        %688 = vrot.lane.b32.xlu0 %v673, 64
        %v689 = vpop.permute.xlu0 %688
        %690 = vrot.lane.b32.xlu0 %v675, 64
        %v691 = vpop.permute.xlu0 %690
        %692 = vrot.lane.b32.xlu0 %v677, 64
        %v693 = vpop.permute.xlu0 %692
        %vm694 = vcmp.lt.s32.totalorder %v144, 64
        %v695 = vsel %vm694, %v691, %v693
        %v696 = vsel %vm694, %v689, %v691
        %v697 = vsel %vm694, %v687, %v689
        %v698 = vsel %vm694, %v685, %v687
        %v699 = vsel %vm694, %v683, %v685
        %v700 = vsel %vm694, %v681, %v683
        %v701 = vsel %vm694, %v679, %v681
        %v702 = vsel %vm694, %v693, %v679
        %vm703 = vcmp.ge.s32.totalorder %v144, 64
        %vm704 = vcmp.ge.s32.totalorder %v145, 64
        %vm705 = vcmp.ge.s32.totalorder %v146, 64
        %vm706 = vcmp.ge.s32.totalorder %v147, 64
        %vm707 = vcmp.ge.s32.totalorder %v148, 64
        %vm708 = vcmp.ge.s32.totalorder %v149, 64
        %vm709 = vcmp.ge.s32.totalorder %v150, 64
        %vm710 = vcmp.ge.s32.totalorder %v151, 64
        %v711 = vsel %vm703, %v702, 4294967295
        %v712 = vsel %vm704, %v701, 4294967295
        %v713 = vsel %vm705, %v700, 4294967295
        %v714 = vsel %vm706, %v699, 4294967295
        %v715 = vsel %vm707, %v698, 4294967295
        %v716 = vsel %vm708, %v697, 4294967295
        %v717 = vsel %vm709, %v696, 4294967295
        %v718 = vsel %vm710, %v695, 4294967295
        %vm719 = vcmp.gt.s32.totalorder %v663, %v711
        %v720 = vsel %vm719, %v663, %v711
        %vm721 = vcmp.gt.s32.totalorder %v665, %v712
        %v722 = vsel %vm721, %v665, %v712
        %vm723 = vcmp.gt.s32.totalorder %v667, %v713
        %v724 = vsel %vm723, %v667, %v713
        %vm725 = vcmp.gt.s32.totalorder %v669, %v714
        %v726 = vsel %vm725, %v669, %v714
        %vm727 = vcmp.gt.s32.totalorder %v671, %v715
        %v728 = vsel %vm727, %v671, %v715
        %vm729 = vcmp.gt.s32.totalorder %v673, %v716
        %v730 = vsel %vm729, %v673, %v716
        %vm731 = vcmp.gt.s32.totalorder %v675, %v717
        %v732 = vsel %vm731, %v675, %v717
        %vm733 = vcmp.gt.s32.totalorder %v677, %v718
        %v734 = vsel %vm733, %v677, %v718
        %vm735 = vcmp.ge.s32.totalorder %v144, 128
        %vm736 = vcmp.ge.s32.totalorder %v145, 128
        %vm737 = vcmp.ge.s32.totalorder %v146, 128
        %vm738 = vcmp.ge.s32.totalorder %v147, 128
        %vm739 = vcmp.ge.s32.totalorder %v148, 128
        %vm740 = vcmp.ge.s32.totalorder %v149, 128
        %vm741 = vcmp.ge.s32.totalorder %v150, 128
        %vm742 = vcmp.ge.s32.totalorder %v151, 128
        %v743 = vsel %vm735, %v734, 4294967295
        %v744 = vsel %vm736, %v720, 4294967295
        %v745 = vsel %vm737, %v722, 4294967295
        %v746 = vsel %vm738, %v724, 4294967295
        %v747 = vsel %vm739, %v726, 4294967295
        %v748 = vsel %vm740, %v728, 4294967295
        %v749 = vsel %vm741, %v730, 4294967295
        %v750 = vsel %vm742, %v732, 4294967295
        %vm751 = vcmp.gt.s32.totalorder %v720, %v743
        %v752 = vsel %vm751, %v720, %v743
        %vm753 = vcmp.gt.s32.totalorder %v722, %v744
        %v754 = vsel %vm753, %v722, %v744
        %vm755 = vcmp.gt.s32.totalorder %v724, %v745
        %v756 = vsel %vm755, %v724, %v745
        %vm757 = vcmp.gt.s32.totalorder %v726, %v746
        %v758 = vsel %vm757, %v726, %v746
        %vm759 = vcmp.gt.s32.totalorder %v728, %v747
        %v760 = vsel %vm759, %v728, %v747
        %vm761 = vcmp.gt.s32.totalorder %v730, %v748
        %v762 = vsel %vm761, %v730, %v748
        %vm763 = vcmp.gt.s32.totalorder %v732, %v749
        %v764 = vsel %vm763, %v732, %v749
        %vm765 = vcmp.gt.s32.totalorder %v734, %v750
        %v766 = vsel %vm765, %v734, %v750
        %vm767 = vcmp.ge.s32.totalorder %v144, 256
        %vm768 = vcmp.ge.s32.totalorder %v145, 256
        %vm769 = vcmp.ge.s32.totalorder %v146, 256
        %vm770 = vcmp.ge.s32.totalorder %v147, 256
        %vm771 = vcmp.ge.s32.totalorder %v148, 256
        %vm772 = vcmp.ge.s32.totalorder %v149, 256
        %vm773 = vcmp.ge.s32.totalorder %v150, 256
        %vm774 = vcmp.ge.s32.totalorder %v151, 256
        %v775 = vsel %vm767, %v764, 4294967295
        %v776 = vsel %vm768, %v766, 4294967295
        %v777 = vsel %vm769, %v752, 4294967295
        %v778 = vsel %vm770, %v754, 4294967295
        %v779 = vsel %vm771, %v756, 4294967295
        %v780 = vsel %vm772, %v758, 4294967295
        %v781 = vsel %vm773, %v760, 4294967295
        %v782 = vsel %vm774, %v762, 4294967295
        %vm783 = vcmp.gt.s32.totalorder %v752, %v775
        %v784 = vsel %vm783, %v752, %v775
        %vm785 = vcmp.gt.s32.totalorder %v754, %v776
        %v786 = vsel %vm785, %v754, %v776
        %vm787 = vcmp.gt.s32.totalorder %v756, %v777
        %v788 = vsel %vm787, %v756, %v777
        %vm789 = vcmp.gt.s32.totalorder %v758, %v778
        %v790 = vsel %vm789, %v758, %v778
        %vm791 = vcmp.gt.s32.totalorder %v760, %v779
        %v792 = vsel %vm791, %v760, %v779
        %vm793 = vcmp.gt.s32.totalorder %v762, %v780
        %v794 = vsel %vm793, %v762, %v780
        %vm795 = vcmp.gt.s32.totalorder %v764, %v781
        %v796 = vsel %vm795, %v764, %v781
        %vm797 = vcmp.gt.s32.totalorder %v766, %v782
        %v798 = vsel %vm797, %v766, %v782
        %vm799 = vcmp.ge.s32.totalorder %v144, 512
        %vm800 = vcmp.ge.s32.totalorder %v145, 512
        %vm801 = vcmp.ge.s32.totalorder %v146, 512
        %vm802 = vcmp.ge.s32.totalorder %v147, 512
        %vm803 = vcmp.ge.s32.totalorder %v148, 512
        %vm804 = vcmp.ge.s32.totalorder %v149, 512
        %vm805 = vcmp.ge.s32.totalorder %v150, 512
        %vm806 = vcmp.ge.s32.totalorder %v151, 512
        %v807 = vsel %vm799, %v792, 4294967295
        %v808 = vsel %vm800, %v794, 4294967295
        %v809 = vsel %vm801, %v796, 4294967295
        %v810 = vsel %vm802, %v798, 4294967295
        %v811 = vsel %vm803, %v784, 4294967295
        %v812 = vsel %vm804, %v786, 4294967295
        %v813 = vsel %vm805, %v788, 4294967295
        %v814 = vsel %vm806, %v790, 4294967295
        %vm815 = vcmp.gt.s32.totalorder %v784, %v807
        %v816 = vsel %vm815, %v784, %v807
        %vm817 = vcmp.gt.s32.totalorder %v786, %v808
        %v818 = vsel %vm817, %v786, %v808
        %vm819 = vcmp.gt.s32.totalorder %v788, %v809
        %v820 = vsel %vm819, %v788, %v809
        %vm821 = vcmp.gt.s32.totalorder %v790, %v810
        %v822 = vsel %vm821, %v790, %v810
        %vm823 = vcmp.gt.s32.totalorder %v792, %v811
        %v824 = vsel %vm823, %v792, %v811
        %vm825 = vcmp.gt.s32.totalorder %v794, %v812
        %v826 = vsel %vm825, %v794, %v812
        %vm827 = vcmp.gt.s32.totalorder %v796, %v813
        %v828 = vsel %vm827, %v796, %v813
        %vm829 = vcmp.gt.s32.totalorder %v798, %v814
        %v830 = vsel %vm829, %v798, %v814
        %vm831 = vcmp.gt.s32.totalorder %v280, %v284
        %v832 = vsel %vm831, %v280, %v284
        %vm833 = vcmp.gt.s32.totalorder %v281, %v285
        %v834 = vsel %vm833, %v281, %v285
        %vm835 = vcmp.gt.s32.totalorder %v282, %v286
        %v836 = vsel %vm835, %v282, %v286
        %vm837 = vcmp.gt.s32.totalorder %v283, %v287
        %v838 = vsel %vm837, %v283, %v287
        %vm839 = vcmp.gt.s32.totalorder %v832, %v834
        %v840 = vsel %vm839, %v832, %v834
        %vm841 = vcmp.gt.s32.totalorder %v836, %v838
        %v842 = vsel %vm841, %v836, %v838
        %vm843 = vcmp.gt.s32.totalorder %v840, %v842
        %v844 = vsel %vm843, %v840, %v842
        %v845 = vand.u32 %v844, 65535
        %v846 = vshra.s32 %v844, 16
        %v847 = vcvt.s32.f32 %v845
        %v848 = vcvt.s32.f32 %v846
        %849 = vmax.xlane.f32.xlu0 %v848
        %v850 = vpop.xlane.xlu0 %849
        %vm851 = vcmp.eq.f32.partialorder %v848, %v850
        %v852 = vsel %vm851, %v847, -inf
        %853 = vmax.xlane.f32.xlu0 %v852
        %v854 = vpop.xlane.xlu0 %853
        %v855 = vcvt.f32.s32 %v854
        %v856 = vcvt.f32.s32 %v850
        %v857 = vshll.u32 %v856, 16
        %v858 = vadd.s32 %v857, %v855
        %vm859 = vcmp.le.s32.totalorder %v248, %v858
        %vm860 = vcmp.le.s32.totalorder %v249, %v858
        %vm861 = vcmp.le.s32.totalorder %v250, %v858
        %vm862 = vcmp.le.s32.totalorder %v251, %v858
        %vm863 = vcmp.le.s32.totalorder %v252, %v858
        %vm864 = vcmp.le.s32.totalorder %v253, %v858
        %vm865 = vcmp.le.s32.totalorder %v254, %v858
        %vm866 = vcmp.le.s32.totalorder %v255, %v858
        %vm867 = vcmp.ge.s32.totalorder %v816, 0
        %vm868 = vcmp.ge.s32.totalorder %v818, 0
        %vm869 = vcmp.ge.s32.totalorder %v820, 0
        %vm870 = vcmp.ge.s32.totalorder %v822, 0
        %vm871 = vcmp.ge.s32.totalorder %v824, 0
        %vm872 = vcmp.ge.s32.totalorder %v826, 0
        %vm873 = vcmp.ge.s32.totalorder %v828, 0
        %vm874 = vcmp.ge.s32.totalorder %v830, 0
        %v875 = vand.u32 %v816, 1
        %v876 = vand.u32 %v818, 1
        %v877 = vand.u32 %v820, 1
        %v878 = vand.u32 %v822, 1
        %v879 = vand.u32 %v824, 1
        %v880 = vand.u32 %v826, 1
        %v881 = vand.u32 %v828, 1
        %v882 = vand.u32 %v830, 1
        %vm883 = vcmp.eq.s32.totalorder %v875, 1
        %vm884 = vcmp.eq.s32.totalorder %v876, 1
        %vm885 = vcmp.eq.s32.totalorder %v877, 1
        %vm886 = vcmp.eq.s32.totalorder %v878, 1
        %vm887 = vcmp.eq.s32.totalorder %v879, 1
        %vm888 = vcmp.eq.s32.totalorder %v880, 1
        %vm889 = vcmp.eq.s32.totalorder %v881, 1
        %vm890 = vcmp.eq.s32.totalorder %v882, 1
        %vm891 = vmand %vm867, %vm883
        %vm892 = vmand %vm868, %vm884
        %vm893 = vmand %vm869, %vm885
        %vm894 = vmand %vm870, %vm886
        %vm895 = vmand %vm871, %vm887
        %vm896 = vmand %vm872, %vm888
        %vm897 = vmand %vm873, %vm889
        %vm898 = vmand %vm874, %vm890
        %vm899 = vmand %vm891, %vm859
        %vm900 = vmand %vm892, %vm860
        %vm901 = vmand %vm893, %vm861
        %vm902 = vmand %vm894, %vm862
        %vm903 = vmand %vm895, %vm863
        %vm904 = vmand %vm896, %vm864
        %vm905 = vmand %vm897, %vm865
        %vm906 = vmand %vm898, %vm866
        %vm907 = vmxor %vm192, 1
        %vm908 = vmxor %vm193, 1
        %vm909 = vmxor %vm194, 1
        %vm910 = vmxor %vm195, 1
        %vm911 = vmxor %vm196, 1
        %vm912 = vmxor %vm197, 1
        %vm913 = vmxor %vm198, 1
        %vm914 = vmxor %vm199, 1
        %vm915 = vmxor %vm899, 1
        %vm916 = vmxor %vm900, 1
        %vm917 = vmxor %vm901, 1
        %vm918 = vmxor %vm902, 1
        %vm919 = vmxor %vm903, 1
        %vm920 = vmxor %vm904, 1
        %vm921 = vmxor %vm905, 1
        %vm922 = vmxor %vm906, 1
        %vm923 = vmand %vm907, %vm915
        %vm924 = vmand %vm908, %vm916
        %vm925 = vmand %vm909, %vm917
        %vm926 = vmand %vm910, %vm918
        %vm927 = vmand %vm911, %vm919
        %vm928 = vmand %vm912, %vm920
        %vm929 = vmand %vm913, %vm921
        %vm930 = vmand %vm914, %vm922
        %vm931 = vmxor %vm232, 1
        %vm932 = vmxor %vm233, 1
        %vm933 = vmxor %vm234, 1
        %vm934 = vmxor %vm235, 1
        %vm935 = vmxor %vm236, 1
        %vm936 = vmxor %vm237, 1
        %vm937 = vmxor %vm238, 1
        %vm938 = vmxor %vm239, 1
        %vm939 = vmand %vm923, %vm931
        %vm940 = vmand %vm924, %vm932
        %vm941 = vmand %vm925, %vm933
        %vm942 = vmand %vm926, %vm934
        %vm943 = vmand %vm927, %vm935
        %vm944 = vmand %vm928, %vm936
        %vm945 = vmand %vm929, %vm937
        %vm946 = vmand %vm930, %vm938
        %v947 = vsel %vm939, %v184, 0
        %v948 = vsel %vm940, %v185, 0
        %v949 = vsel %vm941, %v186, 0
        %v950 = vsel %vm942, %v187, 0
        %v951 = vsel %vm943, %v188, 0
        %v952 = vsel %vm944, %v189, 0
        %v953 = vsel %vm945, %v190, 0
        %v954 = vsel %vm946, %v191, 0
        %955 = vrot.lane.b32.xlu0 %v947, 127
        %v956 = vpop.permute.xlu0 %955
        %957 = vrot.lane.b32.xlu0 %v948, 127
        %v958 = vpop.permute.xlu0 %957
        %959 = vrot.lane.b32.xlu0 %v949, 127
        %v960 = vpop.permute.xlu0 %959
        %961 = vrot.lane.b32.xlu0 %v950, 127
        %v962 = vpop.permute.xlu0 %961
        %963 = vrot.lane.b32.xlu0 %v951, 127
        %v964 = vpop.permute.xlu0 %963
        %965 = vrot.lane.b32.xlu0 %v952, 127
        %v966 = vpop.permute.xlu0 %965
        %967 = vrot.lane.b32.xlu0 %v953, 127
        %v968 = vpop.permute.xlu0 %967
        %969 = vrot.lane.b32.xlu0 %v954, 127
        %v970 = vpop.permute.xlu0 %969
        %vm971 = vcmp.lt.s32.totalorder %v144, 127
        %v972 = vsel %vm971, %v968, %v970
        %v973 = vsel %vm971, %v966, %v968
        %v974 = vsel %vm971, %v964, %v966
        %v975 = vsel %vm971, %v962, %v964
        %v976 = vsel %vm971, %v960, %v962
        %v977 = vsel %vm971, %v958, %v960
        %v978 = vsel %vm971, %v956, %v958
        %v979 = vsel %vm971, %v970, %v956
        %vm980 = vcmp.lt.s32.totalorder %v144, 1023
        %vm981 = vcmp.lt.s32.totalorder %v145, 1023
        %vm982 = vcmp.lt.s32.totalorder %v146, 1023
        %vm983 = vcmp.lt.s32.totalorder %v147, 1023
        %vm984 = vcmp.lt.s32.totalorder %v148, 1023
        %vm985 = vcmp.lt.s32.totalorder %v149, 1023
        %vm986 = vcmp.lt.s32.totalorder %v150, 1023
        %vm987 = vcmp.lt.s32.totalorder %v151, 1023
        %v988 = vsel %vm980, %v978, 0
        %v989 = vsel %vm981, %v977, 0
        %v990 = vsel %vm982, %v976, 0
        %v991 = vsel %vm983, %v975, 0
        %v992 = vsel %vm984, %v974, 0
        %v993 = vsel %vm985, %v973, 0
        %v994 = vsel %vm986, %v972, 0
        %v995 = vsel %vm987, %v979, 0
        %996 = vrot.lane.b32.xlu0 %v947, 126
        %v997 = vpop.permute.xlu0 %996
        %998 = vrot.lane.b32.xlu0 %v948, 126
        %v999 = vpop.permute.xlu0 %998
        %1000 = vrot.lane.b32.xlu0 %v949, 126
        %v1001 = vpop.permute.xlu0 %1000
        %1002 = vrot.lane.b32.xlu0 %v950, 126
        %v1003 = vpop.permute.xlu0 %1002
        %1004 = vrot.lane.b32.xlu0 %v951, 126
        %v1005 = vpop.permute.xlu0 %1004
        %1006 = vrot.lane.b32.xlu0 %v952, 126
        %v1007 = vpop.permute.xlu0 %1006
        %1008 = vrot.lane.b32.xlu0 %v953, 126
        %v1009 = vpop.permute.xlu0 %1008
        %1010 = vrot.lane.b32.xlu0 %v954, 126
        %v1011 = vpop.permute.xlu0 %1010
        %vm1012 = vcmp.lt.s32.totalorder %v144, 126
        %v1013 = vsel %vm1012, %v1009, %v1011
        %v1014 = vsel %vm1012, %v1007, %v1009
        %v1015 = vsel %vm1012, %v1005, %v1007
        %v1016 = vsel %vm1012, %v1003, %v1005
        %v1017 = vsel %vm1012, %v1001, %v1003
        %v1018 = vsel %vm1012, %v999, %v1001
        %v1019 = vsel %vm1012, %v997, %v999
        %v1020 = vsel %vm1012, %v1011, %v997
        %vm1021 = vcmp.lt.s32.totalorder %v144, 1022
        %vm1022 = vcmp.lt.s32.totalorder %v145, 1022
        %vm1023 = vcmp.lt.s32.totalorder %v146, 1022
        %vm1024 = vcmp.lt.s32.totalorder %v147, 1022
        %vm1025 = vcmp.lt.s32.totalorder %v148, 1022
        %vm1026 = vcmp.lt.s32.totalorder %v149, 1022
        %vm1027 = vcmp.lt.s32.totalorder %v150, 1022
        %vm1028 = vcmp.lt.s32.totalorder %v151, 1022
        %v1029 = vsel %vm1021, %v1019, 0
        %v1030 = vsel %vm1022, %v1018, 0
        %v1031 = vsel %vm1023, %v1017, 0
        %v1032 = vsel %vm1024, %v1016, 0
        %v1033 = vsel %vm1025, %v1015, 0
        %v1034 = vsel %vm1026, %v1014, 0
        %v1035 = vsel %vm1027, %v1013, 0
        %v1036 = vsel %vm1028, %v1020, 0
        %1037 = vrot.lane.b32.xlu0 %v947, 125
        %v1038 = vpop.permute.xlu0 %1037
        %1039 = vrot.lane.b32.xlu0 %v948, 125
        %v1040 = vpop.permute.xlu0 %1039
        %1041 = vrot.lane.b32.xlu0 %v949, 125
        %v1042 = vpop.permute.xlu0 %1041
        %1043 = vrot.lane.b32.xlu0 %v950, 125
        %v1044 = vpop.permute.xlu0 %1043
        %1045 = vrot.lane.b32.xlu0 %v951, 125
        %v1046 = vpop.permute.xlu0 %1045
        %1047 = vrot.lane.b32.xlu0 %v952, 125
        %v1048 = vpop.permute.xlu0 %1047
        %1049 = vrot.lane.b32.xlu0 %v953, 125
        %v1050 = vpop.permute.xlu0 %1049
        %1051 = vrot.lane.b32.xlu0 %v954, 125
        %v1052 = vpop.permute.xlu0 %1051
        %vm1053 = vcmp.lt.s32.totalorder %v144, 125
        %v1054 = vsel %vm1053, %v1050, %v1052
        %v1055 = vsel %vm1053, %v1048, %v1050
        %v1056 = vsel %vm1053, %v1046, %v1048
        %v1057 = vsel %vm1053, %v1044, %v1046
        %v1058 = vsel %vm1053, %v1042, %v1044
        %v1059 = vsel %vm1053, %v1040, %v1042
        %v1060 = vsel %vm1053, %v1038, %v1040
        %v1061 = vsel %vm1053, %v1052, %v1038
        %vm1062 = vcmp.lt.s32.totalorder %v144, 1021
        %vm1063 = vcmp.lt.s32.totalorder %v145, 1021
        %vm1064 = vcmp.lt.s32.totalorder %v146, 1021
        %vm1065 = vcmp.lt.s32.totalorder %v147, 1021
        %vm1066 = vcmp.lt.s32.totalorder %v148, 1021
        %vm1067 = vcmp.lt.s32.totalorder %v149, 1021
        %vm1068 = vcmp.lt.s32.totalorder %v150, 1021
        %vm1069 = vcmp.lt.s32.totalorder %v151, 1021
        %v1070 = vsel %vm1062, %v1060, 0
        %v1071 = vsel %vm1063, %v1059, 0
        %v1072 = vsel %vm1064, %v1058, 0
        %v1073 = vsel %vm1065, %v1057, 0
        %v1074 = vsel %vm1066, %v1056, 0
        %v1075 = vsel %vm1067, %v1055, 0
        %v1076 = vsel %vm1068, %v1054, 0
        %v1077 = vsel %vm1069, %v1061, 0
        %1078 = vrot.lane.b32.xlu0 %v947, 124
        %v1079 = vpop.permute.xlu0 %1078
        %1080 = vrot.lane.b32.xlu0 %v948, 124
        %v1081 = vpop.permute.xlu0 %1080
        %1082 = vrot.lane.b32.xlu0 %v949, 124
        %v1083 = vpop.permute.xlu0 %1082
        %1084 = vrot.lane.b32.xlu0 %v950, 124
        %v1085 = vpop.permute.xlu0 %1084
        %1086 = vrot.lane.b32.xlu0 %v951, 124
        %v1087 = vpop.permute.xlu0 %1086
        %1088 = vrot.lane.b32.xlu0 %v952, 124
        %v1089 = vpop.permute.xlu0 %1088
        %1090 = vrot.lane.b32.xlu0 %v953, 124
        %v1091 = vpop.permute.xlu0 %1090
        %1092 = vrot.lane.b32.xlu0 %v954, 124
        %v1093 = vpop.permute.xlu0 %1092
        %vm1094 = vcmp.lt.s32.totalorder %v144, 124
        %v1095 = vsel %vm1094, %v1091, %v1093
        %v1096 = vsel %vm1094, %v1089, %v1091
        %v1097 = vsel %vm1094, %v1087, %v1089
        %v1098 = vsel %vm1094, %v1085, %v1087
        %v1099 = vsel %vm1094, %v1083, %v1085
        %v1100 = vsel %vm1094, %v1081, %v1083
        %v1101 = vsel %vm1094, %v1079, %v1081
        %v1102 = vsel %vm1094, %v1093, %v1079
        %vm1103 = vcmp.lt.s32.totalorder %v144, 1020
        %vm1104 = vcmp.lt.s32.totalorder %v145, 1020
        %vm1105 = vcmp.lt.s32.totalorder %v146, 1020
        %vm1106 = vcmp.lt.s32.totalorder %v147, 1020
        %vm1107 = vcmp.lt.s32.totalorder %v148, 1020
        %vm1108 = vcmp.lt.s32.totalorder %v149, 1020
        %vm1109 = vcmp.lt.s32.totalorder %v150, 1020
        %vm1110 = vcmp.lt.s32.totalorder %v151, 1020
        %v1111 = vsel %vm1103, %v1101, 0
        %v1112 = vsel %vm1104, %v1100, 0
        %v1113 = vsel %vm1105, %v1099, 0
        %v1114 = vsel %vm1106, %v1098, 0
        %v1115 = vsel %vm1107, %v1097, 0
        %v1116 = vsel %vm1108, %v1096, 0
        %v1117 = vsel %vm1109, %v1095, 0
        %v1118 = vsel %vm1110, %v1102, 0
        %vm1119 = vcmp.eq.s32.totalorder %v947, 104
        %vm1120 = vcmp.eq.s32.totalorder %v948, 104
        %vm1121 = vcmp.eq.s32.totalorder %v949, 104
        %vm1122 = vcmp.eq.s32.totalorder %v950, 104
        %vm1123 = vcmp.eq.s32.totalorder %v951, 104
        %vm1124 = vcmp.eq.s32.totalorder %v952, 104
        %vm1125 = vcmp.eq.s32.totalorder %v953, 104
        %vm1126 = vcmp.eq.s32.totalorder %v954, 104
        %vm1127 = vcmp.eq.s32.totalorder %v988, 116
        %vm1128 = vcmp.eq.s32.totalorder %v989, 116
        %vm1129 = vcmp.eq.s32.totalorder %v990, 116
        %vm1130 = vcmp.eq.s32.totalorder %v991, 116
        %vm1131 = vcmp.eq.s32.totalorder %v992, 116
        %vm1132 = vcmp.eq.s32.totalorder %v993, 116
        %vm1133 = vcmp.eq.s32.totalorder %v994, 116
        %vm1134 = vcmp.eq.s32.totalorder %v995, 116
        %vm1135 = vmand %vm1119, %vm1127
        %vm1136 = vmand %vm1120, %vm1128
        %vm1137 = vmand %vm1121, %vm1129
        %vm1138 = vmand %vm1122, %vm1130
        %vm1139 = vmand %vm1123, %vm1131
        %vm1140 = vmand %vm1124, %vm1132
        %vm1141 = vmand %vm1125, %vm1133
        %vm1142 = vmand %vm1126, %vm1134
        %vm1143 = vcmp.eq.s32.totalorder %v1029, 116
        %vm1144 = vcmp.eq.s32.totalorder %v1030, 116
        %vm1145 = vcmp.eq.s32.totalorder %v1031, 116
        %vm1146 = vcmp.eq.s32.totalorder %v1032, 116
        %vm1147 = vcmp.eq.s32.totalorder %v1033, 116
        %vm1148 = vcmp.eq.s32.totalorder %v1034, 116
        %vm1149 = vcmp.eq.s32.totalorder %v1035, 116
        %vm1150 = vcmp.eq.s32.totalorder %v1036, 116
        %vm1151 = vmand %vm1135, %vm1143
        %vm1152 = vmand %vm1136, %vm1144
        %vm1153 = vmand %vm1137, %vm1145
        %vm1154 = vmand %vm1138, %vm1146
        %vm1155 = vmand %vm1139, %vm1147
        %vm1156 = vmand %vm1140, %vm1148
        %vm1157 = vmand %vm1141, %vm1149
        %vm1158 = vmand %vm1142, %vm1150
        %vm1159 = vcmp.eq.s32.totalorder %v1070, 112
        %vm1160 = vcmp.eq.s32.totalorder %v1071, 112
        %vm1161 = vcmp.eq.s32.totalorder %v1072, 112
        %vm1162 = vcmp.eq.s32.totalorder %v1073, 112
        %vm1163 = vcmp.eq.s32.totalorder %v1074, 112
        %vm1164 = vcmp.eq.s32.totalorder %v1075, 112
        %vm1165 = vcmp.eq.s32.totalorder %v1076, 112
        %vm1166 = vcmp.eq.s32.totalorder %v1077, 112
        %vm1167 = vmand %vm1151, %vm1159
        %vm1168 = vmand %vm1152, %vm1160
        %vm1169 = vmand %vm1153, %vm1161
        %vm1170 = vmand %vm1154, %vm1162
        %vm1171 = vmand %vm1155, %vm1163
        %vm1172 = vmand %vm1156, %vm1164
        %vm1173 = vmand %vm1157, %vm1165
        %vm1174 = vmand %vm1158, %vm1166
        %vm1175 = vcmp.ne.s32.totalorder %v1111, 0
        %vm1176 = vcmp.ne.s32.totalorder %v1112, 0
        %vm1177 = vcmp.ne.s32.totalorder %v1113, 0
        %vm1178 = vcmp.ne.s32.totalorder %v1114, 0
        %vm1179 = vcmp.ne.s32.totalorder %v1115, 0
        %vm1180 = vcmp.ne.s32.totalorder %v1116, 0
        %vm1181 = vcmp.ne.s32.totalorder %v1117, 0
        %vm1182 = vcmp.ne.s32.totalorder %v1118, 0
        %vm1183 = vmand %vm1167, %vm1175
        %vm1184 = vmand %vm1168, %vm1176
        %vm1185 = vmand %vm1169, %vm1177
        %vm1186 = vmand %vm1170, %vm1178
        %vm1187 = vmand %vm1171, %vm1179
        %vm1188 = vmand %vm1172, %vm1180
        %vm1189 = vmand %vm1173, %vm1181
        %vm1190 = vmand %vm1174, %vm1182
        %v1191 = vsel %vm1183, %v256, 4294967295
        %v1192 = vsel %vm1184, %v257, 4294967295
        %v1193 = vsel %vm1185, %v258, 4294967295
        %v1194 = vsel %vm1186, %v259, 4294967295
        %v1195 = vsel %vm1187, %v260, 4294967295
        %v1196 = vsel %vm1188, %v261, 4294967295
        %v1197 = vsel %vm1189, %v262, 4294967295
        %v1198 = vsel %vm1190, %v263, 4294967295
        %vm1199 = vmxor %vm939, 1
        %vm1200 = vmxor %vm940, 1
        %vm1201 = vmxor %vm941, 1
        %vm1202 = vmxor %vm942, 1
        %vm1203 = vmxor %vm943, 1
        %vm1204 = vmxor %vm944, 1
        %vm1205 = vmxor %vm945, 1
        %vm1206 = vmxor %vm946, 1
        %v1207 = vsel %vm1199, %v248, 4294967295
        %v1208 = vsel %vm1200, %v249, 4294967295
        %v1209 = vsel %vm1201, %v250, 4294967295
        %v1210 = vsel %vm1202, %v251, 4294967295
        %v1211 = vsel %vm1203, %v252, 4294967295
        %v1212 = vsel %vm1204, %v253, 4294967295
        %v1213 = vsel %vm1205, %v254, 4294967295
        %v1214 = vsel %vm1206, %v255, 4294967295
        %vm1215 = vcmp.gt.s32.totalorder %v1191, %v1207
        %v1216 = vsel %vm1215, %v1191, %v1207
        %vm1217 = vcmp.gt.s32.totalorder %v1192, %v1208
        %v1218 = vsel %vm1217, %v1192, %v1208
        %vm1219 = vcmp.gt.s32.totalorder %v1193, %v1209
        %v1220 = vsel %vm1219, %v1193, %v1209
        %vm1221 = vcmp.gt.s32.totalorder %v1194, %v1210
        %v1222 = vsel %vm1221, %v1194, %v1210
        %vm1223 = vcmp.gt.s32.totalorder %v1195, %v1211
        %v1224 = vsel %vm1223, %v1195, %v1211
        %vm1225 = vcmp.gt.s32.totalorder %v1196, %v1212
        %v1226 = vsel %vm1225, %v1196, %v1212
        %vm1227 = vcmp.gt.s32.totalorder %v1197, %v1213
        %v1228 = vsel %vm1227, %v1197, %v1213
        %vm1229 = vcmp.gt.s32.totalorder %v1198, %v1214
        %v1230 = vsel %vm1229, %v1198, %v1214
        %1231 = vrot.lane.b32.xlu0 %v1216, 1
        %v1232 = vpop.permute.xlu0 %1231
        %1233 = vrot.lane.b32.xlu0 %v1218, 1
        %v1234 = vpop.permute.xlu0 %1233
        %1235 = vrot.lane.b32.xlu0 %v1220, 1
        %v1236 = vpop.permute.xlu0 %1235
        %1237 = vrot.lane.b32.xlu0 %v1222, 1
        %v1238 = vpop.permute.xlu0 %1237
        %1239 = vrot.lane.b32.xlu0 %v1224, 1
        %v1240 = vpop.permute.xlu0 %1239
        %1241 = vrot.lane.b32.xlu0 %v1226, 1
        %v1242 = vpop.permute.xlu0 %1241
        %1243 = vrot.lane.b32.xlu0 %v1228, 1
        %v1244 = vpop.permute.xlu0 %1243
        %1245 = vrot.lane.b32.xlu0 %v1230, 1
        %v1246 = vpop.permute.xlu0 %1245
        %v1247 = vsel %vm304, %v1244, %v1246
        %v1248 = vsel %vm304, %v1242, %v1244
        %v1249 = vsel %vm304, %v1240, %v1242
        %v1250 = vsel %vm304, %v1238, %v1240
        %v1251 = vsel %vm304, %v1236, %v1238
        %v1252 = vsel %vm304, %v1234, %v1236
        %v1253 = vsel %vm304, %v1232, %v1234
        %v1254 = vsel %vm304, %v1246, %v1232
        %v1255 = vsel %vm313, %v1254, 4294967295
        %v1256 = vsel %vm314, %v1253, 4294967295
        %v1257 = vsel %vm315, %v1252, 4294967295
        %v1258 = vsel %vm316, %v1251, 4294967295
        %v1259 = vsel %vm317, %v1250, 4294967295
        %v1260 = vsel %vm318, %v1249, 4294967295
        %v1261 = vsel %vm319, %v1248, 4294967295
        %v1262 = vsel %vm320, %v1247, 4294967295
        %vm1263 = vcmp.gt.s32.totalorder %v1216, %v1255
        %v1264 = vsel %vm1263, %v1216, %v1255
        %vm1265 = vcmp.gt.s32.totalorder %v1218, %v1256
        %v1266 = vsel %vm1265, %v1218, %v1256
        %vm1267 = vcmp.gt.s32.totalorder %v1220, %v1257
        %v1268 = vsel %vm1267, %v1220, %v1257
        %vm1269 = vcmp.gt.s32.totalorder %v1222, %v1258
        %v1270 = vsel %vm1269, %v1222, %v1258
        %vm1271 = vcmp.gt.s32.totalorder %v1224, %v1259
        %v1272 = vsel %vm1271, %v1224, %v1259
        %vm1273 = vcmp.gt.s32.totalorder %v1226, %v1260
        %v1274 = vsel %vm1273, %v1226, %v1260
        %vm1275 = vcmp.gt.s32.totalorder %v1228, %v1261
        %v1276 = vsel %vm1275, %v1228, %v1261
        %vm1277 = vcmp.gt.s32.totalorder %v1230, %v1262
        %v1278 = vsel %vm1277, %v1230, %v1262
        %1279 = vrot.lane.b32.xlu0 %v1264, 2
        %v1280 = vpop.permute.xlu0 %1279
        %1281 = vrot.lane.b32.xlu0 %v1266, 2
        %v1282 = vpop.permute.xlu0 %1281
        %1283 = vrot.lane.b32.xlu0 %v1268, 2
        %v1284 = vpop.permute.xlu0 %1283
        %1285 = vrot.lane.b32.xlu0 %v1270, 2
        %v1286 = vpop.permute.xlu0 %1285
        %1287 = vrot.lane.b32.xlu0 %v1272, 2
        %v1288 = vpop.permute.xlu0 %1287
        %1289 = vrot.lane.b32.xlu0 %v1274, 2
        %v1290 = vpop.permute.xlu0 %1289
        %1291 = vrot.lane.b32.xlu0 %v1276, 2
        %v1292 = vpop.permute.xlu0 %1291
        %1293 = vrot.lane.b32.xlu0 %v1278, 2
        %v1294 = vpop.permute.xlu0 %1293
        %v1295 = vsel %vm409, %v1292, %v1294
        %v1296 = vsel %vm409, %v1290, %v1292
        %v1297 = vsel %vm409, %v1288, %v1290
        %v1298 = vsel %vm409, %v1286, %v1288
        %v1299 = vsel %vm409, %v1284, %v1286
        %v1300 = vsel %vm409, %v1282, %v1284
        %v1301 = vsel %vm409, %v1280, %v1282
        %v1302 = vsel %vm409, %v1294, %v1280
        %v1303 = vsel %vm418, %v1302, 4294967295
        %v1304 = vsel %vm419, %v1301, 4294967295
        %v1305 = vsel %vm420, %v1300, 4294967295
        %v1306 = vsel %vm421, %v1299, 4294967295
        %v1307 = vsel %vm422, %v1298, 4294967295
        %v1308 = vsel %vm423, %v1297, 4294967295
        %v1309 = vsel %vm424, %v1296, 4294967295
        %v1310 = vsel %vm425, %v1295, 4294967295
        %vm1311 = vcmp.gt.s32.totalorder %v1264, %v1303
        %v1312 = vsel %vm1311, %v1264, %v1303
        %vm1313 = vcmp.gt.s32.totalorder %v1266, %v1304
        %v1314 = vsel %vm1313, %v1266, %v1304
        %vm1315 = vcmp.gt.s32.totalorder %v1268, %v1305
        %v1316 = vsel %vm1315, %v1268, %v1305
        %vm1317 = vcmp.gt.s32.totalorder %v1270, %v1306
        %v1318 = vsel %vm1317, %v1270, %v1306
        %vm1319 = vcmp.gt.s32.totalorder %v1272, %v1307
        %v1320 = vsel %vm1319, %v1272, %v1307
        %vm1321 = vcmp.gt.s32.totalorder %v1274, %v1308
        %v1322 = vsel %vm1321, %v1274, %v1308
        %vm1323 = vcmp.gt.s32.totalorder %v1276, %v1309
        %v1324 = vsel %vm1323, %v1276, %v1309
        %vm1325 = vcmp.gt.s32.totalorder %v1278, %v1310
        %v1326 = vsel %vm1325, %v1278, %v1310
        %1327 = vrot.lane.b32.xlu0 %v1312, 4
        %v1328 = vpop.permute.xlu0 %1327
        %1329 = vrot.lane.b32.xlu0 %v1314, 4
        %v1330 = vpop.permute.xlu0 %1329
        %1331 = vrot.lane.b32.xlu0 %v1316, 4
        %v1332 = vpop.permute.xlu0 %1331
        %1333 = vrot.lane.b32.xlu0 %v1318, 4
        %v1334 = vpop.permute.xlu0 %1333
        %1335 = vrot.lane.b32.xlu0 %v1320, 4
        %v1336 = vpop.permute.xlu0 %1335
        %1337 = vrot.lane.b32.xlu0 %v1322, 4
        %v1338 = vpop.permute.xlu0 %1337
        %1339 = vrot.lane.b32.xlu0 %v1324, 4
        %v1340 = vpop.permute.xlu0 %1339
        %1341 = vrot.lane.b32.xlu0 %v1326, 4
        %v1342 = vpop.permute.xlu0 %1341
        %v1343 = vsel %vm466, %v1340, %v1342
        %v1344 = vsel %vm466, %v1338, %v1340
        %v1345 = vsel %vm466, %v1336, %v1338
        %v1346 = vsel %vm466, %v1334, %v1336
        %v1347 = vsel %vm466, %v1332, %v1334
        %v1348 = vsel %vm466, %v1330, %v1332
        %v1349 = vsel %vm466, %v1328, %v1330
        %v1350 = vsel %vm466, %v1342, %v1328
        %v1351 = vsel %vm475, %v1350, 4294967295
        %v1352 = vsel %vm476, %v1349, 4294967295
        %v1353 = vsel %vm477, %v1348, 4294967295
        %v1354 = vsel %vm478, %v1347, 4294967295
        %v1355 = vsel %vm479, %v1346, 4294967295
        %v1356 = vsel %vm480, %v1345, 4294967295
        %v1357 = vsel %vm481, %v1344, 4294967295
        %v1358 = vsel %vm482, %v1343, 4294967295
        %vm1359 = vcmp.gt.s32.totalorder %v1312, %v1351
        %v1360 = vsel %vm1359, %v1312, %v1351
        %vm1361 = vcmp.gt.s32.totalorder %v1314, %v1352
        %v1362 = vsel %vm1361, %v1314, %v1352
        %vm1363 = vcmp.gt.s32.totalorder %v1316, %v1353
        %v1364 = vsel %vm1363, %v1316, %v1353
        %vm1365 = vcmp.gt.s32.totalorder %v1318, %v1354
        %v1366 = vsel %vm1365, %v1318, %v1354
        %vm1367 = vcmp.gt.s32.totalorder %v1320, %v1355
        %v1368 = vsel %vm1367, %v1320, %v1355
        %vm1369 = vcmp.gt.s32.totalorder %v1322, %v1356
        %v1370 = vsel %vm1369, %v1322, %v1356
        %vm1371 = vcmp.gt.s32.totalorder %v1324, %v1357
        %v1372 = vsel %vm1371, %v1324, %v1357
        %vm1373 = vcmp.gt.s32.totalorder %v1326, %v1358
        %v1374 = vsel %vm1373, %v1326, %v1358
        %1375 = vrot.lane.b32.xlu0 %v1360, 8
        %v1376 = vpop.permute.xlu0 %1375
        %1377 = vrot.lane.b32.xlu0 %v1362, 8
        %v1378 = vpop.permute.xlu0 %1377
        %1379 = vrot.lane.b32.xlu0 %v1364, 8
        %v1380 = vpop.permute.xlu0 %1379
        %1381 = vrot.lane.b32.xlu0 %v1366, 8
        %v1382 = vpop.permute.xlu0 %1381
        %1383 = vrot.lane.b32.xlu0 %v1368, 8
        %v1384 = vpop.permute.xlu0 %1383
        %1385 = vrot.lane.b32.xlu0 %v1370, 8
        %v1386 = vpop.permute.xlu0 %1385
        %1387 = vrot.lane.b32.xlu0 %v1372, 8
        %v1388 = vpop.permute.xlu0 %1387
        %1389 = vrot.lane.b32.xlu0 %v1374, 8
        %v1390 = vpop.permute.xlu0 %1389
        %v1391 = vsel %vm523, %v1388, %v1390
        %v1392 = vsel %vm523, %v1386, %v1388
        %v1393 = vsel %vm523, %v1384, %v1386
        %v1394 = vsel %vm523, %v1382, %v1384
        %v1395 = vsel %vm523, %v1380, %v1382
        %v1396 = vsel %vm523, %v1378, %v1380
        %v1397 = vsel %vm523, %v1376, %v1378
        %v1398 = vsel %vm523, %v1390, %v1376
        %v1399 = vsel %vm532, %v1398, 4294967295
        %v1400 = vsel %vm533, %v1397, 4294967295
        %v1401 = vsel %vm534, %v1396, 4294967295
        %v1402 = vsel %vm535, %v1395, 4294967295
        %v1403 = vsel %vm536, %v1394, 4294967295
        %v1404 = vsel %vm537, %v1393, 4294967295
        %v1405 = vsel %vm538, %v1392, 4294967295
        %v1406 = vsel %vm539, %v1391, 4294967295
        %vm1407 = vcmp.gt.s32.totalorder %v1360, %v1399
        %v1408 = vsel %vm1407, %v1360, %v1399
        %vm1409 = vcmp.gt.s32.totalorder %v1362, %v1400
        %v1410 = vsel %vm1409, %v1362, %v1400
        %vm1411 = vcmp.gt.s32.totalorder %v1364, %v1401
        %v1412 = vsel %vm1411, %v1364, %v1401
        %vm1413 = vcmp.gt.s32.totalorder %v1366, %v1402
        %v1414 = vsel %vm1413, %v1366, %v1402
        %vm1415 = vcmp.gt.s32.totalorder %v1368, %v1403
        %v1416 = vsel %vm1415, %v1368, %v1403
        %vm1417 = vcmp.gt.s32.totalorder %v1370, %v1404
        %v1418 = vsel %vm1417, %v1370, %v1404
        %vm1419 = vcmp.gt.s32.totalorder %v1372, %v1405
        %v1420 = vsel %vm1419, %v1372, %v1405
        %vm1421 = vcmp.gt.s32.totalorder %v1374, %v1406
        %v1422 = vsel %vm1421, %v1374, %v1406
        %1423 = vrot.lane.b32.xlu0 %v1408, 16
        %v1424 = vpop.permute.xlu0 %1423
        %1425 = vrot.lane.b32.xlu0 %v1410, 16
        %v1426 = vpop.permute.xlu0 %1425
        %1427 = vrot.lane.b32.xlu0 %v1412, 16
        %v1428 = vpop.permute.xlu0 %1427
        %1429 = vrot.lane.b32.xlu0 %v1414, 16
        %v1430 = vpop.permute.xlu0 %1429
        %1431 = vrot.lane.b32.xlu0 %v1416, 16
        %v1432 = vpop.permute.xlu0 %1431
        %1433 = vrot.lane.b32.xlu0 %v1418, 16
        %v1434 = vpop.permute.xlu0 %1433
        %1435 = vrot.lane.b32.xlu0 %v1420, 16
        %v1436 = vpop.permute.xlu0 %1435
        %1437 = vrot.lane.b32.xlu0 %v1422, 16
        %v1438 = vpop.permute.xlu0 %1437
        %v1439 = vsel %vm580, %v1436, %v1438
        %v1440 = vsel %vm580, %v1434, %v1436
        %v1441 = vsel %vm580, %v1432, %v1434
        %v1442 = vsel %vm580, %v1430, %v1432
        %v1443 = vsel %vm580, %v1428, %v1430
        %v1444 = vsel %vm580, %v1426, %v1428
        %v1445 = vsel %vm580, %v1424, %v1426
        %v1446 = vsel %vm580, %v1438, %v1424
        %v1447 = vsel %vm589, %v1446, 4294967295
        %v1448 = vsel %vm590, %v1445, 4294967295
        %v1449 = vsel %vm591, %v1444, 4294967295
        %v1450 = vsel %vm592, %v1443, 4294967295
        %v1451 = vsel %vm593, %v1442, 4294967295
        %v1452 = vsel %vm594, %v1441, 4294967295
        %v1453 = vsel %vm595, %v1440, 4294967295
        %v1454 = vsel %vm596, %v1439, 4294967295
        %vm1455 = vcmp.gt.s32.totalorder %v1408, %v1447
        %v1456 = vsel %vm1455, %v1408, %v1447
        %vm1457 = vcmp.gt.s32.totalorder %v1410, %v1448
        %v1458 = vsel %vm1457, %v1410, %v1448
        %vm1459 = vcmp.gt.s32.totalorder %v1412, %v1449
        %v1460 = vsel %vm1459, %v1412, %v1449
        %vm1461 = vcmp.gt.s32.totalorder %v1414, %v1450
        %v1462 = vsel %vm1461, %v1414, %v1450
        %vm1463 = vcmp.gt.s32.totalorder %v1416, %v1451
        %v1464 = vsel %vm1463, %v1416, %v1451
        %vm1465 = vcmp.gt.s32.totalorder %v1418, %v1452
        %v1466 = vsel %vm1465, %v1418, %v1452
        %vm1467 = vcmp.gt.s32.totalorder %v1420, %v1453
        %v1468 = vsel %vm1467, %v1420, %v1453
        %vm1469 = vcmp.gt.s32.totalorder %v1422, %v1454
        %v1470 = vsel %vm1469, %v1422, %v1454
        %1471 = vrot.lane.b32.xlu0 %v1456, 32
        %v1472 = vpop.permute.xlu0 %1471
        %1473 = vrot.lane.b32.xlu0 %v1458, 32
        %v1474 = vpop.permute.xlu0 %1473
        %1475 = vrot.lane.b32.xlu0 %v1460, 32
        %v1476 = vpop.permute.xlu0 %1475
        %1477 = vrot.lane.b32.xlu0 %v1462, 32
        %v1478 = vpop.permute.xlu0 %1477
        %1479 = vrot.lane.b32.xlu0 %v1464, 32
        %v1480 = vpop.permute.xlu0 %1479
        %1481 = vrot.lane.b32.xlu0 %v1466, 32
        %v1482 = vpop.permute.xlu0 %1481
        %1483 = vrot.lane.b32.xlu0 %v1468, 32
        %v1484 = vpop.permute.xlu0 %1483
        %1485 = vrot.lane.b32.xlu0 %v1470, 32
        %v1486 = vpop.permute.xlu0 %1485
        %v1487 = vsel %vm637, %v1484, %v1486
        %v1488 = vsel %vm637, %v1482, %v1484
        %v1489 = vsel %vm637, %v1480, %v1482
        %v1490 = vsel %vm637, %v1478, %v1480
        %v1491 = vsel %vm637, %v1476, %v1478
        %v1492 = vsel %vm637, %v1474, %v1476
        %v1493 = vsel %vm637, %v1472, %v1474
        %v1494 = vsel %vm637, %v1486, %v1472
        %v1495 = vsel %vm646, %v1494, 4294967295
        %v1496 = vsel %vm647, %v1493, 4294967295
        %v1497 = vsel %vm648, %v1492, 4294967295
        %v1498 = vsel %vm649, %v1491, 4294967295
        %v1499 = vsel %vm650, %v1490, 4294967295
        %v1500 = vsel %vm651, %v1489, 4294967295
        %v1501 = vsel %vm652, %v1488, 4294967295
        %v1502 = vsel %vm653, %v1487, 4294967295
        %vm1503 = vcmp.gt.s32.totalorder %v1456, %v1495
        %v1504 = vsel %vm1503, %v1456, %v1495
        %vm1505 = vcmp.gt.s32.totalorder %v1458, %v1496
        %v1506 = vsel %vm1505, %v1458, %v1496
        %vm1507 = vcmp.gt.s32.totalorder %v1460, %v1497
        %v1508 = vsel %vm1507, %v1460, %v1497
        %vm1509 = vcmp.gt.s32.totalorder %v1462, %v1498
        %v1510 = vsel %vm1509, %v1462, %v1498
        %vm1511 = vcmp.gt.s32.totalorder %v1464, %v1499
        %v1512 = vsel %vm1511, %v1464, %v1499
        %vm1513 = vcmp.gt.s32.totalorder %v1466, %v1500
        %v1514 = vsel %vm1513, %v1466, %v1500
        %vm1515 = vcmp.gt.s32.totalorder %v1468, %v1501
        %v1516 = vsel %vm1515, %v1468, %v1501
        %vm1517 = vcmp.gt.s32.totalorder %v1470, %v1502
        %v1518 = vsel %vm1517, %v1470, %v1502
        %1519 = vrot.lane.b32.xlu0 %v1504, 64
        %v1520 = vpop.permute.xlu0 %1519
        %1521 = vrot.lane.b32.xlu0 %v1506, 64
        %v1522 = vpop.permute.xlu0 %1521
        %1523 = vrot.lane.b32.xlu0 %v1508, 64
        %v1524 = vpop.permute.xlu0 %1523
        %1525 = vrot.lane.b32.xlu0 %v1510, 64
        %v1526 = vpop.permute.xlu0 %1525
        %1527 = vrot.lane.b32.xlu0 %v1512, 64
        %v1528 = vpop.permute.xlu0 %1527
        %1529 = vrot.lane.b32.xlu0 %v1514, 64
        %v1530 = vpop.permute.xlu0 %1529
        %1531 = vrot.lane.b32.xlu0 %v1516, 64
        %v1532 = vpop.permute.xlu0 %1531
        %1533 = vrot.lane.b32.xlu0 %v1518, 64
        %v1534 = vpop.permute.xlu0 %1533
        %v1535 = vsel %vm694, %v1532, %v1534
        %v1536 = vsel %vm694, %v1530, %v1532
        %v1537 = vsel %vm694, %v1528, %v1530
        %v1538 = vsel %vm694, %v1526, %v1528
        %v1539 = vsel %vm694, %v1524, %v1526
        %v1540 = vsel %vm694, %v1522, %v1524
        %v1541 = vsel %vm694, %v1520, %v1522
        %v1542 = vsel %vm694, %v1534, %v1520
        %v1543 = vsel %vm703, %v1542, 4294967295
        %v1544 = vsel %vm704, %v1541, 4294967295
        %v1545 = vsel %vm705, %v1540, 4294967295
        %v1546 = vsel %vm706, %v1539, 4294967295
        %v1547 = vsel %vm707, %v1538, 4294967295
        %v1548 = vsel %vm708, %v1537, 4294967295
        %v1549 = vsel %vm709, %v1536, 4294967295
        %v1550 = vsel %vm710, %v1535, 4294967295
        %vm1551 = vcmp.gt.s32.totalorder %v1504, %v1543
        %v1552 = vsel %vm1551, %v1504, %v1543
        %vm1553 = vcmp.gt.s32.totalorder %v1506, %v1544
        %v1554 = vsel %vm1553, %v1506, %v1544
        %vm1555 = vcmp.gt.s32.totalorder %v1508, %v1545
        %v1556 = vsel %vm1555, %v1508, %v1545
        %vm1557 = vcmp.gt.s32.totalorder %v1510, %v1546
        %v1558 = vsel %vm1557, %v1510, %v1546
        %vm1559 = vcmp.gt.s32.totalorder %v1512, %v1547
        %v1560 = vsel %vm1559, %v1512, %v1547
        %vm1561 = vcmp.gt.s32.totalorder %v1514, %v1548
        %v1562 = vsel %vm1561, %v1514, %v1548
        %vm1563 = vcmp.gt.s32.totalorder %v1516, %v1549
        %v1564 = vsel %vm1563, %v1516, %v1549
        %vm1565 = vcmp.gt.s32.totalorder %v1518, %v1550
        %v1566 = vsel %vm1565, %v1518, %v1550
        %v1567 = vsel %vm735, %v1566, 4294967295
        %v1568 = vsel %vm736, %v1552, 4294967295
        %v1569 = vsel %vm737, %v1554, 4294967295
        %v1570 = vsel %vm738, %v1556, 4294967295
        %v1571 = vsel %vm739, %v1558, 4294967295
        %v1572 = vsel %vm740, %v1560, 4294967295
        %v1573 = vsel %vm741, %v1562, 4294967295
        %v1574 = vsel %vm742, %v1564, 4294967295
        %vm1575 = vcmp.gt.s32.totalorder %v1552, %v1567
        %v1576 = vsel %vm1575, %v1552, %v1567
        %vm1577 = vcmp.gt.s32.totalorder %v1554, %v1568
        %v1578 = vsel %vm1577, %v1554, %v1568
        %vm1579 = vcmp.gt.s32.totalorder %v1556, %v1569
        %v1580 = vsel %vm1579, %v1556, %v1569
        %vm1581 = vcmp.gt.s32.totalorder %v1558, %v1570
        %v1582 = vsel %vm1581, %v1558, %v1570
        %vm1583 = vcmp.gt.s32.totalorder %v1560, %v1571
        %v1584 = vsel %vm1583, %v1560, %v1571
        %vm1585 = vcmp.gt.s32.totalorder %v1562, %v1572
        %v1586 = vsel %vm1585, %v1562, %v1572
        %vm1587 = vcmp.gt.s32.totalorder %v1564, %v1573
        %v1588 = vsel %vm1587, %v1564, %v1573
        %vm1589 = vcmp.gt.s32.totalorder %v1566, %v1574
        %v1590 = vsel %vm1589, %v1566, %v1574
        %v1591 = vsel %vm767, %v1588, 4294967295
        %v1592 = vsel %vm768, %v1590, 4294967295
        %v1593 = vsel %vm769, %v1576, 4294967295
        %v1594 = vsel %vm770, %v1578, 4294967295
        %v1595 = vsel %vm771, %v1580, 4294967295
        %v1596 = vsel %vm772, %v1582, 4294967295
        %v1597 = vsel %vm773, %v1584, 4294967295
        %v1598 = vsel %vm774, %v1586, 4294967295
        %vm1599 = vcmp.gt.s32.totalorder %v1576, %v1591
        %v1600 = vsel %vm1599, %v1576, %v1591
        %vm1601 = vcmp.gt.s32.totalorder %v1578, %v1592
        %v1602 = vsel %vm1601, %v1578, %v1592
        %vm1603 = vcmp.gt.s32.totalorder %v1580, %v1593
        %v1604 = vsel %vm1603, %v1580, %v1593
        %vm1605 = vcmp.gt.s32.totalorder %v1582, %v1594
        %v1606 = vsel %vm1605, %v1582, %v1594
        %vm1607 = vcmp.gt.s32.totalorder %v1584, %v1595
        %v1608 = vsel %vm1607, %v1584, %v1595
        %vm1609 = vcmp.gt.s32.totalorder %v1586, %v1596
        %v1610 = vsel %vm1609, %v1586, %v1596
        %vm1611 = vcmp.gt.s32.totalorder %v1588, %v1597
        %v1612 = vsel %vm1611, %v1588, %v1597
        %vm1613 = vcmp.gt.s32.totalorder %v1590, %v1598
        %v1614 = vsel %vm1613, %v1590, %v1598
        %v1615 = vsel %vm799, %v1608, 4294967295
        %v1616 = vsel %vm800, %v1610, 4294967295
        %v1617 = vsel %vm801, %v1612, 4294967295
        %v1618 = vsel %vm802, %v1614, 4294967295
        %v1619 = vsel %vm803, %v1600, 4294967295
        %v1620 = vsel %vm804, %v1602, 4294967295
        %v1621 = vsel %vm805, %v1604, 4294967295
        %v1622 = vsel %vm806, %v1606, 4294967295
        %vm1623 = vcmp.gt.s32.totalorder %v1600, %v1615
        %v1624 = vsel %vm1623, %v1600, %v1615
        %vm1625 = vcmp.gt.s32.totalorder %v1602, %v1616
        %v1626 = vsel %vm1625, %v1602, %v1616
        %vm1627 = vcmp.gt.s32.totalorder %v1604, %v1617
        %v1628 = vsel %vm1627, %v1604, %v1617
        %vm1629 = vcmp.gt.s32.totalorder %v1606, %v1618
        %v1630 = vsel %vm1629, %v1606, %v1618
        %vm1631 = vcmp.gt.s32.totalorder %v1608, %v1619
        %v1632 = vsel %vm1631, %v1608, %v1619
        %vm1633 = vcmp.gt.s32.totalorder %v1610, %v1620
        %v1634 = vsel %vm1633, %v1610, %v1620
        %vm1635 = vcmp.gt.s32.totalorder %v1612, %v1621
        %v1636 = vsel %vm1635, %v1612, %v1621
        %vm1637 = vcmp.gt.s32.totalorder %v1614, %v1622
        %v1638 = vsel %vm1637, %v1614, %v1622
        %vm1639 = vcmp.ge.s32.totalorder %v1624, 0
        %vm1640 = vcmp.ge.s32.totalorder %v1626, 0
        %vm1641 = vcmp.ge.s32.totalorder %v1628, 0
        %vm1642 = vcmp.ge.s32.totalorder %v1630, 0
        %vm1643 = vcmp.ge.s32.totalorder %v1632, 0
        %vm1644 = vcmp.ge.s32.totalorder %v1634, 0
        %vm1645 = vcmp.ge.s32.totalorder %v1636, 0
        %vm1646 = vcmp.ge.s32.totalorder %v1638, 0
        %v1647 = vand.u32 %v1624, 1
        %v1648 = vand.u32 %v1626, 1
        %v1649 = vand.u32 %v1628, 1
        %v1650 = vand.u32 %v1630, 1
        %v1651 = vand.u32 %v1632, 1
        %v1652 = vand.u32 %v1634, 1
        %v1653 = vand.u32 %v1636, 1
        %v1654 = vand.u32 %v1638, 1
        %vm1655 = vcmp.eq.s32.totalorder %v1647, 1
        %vm1656 = vcmp.eq.s32.totalorder %v1648, 1
        %vm1657 = vcmp.eq.s32.totalorder %v1649, 1
        %vm1658 = vcmp.eq.s32.totalorder %v1650, 1
        %vm1659 = vcmp.eq.s32.totalorder %v1651, 1
        %vm1660 = vcmp.eq.s32.totalorder %v1652, 1
        %vm1661 = vcmp.eq.s32.totalorder %v1653, 1
        %vm1662 = vcmp.eq.s32.totalorder %v1654, 1
        %vm1663 = vmand %vm1639, %vm1655
        %vm1664 = vmand %vm1640, %vm1656
        %vm1665 = vmand %vm1641, %vm1657
        %vm1666 = vmand %vm1642, %vm1658
        %vm1667 = vmand %vm1643, %vm1659
        %vm1668 = vmand %vm1644, %vm1660
        %vm1669 = vmand %vm1645, %vm1661
        %vm1670 = vmand %vm1646, %vm1662
        %vm1671 = vcmp.ge.s32.totalorder %v184, 97
        %vm1672 = vcmp.ge.s32.totalorder %v185, 97
        %vm1673 = vcmp.ge.s32.totalorder %v186, 97
        %vm1674 = vcmp.ge.s32.totalorder %v187, 97
        %vm1675 = vcmp.ge.s32.totalorder %v188, 97
        %vm1676 = vcmp.ge.s32.totalorder %v189, 97
        %vm1677 = vcmp.ge.s32.totalorder %v190, 97
        %vm1678 = vcmp.ge.s32.totalorder %v191, 97
        %vm1679 = vcmp.le.s32.totalorder %v184, 122
        %vm1680 = vcmp.le.s32.totalorder %v185, 122
        %vm1681 = vcmp.le.s32.totalorder %v186, 122
        %vm1682 = vcmp.le.s32.totalorder %v187, 122
        %vm1683 = vcmp.le.s32.totalorder %v188, 122
        %vm1684 = vcmp.le.s32.totalorder %v189, 122
        %vm1685 = vcmp.le.s32.totalorder %v190, 122
        %vm1686 = vcmp.le.s32.totalorder %v191, 122
        %vm1687 = vmand %vm1671, %vm1679
        %vm1688 = vmand %vm1672, %vm1680
        %vm1689 = vmand %vm1673, %vm1681
        %vm1690 = vmand %vm1674, %vm1682
        %vm1691 = vmand %vm1675, %vm1683
        %vm1692 = vmand %vm1676, %vm1684
        %vm1693 = vmand %vm1677, %vm1685
        %vm1694 = vmand %vm1678, %vm1686
        %vm1695 = vcmp.ge.s32.totalorder %v184, 48
        %vm1696 = vcmp.ge.s32.totalorder %v185, 48
        %vm1697 = vcmp.ge.s32.totalorder %v186, 48
        %vm1698 = vcmp.ge.s32.totalorder %v187, 48
        %vm1699 = vcmp.ge.s32.totalorder %v188, 48
        %vm1700 = vcmp.ge.s32.totalorder %v189, 48
        %vm1701 = vcmp.ge.s32.totalorder %v190, 48
        %vm1702 = vcmp.ge.s32.totalorder %v191, 48
        %vm1703 = vcmp.le.s32.totalorder %v184, 57
        %vm1704 = vcmp.le.s32.totalorder %v185, 57
        %vm1705 = vcmp.le.s32.totalorder %v186, 57
        %vm1706 = vcmp.le.s32.totalorder %v187, 57
        %vm1707 = vcmp.le.s32.totalorder %v188, 57
        %vm1708 = vcmp.le.s32.totalorder %v189, 57
        %vm1709 = vcmp.le.s32.totalorder %v190, 57
        %vm1710 = vcmp.le.s32.totalorder %v191, 57
        %vm1711 = vmand %vm1695, %vm1703
        %vm1712 = vmand %vm1696, %vm1704
        %vm1713 = vmand %vm1697, %vm1705
        %vm1714 = vmand %vm1698, %vm1706
        %vm1715 = vmand %vm1699, %vm1707
        %vm1716 = vmand %vm1700, %vm1708
        %vm1717 = vmand %vm1701, %vm1709
        %vm1718 = vmand %vm1702, %vm1710
        %vm1719 = vmor %vm1687, %vm1711
        %vm1720 = vmor %vm1688, %vm1712
        %vm1721 = vmor %vm1689, %vm1713
        %vm1722 = vmor %vm1690, %vm1714
        %vm1723 = vmor %vm1691, %vm1715
        %vm1724 = vmor %vm1692, %vm1716
        %vm1725 = vmor %vm1693, %vm1717
        %vm1726 = vmor %vm1694, %vm1718
        %vm1727 = vcmp.eq.s32.totalorder %v184, 95
        %vm1728 = vcmp.eq.s32.totalorder %v185, 95
        %vm1729 = vcmp.eq.s32.totalorder %v186, 95
        %vm1730 = vcmp.eq.s32.totalorder %v187, 95
        %vm1731 = vcmp.eq.s32.totalorder %v188, 95
        %vm1732 = vcmp.eq.s32.totalorder %v189, 95
        %vm1733 = vcmp.eq.s32.totalorder %v190, 95
        %vm1734 = vcmp.eq.s32.totalorder %v191, 95
        %vm1735 = vmor %vm1719, %vm1727
        %vm1736 = vmor %vm1720, %vm1728
        %vm1737 = vmor %vm1721, %vm1729
        %vm1738 = vmor %vm1722, %vm1730
        %vm1739 = vmor %vm1723, %vm1731
        %vm1740 = vmor %vm1724, %vm1732
        %vm1741 = vmor %vm1725, %vm1733
        %vm1742 = vmor %vm1726, %vm1734
        %vm1743 = vmxor %vm1663, 1
        %vm1744 = vmxor %vm1664, 1
        %vm1745 = vmxor %vm1665, 1
        %vm1746 = vmxor %vm1666, 1
        %vm1747 = vmxor %vm1667, 1
        %vm1748 = vmxor %vm1668, 1
        %vm1749 = vmxor %vm1669, 1
        %vm1750 = vmxor %vm1670, 1
        %vm1751 = vmand %vm923, %vm1743
        %vm1752 = vmand %vm924, %vm1744
        %vm1753 = vmand %vm925, %vm1745
        %vm1754 = vmand %vm926, %vm1746
        %vm1755 = vmand %vm927, %vm1747
        %vm1756 = vmand %vm928, %vm1748
        %vm1757 = vmand %vm929, %vm1749
        %vm1758 = vmand %vm930, %vm1750
        %vm1759 = vmor %vm1735, %vm232
        %vm1760 = vmor %vm1736, %vm233
        %vm1761 = vmor %vm1737, %vm234
        %vm1762 = vmor %vm1738, %vm235
        %vm1763 = vmor %vm1739, %vm236
        %vm1764 = vmor %vm1740, %vm237
        %vm1765 = vmor %vm1741, %vm238
        %vm1766 = vmor %vm1742, %vm239
        %vm1767 = vmand %vm1751, %vm1759
        %vm1768 = vmand %vm1752, %vm1760
        %vm1769 = vmand %vm1753, %vm1761
        %vm1770 = vmand %vm1754, %vm1762
        %vm1771 = vmand %vm1755, %vm1763
        %vm1772 = vmand %vm1756, %vm1764
        %vm1773 = vmand %vm1757, %vm1765
        %vm1774 = vmand %vm1758, %vm1766
        %vm1775 = vmand %vm1767, %vm232
        %vm1776 = vmand %vm1768, %vm233
        %vm1777 = vmand %vm1769, %vm234
        %vm1778 = vmand %vm1770, %vm235
        %vm1779 = vmand %vm1771, %vm236
        %vm1780 = vmand %vm1772, %vm237
        %vm1781 = vmand %vm1773, %vm238
        %vm1782 = vmand %vm1774, %vm239
        %vm1783 = vmand %vm1767, %vm931
        %vm1784 = vmand %vm1768, %vm932
        %vm1785 = vmand %vm1769, %vm933
        %vm1786 = vmand %vm1770, %vm934
        %vm1787 = vmand %vm1771, %vm935
        %vm1788 = vmand %vm1772, %vm936
        %vm1789 = vmand %vm1773, %vm937
        %vm1790 = vmand %vm1774, %vm938
        %v1791 = vsel %vm1783, %v256, 4294967295
        %v1792 = vsel %vm1784, %v257, 4294967295
        %v1793 = vsel %vm1785, %v258, 4294967295
        %v1794 = vsel %vm1786, %v259, 4294967295
        %v1795 = vsel %vm1787, %v260, 4294967295
        %v1796 = vsel %vm1788, %v261, 4294967295
        %v1797 = vsel %vm1789, %v262, 4294967295
        %v1798 = vsel %vm1790, %v263, 4294967295
        %v1799 = vsel %vm1775, %v248, 4294967295
        %v1800 = vsel %vm1776, %v249, 4294967295
        %v1801 = vsel %vm1777, %v250, 4294967295
        %v1802 = vsel %vm1778, %v251, 4294967295
        %v1803 = vsel %vm1779, %v252, 4294967295
        %v1804 = vsel %vm1780, %v253, 4294967295
        %v1805 = vsel %vm1781, %v254, 4294967295
        %v1806 = vsel %vm1782, %v255, 4294967295
        %vm1807 = vcmp.gt.s32.totalorder %v1799, %v1791
        %v1808 = vsel %vm1807, %v1799, %v1791
        %vm1809 = vcmp.gt.s32.totalorder %v1800, %v1792
        %v1810 = vsel %vm1809, %v1800, %v1792
        %vm1811 = vcmp.gt.s32.totalorder %v1801, %v1793
        %v1812 = vsel %vm1811, %v1801, %v1793
        %vm1813 = vcmp.gt.s32.totalorder %v1802, %v1794
        %v1814 = vsel %vm1813, %v1802, %v1794
        %vm1815 = vcmp.gt.s32.totalorder %v1803, %v1795
        %v1816 = vsel %vm1815, %v1803, %v1795
        %vm1817 = vcmp.gt.s32.totalorder %v1804, %v1796
        %v1818 = vsel %vm1817, %v1804, %v1796
        %vm1819 = vcmp.gt.s32.totalorder %v1805, %v1797
        %v1820 = vsel %vm1819, %v1805, %v1797
        %vm1821 = vcmp.gt.s32.totalorder %v1806, %v1798
        %v1822 = vsel %vm1821, %v1806, %v1798
        %1823 = vrot.lane.b32.xlu0 %v1808, 1
        %v1824 = vpop.permute.xlu0 %1823
        %1825 = vrot.lane.b32.xlu0 %v1810, 1
        %v1826 = vpop.permute.xlu0 %1825
        %1827 = vrot.lane.b32.xlu0 %v1812, 1
        %v1828 = vpop.permute.xlu0 %1827
        %1829 = vrot.lane.b32.xlu0 %v1814, 1
        %v1830 = vpop.permute.xlu0 %1829
        %1831 = vrot.lane.b32.xlu0 %v1816, 1
        %v1832 = vpop.permute.xlu0 %1831
        %1833 = vrot.lane.b32.xlu0 %v1818, 1
        %v1834 = vpop.permute.xlu0 %1833
        %1835 = vrot.lane.b32.xlu0 %v1820, 1
        %v1836 = vpop.permute.xlu0 %1835
        %1837 = vrot.lane.b32.xlu0 %v1822, 1
        %v1838 = vpop.permute.xlu0 %1837
        %v1839 = vsel %vm304, %v1836, %v1838
        %v1840 = vsel %vm304, %v1834, %v1836
        %v1841 = vsel %vm304, %v1832, %v1834
        %v1842 = vsel %vm304, %v1830, %v1832
        %v1843 = vsel %vm304, %v1828, %v1830
        %v1844 = vsel %vm304, %v1826, %v1828
        %v1845 = vsel %vm304, %v1824, %v1826
        %v1846 = vsel %vm304, %v1838, %v1824
        %v1847 = vsel %vm313, %v1846, 4294967295
        %v1848 = vsel %vm314, %v1845, 4294967295
        %v1849 = vsel %vm315, %v1844, 4294967295
        %v1850 = vsel %vm316, %v1843, 4294967295
        %v1851 = vsel %vm317, %v1842, 4294967295
        %v1852 = vsel %vm318, %v1841, 4294967295
        %v1853 = vsel %vm319, %v1840, 4294967295
        %v1854 = vsel %vm320, %v1839, 4294967295
        %vm1855 = vcmp.gt.s32.totalorder %v1808, %v1847
        %v1856 = vsel %vm1855, %v1808, %v1847
        %vm1857 = vcmp.gt.s32.totalorder %v1810, %v1848
        %v1858 = vsel %vm1857, %v1810, %v1848
        %vm1859 = vcmp.gt.s32.totalorder %v1812, %v1849
        %v1860 = vsel %vm1859, %v1812, %v1849
        %vm1861 = vcmp.gt.s32.totalorder %v1814, %v1850
        %v1862 = vsel %vm1861, %v1814, %v1850
        %vm1863 = vcmp.gt.s32.totalorder %v1816, %v1851
        %v1864 = vsel %vm1863, %v1816, %v1851
        %vm1865 = vcmp.gt.s32.totalorder %v1818, %v1852
        %v1866 = vsel %vm1865, %v1818, %v1852
        %vm1867 = vcmp.gt.s32.totalorder %v1820, %v1853
        %v1868 = vsel %vm1867, %v1820, %v1853
        %vm1869 = vcmp.gt.s32.totalorder %v1822, %v1854
        %v1870 = vsel %vm1869, %v1822, %v1854
        %1871 = vrot.lane.b32.xlu0 %v1856, 2
        %v1872 = vpop.permute.xlu0 %1871
        %1873 = vrot.lane.b32.xlu0 %v1858, 2
        %v1874 = vpop.permute.xlu0 %1873
        %1875 = vrot.lane.b32.xlu0 %v1860, 2
        %v1876 = vpop.permute.xlu0 %1875
        %1877 = vrot.lane.b32.xlu0 %v1862, 2
        %v1878 = vpop.permute.xlu0 %1877
        %1879 = vrot.lane.b32.xlu0 %v1864, 2
        %v1880 = vpop.permute.xlu0 %1879
        %1881 = vrot.lane.b32.xlu0 %v1866, 2
        %v1882 = vpop.permute.xlu0 %1881
        %1883 = vrot.lane.b32.xlu0 %v1868, 2
        %v1884 = vpop.permute.xlu0 %1883
        %1885 = vrot.lane.b32.xlu0 %v1870, 2
        %v1886 = vpop.permute.xlu0 %1885
        %v1887 = vsel %vm409, %v1884, %v1886
        %v1888 = vsel %vm409, %v1882, %v1884
        %v1889 = vsel %vm409, %v1880, %v1882
        %v1890 = vsel %vm409, %v1878, %v1880
        %v1891 = vsel %vm409, %v1876, %v1878
        %v1892 = vsel %vm409, %v1874, %v1876
        %v1893 = vsel %vm409, %v1872, %v1874
        %v1894 = vsel %vm409, %v1886, %v1872
        %v1895 = vsel %vm418, %v1894, 4294967295
        %v1896 = vsel %vm419, %v1893, 4294967295
        %v1897 = vsel %vm420, %v1892, 4294967295
        %v1898 = vsel %vm421, %v1891, 4294967295
        %v1899 = vsel %vm422, %v1890, 4294967295
        %v1900 = vsel %vm423, %v1889, 4294967295
        %v1901 = vsel %vm424, %v1888, 4294967295
        %v1902 = vsel %vm425, %v1887, 4294967295
        %vm1903 = vcmp.gt.s32.totalorder %v1856, %v1895
        %v1904 = vsel %vm1903, %v1856, %v1895
        %vm1905 = vcmp.gt.s32.totalorder %v1858, %v1896
        %v1906 = vsel %vm1905, %v1858, %v1896
        %vm1907 = vcmp.gt.s32.totalorder %v1860, %v1897
        %v1908 = vsel %vm1907, %v1860, %v1897
        %vm1909 = vcmp.gt.s32.totalorder %v1862, %v1898
        %v1910 = vsel %vm1909, %v1862, %v1898
        %vm1911 = vcmp.gt.s32.totalorder %v1864, %v1899
        %v1912 = vsel %vm1911, %v1864, %v1899
        %vm1913 = vcmp.gt.s32.totalorder %v1866, %v1900
        %v1914 = vsel %vm1913, %v1866, %v1900
        %vm1915 = vcmp.gt.s32.totalorder %v1868, %v1901
        %v1916 = vsel %vm1915, %v1868, %v1901
        %vm1917 = vcmp.gt.s32.totalorder %v1870, %v1902
        %v1918 = vsel %vm1917, %v1870, %v1902
        %1919 = vrot.lane.b32.xlu0 %v1904, 4
        %v1920 = vpop.permute.xlu0 %1919
        %1921 = vrot.lane.b32.xlu0 %v1906, 4
        %v1922 = vpop.permute.xlu0 %1921
        %1923 = vrot.lane.b32.xlu0 %v1908, 4
        %v1924 = vpop.permute.xlu0 %1923
        %1925 = vrot.lane.b32.xlu0 %v1910, 4
        %v1926 = vpop.permute.xlu0 %1925
        %1927 = vrot.lane.b32.xlu0 %v1912, 4
        %v1928 = vpop.permute.xlu0 %1927
        %1929 = vrot.lane.b32.xlu0 %v1914, 4
        %v1930 = vpop.permute.xlu0 %1929
        %1931 = vrot.lane.b32.xlu0 %v1916, 4
        %v1932 = vpop.permute.xlu0 %1931
        %1933 = vrot.lane.b32.xlu0 %v1918, 4
        %v1934 = vpop.permute.xlu0 %1933
        %v1935 = vsel %vm466, %v1932, %v1934
        %v1936 = vsel %vm466, %v1930, %v1932
        %v1937 = vsel %vm466, %v1928, %v1930
        %v1938 = vsel %vm466, %v1926, %v1928
        %v1939 = vsel %vm466, %v1924, %v1926
        %v1940 = vsel %vm466, %v1922, %v1924
        %v1941 = vsel %vm466, %v1920, %v1922
        %v1942 = vsel %vm466, %v1934, %v1920
        %v1943 = vsel %vm475, %v1942, 4294967295
        %v1944 = vsel %vm476, %v1941, 4294967295
        %v1945 = vsel %vm477, %v1940, 4294967295
        %v1946 = vsel %vm478, %v1939, 4294967295
        %v1947 = vsel %vm479, %v1938, 4294967295
        %v1948 = vsel %vm480, %v1937, 4294967295
        %v1949 = vsel %vm481, %v1936, 4294967295
        %v1950 = vsel %vm482, %v1935, 4294967295
        %vm1951 = vcmp.gt.s32.totalorder %v1904, %v1943
        %v1952 = vsel %vm1951, %v1904, %v1943
        %vm1953 = vcmp.gt.s32.totalorder %v1906, %v1944
        %v1954 = vsel %vm1953, %v1906, %v1944
        %vm1955 = vcmp.gt.s32.totalorder %v1908, %v1945
        %v1956 = vsel %vm1955, %v1908, %v1945
        %vm1957 = vcmp.gt.s32.totalorder %v1910, %v1946
        %v1958 = vsel %vm1957, %v1910, %v1946
        %vm1959 = vcmp.gt.s32.totalorder %v1912, %v1947
        %v1960 = vsel %vm1959, %v1912, %v1947
        %vm1961 = vcmp.gt.s32.totalorder %v1914, %v1948
        %v1962 = vsel %vm1961, %v1914, %v1948
        %vm1963 = vcmp.gt.s32.totalorder %v1916, %v1949
        %v1964 = vsel %vm1963, %v1916, %v1949
        %vm1965 = vcmp.gt.s32.totalorder %v1918, %v1950
        %v1966 = vsel %vm1965, %v1918, %v1950
        %1967 = vrot.lane.b32.xlu0 %v1952, 8
        %v1968 = vpop.permute.xlu0 %1967
        %1969 = vrot.lane.b32.xlu0 %v1954, 8
        %v1970 = vpop.permute.xlu0 %1969
        %1971 = vrot.lane.b32.xlu0 %v1956, 8
        %v1972 = vpop.permute.xlu0 %1971
        %1973 = vrot.lane.b32.xlu0 %v1958, 8
        %v1974 = vpop.permute.xlu0 %1973
        %1975 = vrot.lane.b32.xlu0 %v1960, 8
        %v1976 = vpop.permute.xlu0 %1975
        %1977 = vrot.lane.b32.xlu0 %v1962, 8
        %v1978 = vpop.permute.xlu0 %1977
        %1979 = vrot.lane.b32.xlu0 %v1964, 8
        %v1980 = vpop.permute.xlu0 %1979
        %1981 = vrot.lane.b32.xlu0 %v1966, 8
        %v1982 = vpop.permute.xlu0 %1981
        %v1983 = vsel %vm523, %v1980, %v1982
        %v1984 = vsel %vm523, %v1978, %v1980
        %v1985 = vsel %vm523, %v1976, %v1978
        %v1986 = vsel %vm523, %v1974, %v1976
        %v1987 = vsel %vm523, %v1972, %v1974
        %v1988 = vsel %vm523, %v1970, %v1972
        %v1989 = vsel %vm523, %v1968, %v1970
        %v1990 = vsel %vm523, %v1982, %v1968
        %v1991 = vsel %vm532, %v1990, 4294967295
        %v1992 = vsel %vm533, %v1989, 4294967295
        %v1993 = vsel %vm534, %v1988, 4294967295
        %v1994 = vsel %vm535, %v1987, 4294967295
        %v1995 = vsel %vm536, %v1986, 4294967295
        %v1996 = vsel %vm537, %v1985, 4294967295
        %v1997 = vsel %vm538, %v1984, 4294967295
        %v1998 = vsel %vm539, %v1983, 4294967295
        %vm1999 = vcmp.gt.s32.totalorder %v1952, %v1991
        %v2000 = vsel %vm1999, %v1952, %v1991
        %vm2001 = vcmp.gt.s32.totalorder %v1954, %v1992
        %v2002 = vsel %vm2001, %v1954, %v1992
        %vm2003 = vcmp.gt.s32.totalorder %v1956, %v1993
        %v2004 = vsel %vm2003, %v1956, %v1993
        %vm2005 = vcmp.gt.s32.totalorder %v1958, %v1994
        %v2006 = vsel %vm2005, %v1958, %v1994
        %vm2007 = vcmp.gt.s32.totalorder %v1960, %v1995
        %v2008 = vsel %vm2007, %v1960, %v1995
        %vm2009 = vcmp.gt.s32.totalorder %v1962, %v1996
        %v2010 = vsel %vm2009, %v1962, %v1996
        %vm2011 = vcmp.gt.s32.totalorder %v1964, %v1997
        %v2012 = vsel %vm2011, %v1964, %v1997
        %vm2013 = vcmp.gt.s32.totalorder %v1966, %v1998
        %v2014 = vsel %vm2013, %v1966, %v1998
        %2015 = vrot.lane.b32.xlu0 %v2000, 16
        %v2016 = vpop.permute.xlu0 %2015
        %2017 = vrot.lane.b32.xlu0 %v2002, 16
        %v2018 = vpop.permute.xlu0 %2017
        %2019 = vrot.lane.b32.xlu0 %v2004, 16
        %v2020 = vpop.permute.xlu0 %2019
        %2021 = vrot.lane.b32.xlu0 %v2006, 16
        %v2022 = vpop.permute.xlu0 %2021
        %2023 = vrot.lane.b32.xlu0 %v2008, 16
        %v2024 = vpop.permute.xlu0 %2023
        %2025 = vrot.lane.b32.xlu0 %v2010, 16
        %v2026 = vpop.permute.xlu0 %2025
        %2027 = vrot.lane.b32.xlu0 %v2012, 16
        %v2028 = vpop.permute.xlu0 %2027
        %2029 = vrot.lane.b32.xlu0 %v2014, 16
        %v2030 = vpop.permute.xlu0 %2029
        %v2031 = vsel %vm580, %v2028, %v2030
        %v2032 = vsel %vm580, %v2026, %v2028
        %v2033 = vsel %vm580, %v2024, %v2026
        %v2034 = vsel %vm580, %v2022, %v2024
        %v2035 = vsel %vm580, %v2020, %v2022
        %v2036 = vsel %vm580, %v2018, %v2020
        %v2037 = vsel %vm580, %v2016, %v2018
        %v2038 = vsel %vm580, %v2030, %v2016
        %v2039 = vsel %vm589, %v2038, 4294967295
        %v2040 = vsel %vm590, %v2037, 4294967295
        %v2041 = vsel %vm591, %v2036, 4294967295
        %v2042 = vsel %vm592, %v2035, 4294967295
        %v2043 = vsel %vm593, %v2034, 4294967295
        %v2044 = vsel %vm594, %v2033, 4294967295
        %v2045 = vsel %vm595, %v2032, 4294967295
        %v2046 = vsel %vm596, %v2031, 4294967295
        %vm2047 = vcmp.gt.s32.totalorder %v2000, %v2039
        %v2048 = vsel %vm2047, %v2000, %v2039
        %vm2049 = vcmp.gt.s32.totalorder %v2002, %v2040
        %v2050 = vsel %vm2049, %v2002, %v2040
        %vm2051 = vcmp.gt.s32.totalorder %v2004, %v2041
        %v2052 = vsel %vm2051, %v2004, %v2041
        %vm2053 = vcmp.gt.s32.totalorder %v2006, %v2042
        %v2054 = vsel %vm2053, %v2006, %v2042
        %vm2055 = vcmp.gt.s32.totalorder %v2008, %v2043
        %v2056 = vsel %vm2055, %v2008, %v2043
        %vm2057 = vcmp.gt.s32.totalorder %v2010, %v2044
        %v2058 = vsel %vm2057, %v2010, %v2044
        %vm2059 = vcmp.gt.s32.totalorder %v2012, %v2045
        %v2060 = vsel %vm2059, %v2012, %v2045
        %vm2061 = vcmp.gt.s32.totalorder %v2014, %v2046
        %v2062 = vsel %vm2061, %v2014, %v2046
        %2063 = vrot.lane.b32.xlu0 %v2048, 32
        %v2064 = vpop.permute.xlu0 %2063
        %2065 = vrot.lane.b32.xlu0 %v2050, 32
        %v2066 = vpop.permute.xlu0 %2065
        %2067 = vrot.lane.b32.xlu0 %v2052, 32
        %v2068 = vpop.permute.xlu0 %2067
        %2069 = vrot.lane.b32.xlu0 %v2054, 32
        %v2070 = vpop.permute.xlu0 %2069
        %2071 = vrot.lane.b32.xlu0 %v2056, 32
        %v2072 = vpop.permute.xlu0 %2071
        %2073 = vrot.lane.b32.xlu0 %v2058, 32
        %v2074 = vpop.permute.xlu0 %2073
        %2075 = vrot.lane.b32.xlu0 %v2060, 32
        %v2076 = vpop.permute.xlu0 %2075
        %2077 = vrot.lane.b32.xlu0 %v2062, 32
        %v2078 = vpop.permute.xlu0 %2077
        %v2079 = vsel %vm637, %v2076, %v2078
        %v2080 = vsel %vm637, %v2074, %v2076
        %v2081 = vsel %vm637, %v2072, %v2074
        %v2082 = vsel %vm637, %v2070, %v2072
        %v2083 = vsel %vm637, %v2068, %v2070
        %v2084 = vsel %vm637, %v2066, %v2068
        %v2085 = vsel %vm637, %v2064, %v2066
        %v2086 = vsel %vm637, %v2078, %v2064
        %v2087 = vsel %vm646, %v2086, 4294967295
        %v2088 = vsel %vm647, %v2085, 4294967295
        %v2089 = vsel %vm648, %v2084, 4294967295
        %v2090 = vsel %vm649, %v2083, 4294967295
        %v2091 = vsel %vm650, %v2082, 4294967295
        %v2092 = vsel %vm651, %v2081, 4294967295
        %v2093 = vsel %vm652, %v2080, 4294967295
        %v2094 = vsel %vm653, %v2079, 4294967295
        %vm2095 = vcmp.gt.s32.totalorder %v2048, %v2087
        %v2096 = vsel %vm2095, %v2048, %v2087
        %vm2097 = vcmp.gt.s32.totalorder %v2050, %v2088
        %v2098 = vsel %vm2097, %v2050, %v2088
        %vm2099 = vcmp.gt.s32.totalorder %v2052, %v2089
        %v2100 = vsel %vm2099, %v2052, %v2089
        %vm2101 = vcmp.gt.s32.totalorder %v2054, %v2090
        %v2102 = vsel %vm2101, %v2054, %v2090
        %vm2103 = vcmp.gt.s32.totalorder %v2056, %v2091
        %v2104 = vsel %vm2103, %v2056, %v2091
        %vm2105 = vcmp.gt.s32.totalorder %v2058, %v2092
        %v2106 = vsel %vm2105, %v2058, %v2092
        %vm2107 = vcmp.gt.s32.totalorder %v2060, %v2093
        %v2108 = vsel %vm2107, %v2060, %v2093
        %vm2109 = vcmp.gt.s32.totalorder %v2062, %v2094
        %v2110 = vsel %vm2109, %v2062, %v2094
        %2111 = vrot.lane.b32.xlu0 %v2096, 64
        %v2112 = vpop.permute.xlu0 %2111
        %2113 = vrot.lane.b32.xlu0 %v2098, 64
        %v2114 = vpop.permute.xlu0 %2113
        %2115 = vrot.lane.b32.xlu0 %v2100, 64
        %v2116 = vpop.permute.xlu0 %2115
        %2117 = vrot.lane.b32.xlu0 %v2102, 64
        %v2118 = vpop.permute.xlu0 %2117
        %2119 = vrot.lane.b32.xlu0 %v2104, 64
        %v2120 = vpop.permute.xlu0 %2119
        %2121 = vrot.lane.b32.xlu0 %v2106, 64
        %v2122 = vpop.permute.xlu0 %2121
        %2123 = vrot.lane.b32.xlu0 %v2108, 64
        %v2124 = vpop.permute.xlu0 %2123
        %2125 = vrot.lane.b32.xlu0 %v2110, 64
        %v2126 = vpop.permute.xlu0 %2125
        %v2127 = vsel %vm694, %v2124, %v2126
        %v2128 = vsel %vm694, %v2122, %v2124
        %v2129 = vsel %vm694, %v2120, %v2122
        %v2130 = vsel %vm694, %v2118, %v2120
        %v2131 = vsel %vm694, %v2116, %v2118
        %v2132 = vsel %vm694, %v2114, %v2116
        %v2133 = vsel %vm694, %v2112, %v2114
        %v2134 = vsel %vm694, %v2126, %v2112
        %v2135 = vsel %vm703, %v2134, 4294967295
        %v2136 = vsel %vm704, %v2133, 4294967295
        %v2137 = vsel %vm705, %v2132, 4294967295
        %v2138 = vsel %vm706, %v2131, 4294967295
        %v2139 = vsel %vm707, %v2130, 4294967295
        %v2140 = vsel %vm708, %v2129, 4294967295
        %v2141 = vsel %vm709, %v2128, 4294967295
        %v2142 = vsel %vm710, %v2127, 4294967295
        %vm2143 = vcmp.gt.s32.totalorder %v2096, %v2135
        %v2144 = vsel %vm2143, %v2096, %v2135
        %vm2145 = vcmp.gt.s32.totalorder %v2098, %v2136
        %v2146 = vsel %vm2145, %v2098, %v2136
        %vm2147 = vcmp.gt.s32.totalorder %v2100, %v2137
        %v2148 = vsel %vm2147, %v2100, %v2137
        %vm2149 = vcmp.gt.s32.totalorder %v2102, %v2138
        %v2150 = vsel %vm2149, %v2102, %v2138
        %vm2151 = vcmp.gt.s32.totalorder %v2104, %v2139
        %v2152 = vsel %vm2151, %v2104, %v2139
        %vm2153 = vcmp.gt.s32.totalorder %v2106, %v2140
        %v2154 = vsel %vm2153, %v2106, %v2140
        %vm2155 = vcmp.gt.s32.totalorder %v2108, %v2141
        %v2156 = vsel %vm2155, %v2108, %v2141
        %vm2157 = vcmp.gt.s32.totalorder %v2110, %v2142
        %v2158 = vsel %vm2157, %v2110, %v2142
        %v2159 = vsel %vm735, %v2158, 4294967295
        %v2160 = vsel %vm736, %v2144, 4294967295
        %v2161 = vsel %vm737, %v2146, 4294967295
        %v2162 = vsel %vm738, %v2148, 4294967295
        %v2163 = vsel %vm739, %v2150, 4294967295
        %v2164 = vsel %vm740, %v2152, 4294967295
        %v2165 = vsel %vm741, %v2154, 4294967295
        %v2166 = vsel %vm742, %v2156, 4294967295
        %vm2167 = vcmp.gt.s32.totalorder %v2144, %v2159
        %v2168 = vsel %vm2167, %v2144, %v2159
        %vm2169 = vcmp.gt.s32.totalorder %v2146, %v2160
        %v2170 = vsel %vm2169, %v2146, %v2160
        %vm2171 = vcmp.gt.s32.totalorder %v2148, %v2161
        %v2172 = vsel %vm2171, %v2148, %v2161
        %vm2173 = vcmp.gt.s32.totalorder %v2150, %v2162
        %v2174 = vsel %vm2173, %v2150, %v2162
        %vm2175 = vcmp.gt.s32.totalorder %v2152, %v2163
        %v2176 = vsel %vm2175, %v2152, %v2163
        %vm2177 = vcmp.gt.s32.totalorder %v2154, %v2164
        %v2178 = vsel %vm2177, %v2154, %v2164
        %vm2179 = vcmp.gt.s32.totalorder %v2156, %v2165
        %v2180 = vsel %vm2179, %v2156, %v2165
        %vm2181 = vcmp.gt.s32.totalorder %v2158, %v2166
        %v2182 = vsel %vm2181, %v2158, %v2166
        %v2183 = vsel %vm767, %v2180, 4294967295
        %v2184 = vsel %vm768, %v2182, 4294967295
        %v2185 = vsel %vm769, %v2168, 4294967295
        %v2186 = vsel %vm770, %v2170, 4294967295
        %v2187 = vsel %vm771, %v2172, 4294967295
        %v2188 = vsel %vm772, %v2174, 4294967295
        %v2189 = vsel %vm773, %v2176, 4294967295
        %v2190 = vsel %vm774, %v2178, 4294967295
        %vm2191 = vcmp.gt.s32.totalorder %v2168, %v2183
        %v2192 = vsel %vm2191, %v2168, %v2183
        %vm2193 = vcmp.gt.s32.totalorder %v2170, %v2184
        %v2194 = vsel %vm2193, %v2170, %v2184
        %vm2195 = vcmp.gt.s32.totalorder %v2172, %v2185
        %v2196 = vsel %vm2195, %v2172, %v2185
        %vm2197 = vcmp.gt.s32.totalorder %v2174, %v2186
        %v2198 = vsel %vm2197, %v2174, %v2186
        %vm2199 = vcmp.gt.s32.totalorder %v2176, %v2187
        %v2200 = vsel %vm2199, %v2176, %v2187
        %vm2201 = vcmp.gt.s32.totalorder %v2178, %v2188
        %v2202 = vsel %vm2201, %v2178, %v2188
        %vm2203 = vcmp.gt.s32.totalorder %v2180, %v2189
        %v2204 = vsel %vm2203, %v2180, %v2189
        %vm2205 = vcmp.gt.s32.totalorder %v2182, %v2190
        %v2206 = vsel %vm2205, %v2182, %v2190
        %v2207 = vsel %vm799, %v2200, 4294967295
        %v2208 = vsel %vm800, %v2202, 4294967295
        %v2209 = vsel %vm801, %v2204, 4294967295
        %v2210 = vsel %vm802, %v2206, 4294967295
        %v2211 = vsel %vm803, %v2192, 4294967295
        %v2212 = vsel %vm804, %v2194, 4294967295
        %v2213 = vsel %vm805, %v2196, 4294967295
        %v2214 = vsel %vm806, %v2198, 4294967295
        %vm2215 = vcmp.gt.s32.totalorder %v2192, %v2207
        %v2216 = vsel %vm2215, %v2192, %v2207
        %vm2217 = vcmp.gt.s32.totalorder %v2194, %v2208
        %v2218 = vsel %vm2217, %v2194, %v2208
        %vm2219 = vcmp.gt.s32.totalorder %v2196, %v2209
        %v2220 = vsel %vm2219, %v2196, %v2209
        %vm2221 = vcmp.gt.s32.totalorder %v2198, %v2210
        %v2222 = vsel %vm2221, %v2198, %v2210
        %vm2223 = vcmp.gt.s32.totalorder %v2200, %v2211
        %v2224 = vsel %vm2223, %v2200, %v2211
        %vm2225 = vcmp.gt.s32.totalorder %v2202, %v2212
        %v2226 = vsel %vm2225, %v2202, %v2212
        %vm2227 = vcmp.gt.s32.totalorder %v2204, %v2213
        %v2228 = vsel %vm2227, %v2204, %v2213
        %vm2229 = vcmp.gt.s32.totalorder %v2206, %v2214
        %v2230 = vsel %vm2229, %v2206, %v2214
        %2231 = vrot.lane.b32.xlu0 %v2216, 1
        %v2232 = vpop.permute.xlu0 %2231
        %2233 = vrot.lane.b32.xlu0 %v2218, 1
        %v2234 = vpop.permute.xlu0 %2233
        %2235 = vrot.lane.b32.xlu0 %v2220, 1
        %v2236 = vpop.permute.xlu0 %2235
        %2237 = vrot.lane.b32.xlu0 %v2222, 1
        %v2238 = vpop.permute.xlu0 %2237
        %2239 = vrot.lane.b32.xlu0 %v2224, 1
        %v2240 = vpop.permute.xlu0 %2239
        %2241 = vrot.lane.b32.xlu0 %v2226, 1
        %v2242 = vpop.permute.xlu0 %2241
        %2243 = vrot.lane.b32.xlu0 %v2228, 1
        %v2244 = vpop.permute.xlu0 %2243
        %2245 = vrot.lane.b32.xlu0 %v2230, 1
        %v2246 = vpop.permute.xlu0 %2245
        %v2247 = vsel %vm304, %v2244, %v2246
        %v2248 = vsel %vm304, %v2242, %v2244
        %v2249 = vsel %vm304, %v2240, %v2242
        %v2250 = vsel %vm304, %v2238, %v2240
        %v2251 = vsel %vm304, %v2236, %v2238
        %v2252 = vsel %vm304, %v2234, %v2236
        %v2253 = vsel %vm304, %v2232, %v2234
        %v2254 = vsel %vm304, %v2246, %v2232
        %v2255 = vsel %vm313, %v2254, 4294967295
        %v2256 = vsel %vm314, %v2253, 4294967295
        %v2257 = vsel %vm315, %v2252, 4294967295
        %v2258 = vsel %vm316, %v2251, 4294967295
        %v2259 = vsel %vm317, %v2250, 4294967295
        %v2260 = vsel %vm318, %v2249, 4294967295
        %v2261 = vsel %vm319, %v2248, 4294967295
        %v2262 = vsel %vm320, %v2247, 4294967295
        %vm2263 = vcmp.lt.s32.totalorder %v2255, 0
        %vm2264 = vcmp.lt.s32.totalorder %v2256, 0
        %vm2265 = vcmp.lt.s32.totalorder %v2257, 0
        %vm2266 = vcmp.lt.s32.totalorder %v2258, 0
        %vm2267 = vcmp.lt.s32.totalorder %v2259, 0
        %vm2268 = vcmp.lt.s32.totalorder %v2260, 0
        %vm2269 = vcmp.lt.s32.totalorder %v2261, 0
        %vm2270 = vcmp.lt.s32.totalorder %v2262, 0
        %v2271 = vand.u32 %v2255, 1
        %v2272 = vand.u32 %v2256, 1
        %v2273 = vand.u32 %v2257, 1
        %v2274 = vand.u32 %v2258, 1
        %v2275 = vand.u32 %v2259, 1
        %v2276 = vand.u32 %v2260, 1
        %v2277 = vand.u32 %v2261, 1
        %v2278 = vand.u32 %v2262, 1
        %vm2279 = vcmp.eq.s32.totalorder %v2271, 0
        %vm2280 = vcmp.eq.s32.totalorder %v2272, 0
        %vm2281 = vcmp.eq.s32.totalorder %v2273, 0
        %vm2282 = vcmp.eq.s32.totalorder %v2274, 0
        %vm2283 = vcmp.eq.s32.totalorder %v2275, 0
        %vm2284 = vcmp.eq.s32.totalorder %v2276, 0
        %vm2285 = vcmp.eq.s32.totalorder %v2277, 0
        %vm2286 = vcmp.eq.s32.totalorder %v2278, 0
        %vm2287 = vmor %vm2263, %vm2279
        %vm2288 = vmor %vm2264, %vm2280
        %vm2289 = vmor %vm2265, %vm2281
        %vm2290 = vmor %vm2266, %vm2282
        %vm2291 = vmor %vm2267, %vm2283
        %vm2292 = vmor %vm2268, %vm2284
        %vm2293 = vmor %vm2269, %vm2285
        %vm2294 = vmor %vm2270, %vm2286
        %vm2295 = vcmp.gt.s32.totalorder %v1791, %v1795
        %v2296 = vsel %vm2295, %v1791, %v1795
        %vm2297 = vcmp.gt.s32.totalorder %v1792, %v1796
        %v2298 = vsel %vm2297, %v1792, %v1796
        %vm2299 = vcmp.gt.s32.totalorder %v1793, %v1797
        %v2300 = vsel %vm2299, %v1793, %v1797
        %vm2301 = vcmp.gt.s32.totalorder %v1794, %v1798
        %v2302 = vsel %vm2301, %v1794, %v1798
        %vm2303 = vcmp.gt.s32.totalorder %v2296, %v2298
        %v2304 = vsel %vm2303, %v2296, %v2298
        %vm2305 = vcmp.gt.s32.totalorder %v2300, %v2302
        %v2306 = vsel %vm2305, %v2300, %v2302
        %vm2307 = vcmp.gt.s32.totalorder %v2304, %v2306
        %v2308 = vsel %vm2307, %v2304, %v2306
        %v2309 = vand.u32 %v2308, 65535
        %v2310 = vshra.s32 %v2308, 16
        %v2311 = vcvt.s32.f32 %v2309
        %v2312 = vcvt.s32.f32 %v2310
        %2313 = vmax.xlane.f32.xlu0 %v2312
        %v2314 = vpop.xlane.xlu0 %2313
        %vm2315 = vcmp.eq.f32.partialorder %v2312, %v2314
        %v2316 = vsel %vm2315, %v2311, -inf
        %2317 = vmax.xlane.f32.xlu0 %v2316
        %v2318 = vpop.xlane.xlu0 %2317
        %v2319 = vcvt.f32.s32 %v2318
        %v2320 = vcvt.f32.s32 %v2314
        %v2321 = vshll.u32 %v2320, 16
        %v2322 = vadd.s32 %v2321, %v2319
        %vm2323 = vcmp.gt.s32.totalorder %v248, %v2322
        %vm2324 = vcmp.gt.s32.totalorder %v249, %v2322
        %vm2325 = vcmp.gt.s32.totalorder %v250, %v2322
        %vm2326 = vcmp.gt.s32.totalorder %v251, %v2322
        %vm2327 = vcmp.gt.s32.totalorder %v252, %v2322
        %vm2328 = vcmp.gt.s32.totalorder %v253, %v2322
        %vm2329 = vcmp.gt.s32.totalorder %v254, %v2322
        %vm2330 = vcmp.gt.s32.totalorder %v255, %v2322
        %vm2331 = vmor %vm2287, %vm2323
        %vm2332 = vmor %vm2288, %vm2324
        %vm2333 = vmor %vm2289, %vm2325
        %vm2334 = vmor %vm2290, %vm2326
        %vm2335 = vmor %vm2291, %vm2327
        %vm2336 = vmor %vm2292, %vm2328
        %vm2337 = vmor %vm2293, %vm2329
        %vm2338 = vmor %vm2294, %vm2330
        %vm2339 = vmand %vm1775, %vm2331
        %vm2340 = vmand %vm1776, %vm2332
        %vm2341 = vmand %vm1777, %vm2333
        %vm2342 = vmand %vm1778, %vm2334
        %vm2343 = vmand %vm1779, %vm2335
        %vm2344 = vmand %vm1780, %vm2336
        %vm2345 = vmand %vm1781, %vm2337
        %vm2346 = vmand %vm1782, %vm2338
        %vm2347 = vmxor %vm2339, 1
        %vm2348 = vmxor %vm2340, 1
        %vm2349 = vmxor %vm2341, 1
        %vm2350 = vmxor %vm2342, 1
        %vm2351 = vmxor %vm2343, 1
        %vm2352 = vmxor %vm2344, 1
        %vm2353 = vmxor %vm2345, 1
        %vm2354 = vmxor %vm2346, 1
        %vm2355 = vmand %vm1767, %vm2347
        %vm2356 = vmand %vm1768, %vm2348
        %vm2357 = vmand %vm1769, %vm2349
        %vm2358 = vmand %vm1770, %vm2350
        %vm2359 = vmand %vm1771, %vm2351
        %vm2360 = vmand %vm1772, %vm2352
        %vm2361 = vmand %vm1773, %vm2353
        %vm2362 = vmand %vm1774, %vm2354
        %v2363 = vsel %vm232, 32, %v184
        %v2364 = vsel %vm233, 32, %v185
        %v2365 = vsel %vm234, 32, %v186
        %v2366 = vsel %vm235, 32, %v187
        %v2367 = vsel %vm236, 32, %v188
        %v2368 = vsel %vm237, 32, %v189
        %v2369 = vsel %vm238, 32, %v190
        %v2370 = vsel %vm239, 32, %v191
        %v2371 = vsel %vm2355, %v2363, 0
        %v2372 = vsel %vm2356, %v2364, 0
        %v2373 = vsel %vm2357, %v2365, 0
        %v2374 = vsel %vm2358, %v2366, 0
        %v2375 = vsel %vm2359, %v2367, 0
        %v2376 = vsel %vm2360, %v2368, 0
        %v2377 = vsel %vm2361, %v2369, 0
        %v2378 = vsel %vm2362, %v2370, 0
        %2379 = vst [vmem:[%s134] sm:$0xff] %v2371
        %2380 = vst [vmem:[%s134 + $0x8] sm:$0xff] %v2372
        %2381 = vst [vmem:[%s134 + $0x10] sm:$0xff] %v2373
        %2382 = vst [vmem:[%s134 + $0x18] sm:$0xff] %v2374
        %2383 = vst [vmem:[%s134 + $0x20] sm:$0xff] %v2375
        %2384 = vst [vmem:[%s134 + $0x28] sm:$0xff] %v2376
        %2385 = vst [vmem:[%s134 + $0x30] sm:$0xff] %v2377
        %2386 = vst [vmem:[%s134 + $0x38] sm:$0xff] %v2378
        %s2387 = sand.u32 %s52, 1
        %s2388 = scalar_lea.sflag [#allocation4], %s2387
        %s2389 = sand.u32 %s52, 1
        %s2390 = smul.addr %s2389, 64
        %s2391 = scalar_lea.vmem [#allocation5], %s2390
        // Predicated region
        $region29: #{tpu_custom_call.1} parent=23 // pred_check
          %p2392 = pneg %p62
        $region30: #{tpu_custom_call.1} parent=23 // pred_check_branch
          %2394 = sbr.rel (%p2392) target = $region32
        $region31: #{tpu_custom_call.1} parent=23 // pred_region
          %2396 = vsyncadd %s2388, 0
          %s2397 = smul.addr %s18, 8
          %s2398 = smul.addr %s2397, 8
          %s2399 = scalar_lea.hbm %s1, %s2398
          %s2401 = sshll.u32 %s2391, 4
          %s2402 = int_to_ptr.vmem [resolvable:$true] %s2401
          %s2403 = sshll.u32 %s2399, 4
          %s2404 = int_to_ptr.hbm [resolvable:$true] %s2403
          %2406 = dma.vmem_to_hbm [thread:$0]  %s2402, 1024, %s2404, %s2388
        $region32: #{tpu_custom_call.1} parent=23 // pred_fallthru
          _
      $region24: #{tpu_custom_call.1} parent=5 // pred_fallthru
        _
      %p2407 = scmp.le.s32.totalorder 2, %s13
      // Predicated region
      $region33: #{tpu_custom_call.1} parent=5 // pred_check
        %p2408 = pneg %p2407
      $region34: #{tpu_custom_call.1} parent=5 // pred_check_branch
        %2410 = sbr.rel (%p2408) target = $region36
      $region35: #{tpu_custom_call.1} parent=5 // pred_region
        %s2411 = ssub.s32 %s13, 2
        // Predicated region
        $region37: #{tpu_custom_call.1} parent=35 // pred_check
          %p2412 = pneg %p68
        $region38: #{tpu_custom_call.1} parent=35 // pred_check_branch
          %2414 = sbr.rel (%p2412) target = $region40
        $region39: #{tpu_custom_call.1} parent=35 // pred_region
          %s2415 = sand.u32 %s53, 1
          %s2416 = scalar_lea.sflag [#allocation4], %s2415
          %s2417 = sand.u32 %s53, 1
          %s2418 = smul.addr %s2417, 64
          %s2419 = scalar_lea.vmem [#allocation5], %s2418
          %2421 = dma.done %s2416, 1024
        $region40: #{tpu_custom_call.1} parent=35 // pred_fallthru
          _
      $region36: #{tpu_custom_call.1} parent=5 // pred_fallthru
        _
    $region6: #{tpu_custom_call.1} parent=1 // loop_footer
      %s17 = sadd.s32 1, %s13
    $region7: #{tpu_custom_call.1} parent=1 // loop_footer_branch
      %12 = sbr.rel target = $region3
    $region8: #{tpu_custom_call.1} parent=1 // loop_exit
      _
    %2422 = vsyncpa [#allocation3], 1
    %s2423 = scalar_lea.sflag [#allocation3], 1
    %2424 = vsyncpa %s2423, 1
    %2425 = vsyncpa [#allocation4], 1
    %s2426 = scalar_lea.sflag [#allocation4], 1
    %2427 = vsyncpa %s2426, 1

</llo_original>
